<compile_context>
chip_gen: v5e
topology: v5e:2x2
jax: 0.10.0
libtpu: 0.0.40
codegen_flags: <defaults>
</compile_context>

<pallas_src>
import functools

import numpy as np
import jax
import jax.numpy as jnp
from jax.experimental import pallas as pl
from jax.experimental.pallas import tpu as pltpu


_VMEM_LIMIT = 32 * 1024 * 1024


# ---------------------------------------------------------------------------
# Pallas kernels
# ---------------------------------------------------------------------------
def _conv_block_kernel(x_ref, w_ref, b_ref, o_ref, *scratch, pool_input):
    """Fused [input v-pool] + conv(valid) + bias + ReLU + horizontal 2-max-pool.

    x_ref : (B, Hin, Win*Cin)                          if pool_input=False
            (B, Hin, 2*Win*Cin)  lanes = [even-h half | odd-h half]
                                                        if pool_input=True
    w_ref : (kh, Win*Cin, 2*Wp*Cout)  width-Toeplitz weights; output columns
                                      ordered (w parity, w//2, cout).
    b_ref : (1, Wp*Cout)
    o_ref : (B, Hout, Wp*Cout)        Hout = Hin - kh + 1 (lane-dense store).
    scratch: [ain (Hin, Win*Cin)] (only if pool_input) + [acc (Hout, 2*Wp*Cout)]
    """
    if pool_input:
        ain_ref, acc_ref = scratch
    else:
        (acc_ref,) = scratch
    bn, _, lin = x_ref.shape
    kh = w_ref.shape[0]
    ncol = w_ref.shape[2]
    hout = o_ref.shape[1]
    half = ncol // 2
    for b in range(bn):
        if pool_input:
            hl = lin // 2
            # Vertical 2-max-pool of the previous layer (free HBM reshape put
            # the even/odd rows in the two lane halves).
            ain_ref[...] = jnp.maximum(x_ref[b, :, pl.ds(0, hl)],
                                       x_ref[b, :, pl.ds(hl, hl)])
        acc = None
        for i in range(kh):                      # kh shift-matmuls (one per tap row)
            if pool_input:
                xs = ain_ref[pl.ds(i, hout), :]
            else:
                xs = x_ref[b, pl.ds(i, hout), :]
            t = jnp.dot(xs, w_ref[i], preferred_element_type=jnp.float32)
            acc = t if acc is None else acc + t
        acc_ref[...] = acc
        # Horizontal 2-max-pool = max of the two column-parity halves.
        y = jnp.maximum(acc_ref[:, pl.ds(0, half)],
                        acc_ref[:, pl.ds(half, half)]) + b_ref[...]
        o_ref[b] = jnp.maximum(y, 0.0).astype(o_ref.dtype)


def _fc_head_kernel(x_ref, w1_ref, b1_ref, w2_ref, b2_ref, w3_ref, b3_ref,
                    o_ref, *, seg):
    """Fused conv3 vertical-pool + fc1 -> ReLU -> fc2 -> ReLU -> fc3.

    x_ref : (B, nh*2*seg)  per sample, conv3's h-pooled map flattened as
            (h_out, w//2, c); seg = Wp3*Cout3 = 80.
    w1_ref: (nh*seg, 256)  fc1 re-embedded to (h, w, c) row order (padded).
    """
    nh = w1_ref.shape[0] // seg
    h1 = None
    for h in range(nh):
        v = jnp.maximum(x_ref[:, pl.ds(2 * seg * h, seg)],
                        x_ref[:, pl.ds(2 * seg * h + seg, seg)])
        t = jnp.dot(v, w1_ref[pl.ds(seg * h, seg), :],
                    preferred_element_type=jnp.float32)
        h1 = t if h1 is None else h1 + t
    h1 = jnp.maximum(h1 + b1_ref[...], 0.0)
    h2 = jnp.maximum(
        jnp.dot(h1, w2_ref[...], preferred_element_type=jnp.float32)
        + b2_ref[...], 0.0)
    out = jnp.dot(h2, w3_ref[...], preferred_element_type=jnp.float32)
    o_ref[...] = (out + b3_ref[...]).astype(o_ref.dtype)


# ---------------------------------------------------------------------------
# pallas_call wrappers
# ---------------------------------------------------------------------------
def conv_pool_layer(x, w, b, *, pool_input, block_n):
    npad, hin, lin = x.shape
    kh, kdim, ncol = w.shape
    hout = hin - kh + 1
    half = ncol // 2
    assert b.shape == (1, half)
    assert kdim == (lin // 2 if pool_input else lin)
    assert npad % block_n == 0
    nb = npad // block_n
    scratch = [pltpu.VMEM((hout, ncol), jnp.float32)]
    if pool_input:
        scratch.insert(0, pltpu.VMEM((hin, lin // 2), jnp.float32))
    return pl.pallas_call(
        functools.partial(_conv_block_kernel, pool_input=pool_input),
        out_shape=jax.ShapeDtypeStruct((npad, hout, half), jnp.float32),
        grid=(nb,),
        in_specs=[
            pl.BlockSpec((block_n, hin, lin), lambda g: (g, 0, 0)),
            pl.BlockSpec((kh, kdim, ncol), lambda g: (0, 0, 0)),
            pl.BlockSpec((1, half), lambda g: (0, 0)),
        ],
        out_specs=pl.BlockSpec((block_n, hout, half), lambda g: (g, 0, 0)),
        scratch_shapes=scratch,
        compiler_params=pltpu.CompilerParams(
            dimension_semantics=("parallel",),
            vmem_limit_bytes=_VMEM_LIMIT),
    )(x, w, b)


def fc_head(x, w1, b1, w2, b2, w3, b3, *, seg, block_n):
    npad, d = x.shape
    assert npad % block_n == 0
    nb = npad // block_n
    nout = w3.shape[1]
    return pl.pallas_call(
        functools.partial(_fc_head_kernel, seg=seg),
        out_shape=jax.ShapeDtypeStruct((npad, nout), jnp.float32),
        grid=(nb,),
        in_specs=[
            pl.BlockSpec((block_n, d), lambda g: (g, 0)),
            pl.BlockSpec(w1.shape, lambda g: (0, 0)),
            pl.BlockSpec(b1.shape, lambda g: (0, 0)),
            pl.BlockSpec(w2.shape, lambda g: (0, 0)),
            pl.BlockSpec(b2.shape, lambda g: (0, 0)),
            pl.BlockSpec(w3.shape, lambda g: (0, 0)),
            pl.BlockSpec(b3.shape, lambda g: (0, 0)),
        ],
        out_specs=pl.BlockSpec((block_n, nout), lambda g: (g, 0)),
        compiler_params=pltpu.CompilerParams(
            dimension_semantics=("parallel",),
            vmem_limit_bytes=_VMEM_LIMIT),
    )(x, w1, b1, w2, b2, w3, b3)


def _pick_conv_block(n):
    # >= 2 grid steps whenever batch >= 2 (v7x has 2 TensorCores); cap at 8
    # samples/step so per-step VMEM stays ~5 MiB (v7x has 64 MiB physical).
    if n <= 3:
        return 1
    return max(1, min(8, n // 2))


def _pick_fc_block(npad):
    # FC input is 2D, so the batch block must be a multiple of 8 or the full
    # batch; pick the largest multiple of 8 (<=256) that divides npad.
    cap = min(256, (npad // 8) * 8)
    for d in range(cap, 0, -8):
        if npad % d == 0:
            return d
    return npad


# ---------------------------------------------------------------------------
# Parameters (PyTorch layout) and one-time kernel re-layout
# ---------------------------------------------------------------------------
def init_params(key):
    def dense_init(k, shape, fan_in):
        return jax.random.normal(k, shape, jnp.float32) / jnp.sqrt(fan_in)

    ks = jax.random.split(key, 12)
    p = {}
    p["conv1_w"] = dense_init(ks[0], (10, 3, 5, 5), 3 * 25)
    p["conv1_b"] = dense_init(ks[1], (10,), 3 * 25)
    p["conv2_w"] = dense_init(ks[2], (15, 10, 3, 3), 10 * 9)
    p["conv2_b"] = dense_init(ks[3], (15,), 10 * 9)
    p["conv3_w"] = dense_init(ks[4], (20, 15, 3, 3), 15 * 9)
    p["conv3_b"] = dense_init(ks[5], (20,), 15 * 9)
    p["fc1_w"] = dense_init(ks[6], (248, 320), 320)
    p["fc1_b"] = dense_init(ks[7], (248,), 320)
    p["fc2_w"] = dense_init(ks[8], (128, 248), 248)
    p["fc2_b"] = dense_init(ks[9], (128,), 248)
    p["fc3_w"] = dense_init(ks[10], (27, 128), 128)
    p["fc3_b"] = dense_init(ks[11], (27,), 128)
    return p


def _toeplitz_conv_weight(w, win):
    """PyTorch (O, Cin, kh, kw) -> (kh, Win*Cin, 2*Wp*O) width-Toeplitz weight.

    Row index = w_in*Cin + cin; column index = parity*(Wp*O) + (w_out//2)*O + o
    with w_out = 2*(w_out//2) + parity, so that
        out_row(h_out) = sum_i input_row(h_out + i) @ T[i]
    reproduces the valid cross-correlation with the output columns already
    grouped for the horizontal 2-max-pool (max of the two column halves).
    """
    w = np.asarray(w)                       # (O, Cin, kh, kw)
    o, cin, kh, kw = w.shape
    wout = win - kw + 1
    wp = wout // 2
    wt = np.transpose(w, (2, 3, 1, 0))      # (kh, kw, Cin, O)
    t = np.zeros((kh, win, cin, 2, wp, o), np.float32)
    for j in range(kw):
        for wo in range(wout):
            par, p = wo % 2, wo // 2
            t[:, wo + j, :, par, p, :] = wt[:, j, :, :]
    return jnp.asarray(t.reshape(kh, win * cin, 2 * wp * o))


def preprocess_params(p):
    """One-time re-layout of PyTorch-style params for the kernels."""
    kp = {}
    for li, win in zip((1, 2, 3), (48, 22, 10)):
        w = p[f"conv{li}_w"]
        o, kw = w.shape[0], w.shape[3]
        wp = (win - kw + 1) // 2
        kp[f"t{li}"] = _toeplitz_conv_weight(w, win)
        # Bias broadcast to the pooled (w//2, c) column order.
        kp[f"b{li}"] = jnp.tile(p[f"conv{li}_b"], wp).reshape(1, wp * o)
    # fc1: re-embed PyTorch's (c, h, w) flatten order into our (h, w, c)
    # pooled layout; pad the hidden width 248 -> 256 (lane-dense, zero cols).
    c3, hp3, wp3 = 20, 4, 4
    w1 = p["fc1_w"].reshape(-1, c3, hp3, wp3)               # (out, c, h, w)
    w1 = jnp.transpose(w1, (2, 3, 1, 0)).reshape(hp3 * wp3 * c3, -1)  # (320, 248)
    kp["fc1_w"] = jnp.pad(w1, ((0, 0), (0, 8)))             # (320, 256)
    kp["fc1_b"] = jnp.pad(p["fc1_b"], (0, 8)).reshape(1, 256)
    kp["fc2_w"] = jnp.pad(p["fc2_w"].T, ((0, 8), (0, 0)))   # (256, 128)
    kp["fc2_b"] = p["fc2_b"].reshape(1, -1)
    kp["fc3_w"] = p["fc3_w"].T                              # (128, 27)
    kp["fc3_b"] = p["fc3_b"].reshape(1, -1)
    return kp


# ---------------------------------------------------------------------------
# Forward pass
# ---------------------------------------------------------------------------
def net_forward(kp, x):
    """x: (N, 3, 48, 48) float32, NCHW (PyTorch convention). Returns (N, 27)."""
    n, cin, hin, win = x.shape
    # NCHW -> (N, H, W*C) once; afterwards every re-layout is a free reshape.
    a = jnp.transpose(x, (0, 2, 3, 1)).astype(jnp.float32).reshape(n, hin, win * cin)
    block_n = _pick_conv_block(n)
    npad = ((n + block_n - 1) // block_n) * block_n
    if npad != n:
        a = jnp.pad(a, ((0, npad - n), (0, 0), (0, 0)))
    y = conv_pool_layer(a, kp["t1"], kp["b1"], pool_input=False,
                        block_n=block_n)                     # (Np, 44, 220)
    y = y.reshape(npad, 22, 440)                             # free reshape
    y = conv_pool_layer(y, kp["t2"], kp["b2"], pool_input=True,
                        block_n=block_n)                     # (Np, 20, 150)
    y = y.reshape(npad, 10, 300)
    y = conv_pool_layer(y, kp["t3"], kp["b3"], pool_input=True,
                        block_n=block_n)                     # (Np, 8, 80)
    feats = y.reshape(npad, 640)
    # TODO(synk): nn.Dropout(p=0.5) modeled in eval mode (identity); no RNG mask.
    out = fc_head(feats, kp["fc1_w"], kp["fc1_b"], kp["fc2_w"], kp["fc2_b"],
                  kp["fc3_w"], kp["fc3_b"], seg=80,
                  block_n=_pick_fc_block(npad))
    return out[:n]


# ---------------------------------------------------------------------------
# Plain-JAX reference (same PyTorch semantics) for a correctness check
# ---------------------------------------------------------------------------
def reference_forward(params, x):
    hi = jax.lax.Precision.HIGHEST

    def conv(x, w, b):
        y = jax.lax.conv_general_dilated(
            x, w, window_strides=(1, 1), padding="VALID",
            dimension_numbers=("NCHW", "OIHW", "NCHW"), precision=hi)
        return jax.nn.relu(y + b[None, :, None, None])

    def pool(x):
        return jax.lax.reduce_window(x, -jnp.inf, jax.lax.max,
                                     (1, 1, 2, 2), (1, 1, 2, 2), "VALID")

    x = pool(conv(x, params["conv1_w"], params["conv1_b"]))
    x = pool(conv(x, params["conv2_w"], params["conv2_b"]))
    x = pool(conv(x, params["conv3_w"], params["conv3_b"]))
    x = x.reshape(x.shape[0], -1)
    x = jax.nn.relu(jnp.dot(x, params["fc1_w"].T, precision=hi) + params["fc1_b"])
    x = jax.nn.relu(jnp.dot(x, params["fc2_w"].T, precision=hi) + params["fc2_b"])
    return jnp.dot(x, params["fc3_w"].T, precision=hi) + params["fc3_b"]


if __name__ == "__main__":
    key = jax.random.PRNGKey(0)
    pkey, xkey = jax.random.split(key)
    params = init_params(pkey)
    kparams = preprocess_params(params)

    # 48x48 input spatial size is what the module's 20*4*4 flatten implies.
    x = jax.random.normal(xkey, (2, 3, 48, 48), jnp.float32)

    out = jax.block_until_ready(jax.jit(net_forward)(kparams, x))
    assert out.shape == (2, 27), out.shape

    ref = jax.block_until_ready(jax.jit(reference_forward)(params, x))
    # Loose-ish tolerance: covers MXU f32 matmul precision differences while
    # still catching any indexing/layout error (which would be O(1) off).
    if not jnp.allclose(out, ref, rtol=3e-2, atol=3e-3):
        err = float(jnp.max(jnp.abs(out - ref)))
        raise AssertionError(f"Pallas forward mismatch vs reference (max|err|={err})")
    print("KERNEL_OK")
</pallas_src>

<mosaic_0001>
module attributes {stable_mosaic.version = 11 : i64} {
  func.func @_conv_block_kernel(%arg0: i32, %arg1: memref<1x48x144xf32, #tpu.memory_space<vmem>>, %arg2: memref<5x144x440xf32, #tpu.memory_space<vmem>>, %arg3: memref<1x220xf32, #tpu.memory_space<vmem>>, %arg4: memref<1x44x220xf32, #tpu.memory_space<vmem>>, %arg5: memref<44x440xf32, #tpu.memory_space<vmem>>) attributes {dimension_semantics = [#tpu.dimension_semantics<parallel>], iteration_bounds = array<i64: 2>, scalar_prefetch = 0 : i64, scratch_operands = 1 : i64, tpu.core_type = #tpu.core_type<tc>, window_params = [{transform_indices = @transform_0, window_bounds = array<i64: 1, 48, 144>}, {pipeline_mode = #tpu.pipeline_mode<synchronous>, transform_indices = @transform_1, window_bounds = array<i64: 5, 144, 440>}, {pipeline_mode = #tpu.pipeline_mode<synchronous>, transform_indices = @transform_2, window_bounds = array<i64: 1, 220>}, {transform_indices = @transform_3, window_bounds = array<i64: 1, 44, 220>}]} {
    %c0 = arith.constant 0 : index
    %c0_0 = arith.constant 0 : index
    %c0_1 = arith.constant 0 : index
    %0 = vector.load %arg1[%c0, %c0_0, %c0_1] : memref<1x48x144xf32, #tpu.memory_space<vmem>>, vector<1x44x144xf32>
    %1 = vector.shape_cast %0 : vector<1x44x144xf32> to vector<44x144xf32>
    %c0_2 = arith.constant 0 : index
    %c0_3 = arith.constant 0 : index
    %c0_4 = arith.constant 0 : index
    %2 = vector.load %arg2[%c0_2, %c0_3, %c0_4] : memref<5x144x440xf32, #tpu.memory_space<vmem>>, vector<1x144x440xf32>
    %3 = vector.shape_cast %2 : vector<1x144x440xf32> to vector<144x440xf32>
    %cst = arith.constant dense<0.000000e+00> : vector<44x440xf32>
    %4 = tpu.matmul %1, %3, %cst {dimension_numbers = #tpu.dot_dimension_numbers<[1], [0], [0], [1], [0, 0, 1, 1], [], []>} : vector<44x144xf32>, vector<144x440xf32>, vector<44x440xf32> -> vector<44x440xf32>
    %c0_5 = arith.constant 0 : index
    %c1 = arith.constant 1 : index
    %c0_6 = arith.constant 0 : index
    %5 = vector.load %arg1[%c0_5, %c1, %c0_6] : memref<1x48x144xf32, #tpu.memory_space<vmem>>, vector<1x44x144xf32>
    %6 = vector.shape_cast %5 : vector<1x44x144xf32> to vector<44x144xf32>
    %c1_7 = arith.constant 1 : index
    %c0_8 = arith.constant 0 : index
    %c0_9 = arith.constant 0 : index
    %7 = vector.load %arg2[%c1_7, %c0_8, %c0_9] : memref<5x144x440xf32, #tpu.memory_space<vmem>>, vector<1x144x440xf32>
    %8 = vector.shape_cast %7 : vector<1x144x440xf32> to vector<144x440xf32>
    %cst_10 = arith.constant dense<0.000000e+00> : vector<44x440xf32>
    %9 = tpu.matmul %6, %8, %cst_10 {dimension_numbers = #tpu.dot_dimension_numbers<[1], [0], [0], [1], [0, 0, 1, 1], [], []>} : vector<44x144xf32>, vector<144x440xf32>, vector<44x440xf32> -> vector<44x440xf32>
    %10 = arith.addf %4, %9 : vector<44x440xf32>
    %c0_11 = arith.constant 0 : index
    %c2 = arith.constant 2 : index
    %c0_12 = arith.constant 0 : index
    %11 = vector.load %arg1[%c0_11, %c2, %c0_12] : memref<1x48x144xf32, #tpu.memory_space<vmem>>, vector<1x44x144xf32>
    %12 = vector.shape_cast %11 : vector<1x44x144xf32> to vector<44x144xf32>
    %c2_13 = arith.constant 2 : index
    %c0_14 = arith.constant 0 : index
    %c0_15 = arith.constant 0 : index
    %13 = vector.load %arg2[%c2_13, %c0_14, %c0_15] : memref<5x144x440xf32, #tpu.memory_space<vmem>>, vector<1x144x440xf32>
    %14 = vector.shape_cast %13 : vector<1x144x440xf32> to vector<144x440xf32>
    %cst_16 = arith.constant dense<0.000000e+00> : vector<44x440xf32>
    %15 = tpu.matmul %12, %14, %cst_16 {dimension_numbers = #tpu.dot_dimension_numbers<[1], [0], [0], [1], [0, 0, 1, 1], [], []>} : vector<44x144xf32>, vector<144x440xf32>, vector<44x440xf32> -> vector<44x440xf32>
    %16 = arith.addf %10, %15 : vector<44x440xf32>
    %c0_17 = arith.constant 0 : index
    %c3 = arith.constant 3 : index
    %c0_18 = arith.constant 0 : index
    %17 = vector.load %arg1[%c0_17, %c3, %c0_18] : memref<1x48x144xf32, #tpu.memory_space<vmem>>, vector<1x44x144xf32>
    %18 = vector.shape_cast %17 : vector<1x44x144xf32> to vector<44x144xf32>
    %c3_19 = arith.constant 3 : index
    %c0_20 = arith.constant 0 : index
    %c0_21 = arith.constant 0 : index
    %19 = vector.load %arg2[%c3_19, %c0_20, %c0_21] : memref<5x144x440xf32, #tpu.memory_space<vmem>>, vector<1x144x440xf32>
    %20 = vector.shape_cast %19 : vector<1x144x440xf32> to vector<144x440xf32>
    %cst_22 = arith.constant dense<0.000000e+00> : vector<44x440xf32>
    %21 = tpu.matmul %18, %20, %cst_22 {dimension_numbers = #tpu.dot_dimension_numbers<[1], [0], [0], [1], [0, 0, 1, 1], [], []>} : vector<44x144xf32>, vector<144x440xf32>, vector<44x440xf32> -> vector<44x440xf32>
    %22 = arith.addf %16, %21 : vector<44x440xf32>
    %c0_23 = arith.constant 0 : index
    %c4 = arith.constant 4 : index
    %c0_24 = arith.constant 0 : index
    %23 = vector.load %arg1[%c0_23, %c4, %c0_24] : memref<1x48x144xf32, #tpu.memory_space<vmem>>, vector<1x44x144xf32>
    %24 = vector.shape_cast %23 : vector<1x44x144xf32> to vector<44x144xf32>
    %c4_25 = arith.constant 4 : index
    %c0_26 = arith.constant 0 : index
    %c0_27 = arith.constant 0 : index
    %25 = vector.load %arg2[%c4_25, %c0_26, %c0_27] : memref<5x144x440xf32, #tpu.memory_space<vmem>>, vector<1x144x440xf32>
    %26 = vector.shape_cast %25 : vector<1x144x440xf32> to vector<144x440xf32>
    %cst_28 = arith.constant dense<0.000000e+00> : vector<44x440xf32>
    %27 = tpu.matmul %24, %26, %cst_28 {dimension_numbers = #tpu.dot_dimension_numbers<[1], [0], [0], [1], [0, 0, 1, 1], [], []>} : vector<44x144xf32>, vector<144x440xf32>, vector<44x440xf32> -> vector<44x440xf32>
    %28 = arith.addf %22, %27 : vector<44x440xf32>
    %c0_29 = arith.constant 0 : index
    %c0_30 = arith.constant 0 : index
    %29 = vector.load %arg5[%c0_29, %c0_30] : memref<44x440xf32, #tpu.memory_space<vmem>>, vector<44x440xf32>
    tpu.vector_store %arg5[%c0_29, %c0_30], %28 {strides = array<i32>} : memref<44x440xf32, #tpu.memory_space<vmem>>, vector<44x440xf32>,
    %c0_31 = arith.constant 0 : index
    %c0_32 = arith.constant 0 : index
    %30 = vector.load %arg5[%c0_31, %c0_32] : memref<44x440xf32, #tpu.memory_space<vmem>>, vector<44x220xf32>
    %c0_33 = arith.constant 0 : index
    %c220 = arith.constant 220 : index
    %31 = vector.load %arg5[%c0_33, %c220] : memref<44x440xf32, #tpu.memory_space<vmem>>, vector<44x220xf32>
    %32 = arith.maximumf %30, %31 : vector<44x220xf32>
    %c0_34 = arith.constant 0 : index
    %c0_35 = arith.constant 0 : index
    %33 = vector.load %arg3[%c0_34, %c0_35] : memref<1x220xf32, #tpu.memory_space<vmem>>, vector<1x220xf32>
    %34 = vector.broadcast %33 : vector<1x220xf32> to vector<44x220xf32>
    %35 = arith.addf %32, %34 : vector<44x220xf32>
    %cst_36 = arith.constant 0.000000e+00 : f32
    %36 = vector.broadcast %cst_36 : f32 to vector<44x220xf32>
    %37 = arith.maximumf %35, %36 : vector<44x220xf32>
    %c0_37 = arith.constant 0 : index
    %c0_38 = arith.constant 0 : index
    %c0_39 = arith.constant 0 : index
    %38 = vector.load %arg4[%c0_37, %c0_38, %c0_39] : memref<1x44x220xf32, #tpu.memory_space<vmem>>, vector<1x44x220xf32>
    %39 = vector.shape_cast %38 : vector<1x44x220xf32> to vector<44x220xf32>
    %40 = vector.shape_cast %37 : vector<44x220xf32> to vector<1x44x220xf32>
    tpu.vector_store %arg4[%c0_37, %c0_38, %c0_39], %40 {strides = array<i32>} : memref<1x44x220xf32, #tpu.memory_space<vmem>>, vector<1x44x220xf32>,
    return
  }
  func.func @transform_0(%arg0: i32) -> (i32, i32, i32) {
    %c0_i32 = arith.constant 0 : i32
    %c0_i32_0 = arith.constant 0 : i32
    %c0_i32_1 = arith.constant 0 : i32
    return %arg0, %c0_i32, %c0_i32_0 : i32, i32, i32
  }
  func.func @transform_1(%arg0: i32) -> (i32, i32, i32) {
    %c0_i32 = arith.constant 0 : i32
    %c0_i32_0 = arith.constant 0 : i32
    %c0_i32_1 = arith.constant 0 : i32
    %c0_i32_2 = arith.constant 0 : i32
    return %c0_i32, %c0_i32_0, %c0_i32_1 : i32, i32, i32
  }
  func.func @transform_2(%arg0: i32) -> (i32, i32) {
    %c0_i32 = arith.constant 0 : i32
    %c0_i32_0 = arith.constant 0 : i32
    %c0_i32_1 = arith.constant 0 : i32
    return %c0_i32, %c0_i32_0 : i32, i32
  }
  func.func @transform_3(%arg0: i32) -> (i32, i32, i32) {
    %c0_i32 = arith.constant 0 : i32
    %c0_i32_0 = arith.constant 0 : i32
    %c0_i32_1 = arith.constant 0 : i32
    return %arg0, %c0_i32, %c0_i32_0 : i32, i32, i32
  }
}

module attributes {stable_mosaic.version = 11 : i64} {
  func.func @_conv_block_kernel(%arg0: i32, %arg1: memref<1x22x440xf32, #tpu.memory_space<vmem>>, %arg2: memref<3x220x300xf32, #tpu.memory_space<vmem>>, %arg3: memref<1x150xf32, #tpu.memory_space<vmem>>, %arg4: memref<1x20x150xf32, #tpu.memory_space<vmem>>, %arg5: memref<22x220xf32, #tpu.memory_space<vmem>>, %arg6: memref<20x300xf32, #tpu.memory_space<vmem>>) attributes {dimension_semantics = [#tpu.dimension_semantics<parallel>], iteration_bounds = array<i64: 2>, scalar_prefetch = 0 : i64, scratch_operands = 2 : i64, tpu.core_type = #tpu.core_type<tc>, window_params = [{transform_indices = @transform_0, window_bounds = array<i64: 1, 22, 440>}, {pipeline_mode = #tpu.pipeline_mode<synchronous>, transform_indices = @transform_1, window_bounds = array<i64: 3, 220, 300>}, {pipeline_mode = #tpu.pipeline_mode<synchronous>, transform_indices = @transform_2, window_bounds = array<i64: 1, 150>}, {transform_indices = @transform_3, window_bounds = array<i64: 1, 20, 150>}]} {
    %c0 = arith.constant 0 : index
    %c0_0 = arith.constant 0 : index
    %c0_1 = arith.constant 0 : index
    %0 = vector.load %arg1[%c0, %c0_0, %c0_1] : memref<1x22x440xf32, #tpu.memory_space<vmem>>, vector<1x22x220xf32>
    %1 = vector.shape_cast %0 : vector<1x22x220xf32> to vector<22x220xf32>
    %c0_2 = arith.constant 0 : index
    %c0_3 = arith.constant 0 : index
    %c220 = arith.constant 220 : index
    %2 = vector.load %arg1[%c0_2, %c0_3, %c220] : memref<1x22x440xf32, #tpu.memory_space<vmem>>, vector<1x22x220xf32>
    %3 = vector.shape_cast %2 : vector<1x22x220xf32> to vector<22x220xf32>
    %4 = arith.maximumf %1, %3 : vector<22x220xf32>
    %c0_4 = arith.constant 0 : index
    %c0_5 = arith.constant 0 : index
    %5 = vector.load %arg5[%c0_4, %c0_5] : memref<22x220xf32, #tpu.memory_space<vmem>>, vector<22x220xf32>
    tpu.vector_store %arg5[%c0_4, %c0_5], %4 {strides = array<i32>} : memref<22x220xf32, #tpu.memory_space<vmem>>, vector<22x220xf32>,
    %c0_6 = arith.constant 0 : index
    %c0_7 = arith.constant 0 : index
    %6 = vector.load %arg5[%c0_6, %c0_7] : memref<22x220xf32, #tpu.memory_space<vmem>>, vector<20x220xf32>
    %c0_8 = arith.constant 0 : index
    %c0_9 = arith.constant 0 : index
    %c0_10 = arith.constant 0 : index
    %7 = vector.load %arg2[%c0_8, %c0_9, %c0_10] : memref<3x220x300xf32, #tpu.memory_space<vmem>>, vector<1x220x300xf32>
    %8 = vector.shape_cast %7 : vector<1x220x300xf32> to vector<220x300xf32>
    %cst = arith.constant dense<0.000000e+00> : vector<20x300xf32>
    %9 = tpu.matmul %6, %8, %cst {dimension_numbers = #tpu.dot_dimension_numbers<[1], [0], [0], [1], [0, 0, 1, 1], [], []>} : vector<20x220xf32>, vector<220x300xf32>, vector<20x300xf32> -> vector<20x300xf32>
    %c1 = arith.constant 1 : index
    %c0_11 = arith.constant 0 : index
    %10 = vector.load %arg5[%c1, %c0_11] : memref<22x220xf32, #tpu.memory_space<vmem>>, vector<20x220xf32>
    %c1_12 = arith.constant 1 : index
    %c0_13 = arith.constant 0 : index
    %c0_14 = arith.constant 0 : index
    %11 = vector.load %arg2[%c1_12, %c0_13, %c0_14] : memref<3x220x300xf32, #tpu.memory_space<vmem>>, vector<1x220x300xf32>
    %12 = vector.shape_cast %11 : vector<1x220x300xf32> to vector<220x300xf32>
    %cst_15 = arith.constant dense<0.000000e+00> : vector<20x300xf32>
    %13 = tpu.matmul %10, %12, %cst_15 {dimension_numbers = #tpu.dot_dimension_numbers<[1], [0], [0], [1], [0, 0, 1, 1], [], []>} : vector<20x220xf32>, vector<220x300xf32>, vector<20x300xf32> -> vector<20x300xf32>
    %14 = arith.addf %9, %13 : vector<20x300xf32>
    %c2 = arith.constant 2 : index
    %c0_16 = arith.constant 0 : index
    %15 = vector.load %arg5[%c2, %c0_16] : memref<22x220xf32, #tpu.memory_space<vmem>>, vector<20x220xf32>
    %c2_17 = arith.constant 2 : index
    %c0_18 = arith.constant 0 : index
    %c0_19 = arith.constant 0 : index
    %16 = vector.load %arg2[%c2_17, %c0_18, %c0_19] : memref<3x220x300xf32, #tpu.memory_space<vmem>>, vector<1x220x300xf32>
    %17 = vector.shape_cast %16 : vector<1x220x300xf32> to vector<220x300xf32>
    %cst_20 = arith.constant dense<0.000000e+00> : vector<20x300xf32>
    %18 = tpu.matmul %15, %17, %cst_20 {dimension_numbers = #tpu.dot_dimension_numbers<[1], [0], [0], [1], [0, 0, 1, 1], [], []>} : vector<20x220xf32>, vector<220x300xf32>, vector<20x300xf32> -> vector<20x300xf32>
    %19 = arith.addf %14, %18 : vector<20x300xf32>
    %c0_21 = arith.constant 0 : index
    %c0_22 = arith.constant 0 : index
    %20 = vector.load %arg6[%c0_21, %c0_22] : memref<20x300xf32, #tpu.memory_space<vmem>>, vector<20x300xf32>
    tpu.vector_store %arg6[%c0_21, %c0_22], %19 {strides = array<i32>} : memref<20x300xf32, #tpu.memory_space<vmem>>, vector<20x300xf32>,
    %c0_23 = arith.constant 0 : index
    %c0_24 = arith.constant 0 : index
    %21 = vector.load %arg6[%c0_23, %c0_24] : memref<20x300xf32, #tpu.memory_space<vmem>>, vector<20x150xf32>
    %c0_25 = arith.constant 0 : index
    %c150 = arith.constant 150 : index
    %22 = vector.load %arg6[%c0_25, %c150] : memref<20x300xf32, #tpu.memory_space<vmem>>, vector<20x150xf32>
    %23 = arith.maximumf %21, %22 : vector<20x150xf32>
    %c0_26 = arith.constant 0 : index
    %c0_27 = arith.constant 0 : index
    %24 = vector.load %arg3[%c0_26, %c0_27] : memref<1x150xf32, #tpu.memory_space<vmem>>, vector<1x150xf32>
    %25 = vector.broadcast %24 : vector<1x150xf32> to vector<20x150xf32>
    %26 = arith.addf %23, %25 : vector<20x150xf32>
    %cst_28 = arith.constant 0.000000e+00 : f32
    %27 = vector.broadcast %cst_28 : f32 to vector<20x150xf32>
    %28 = arith.maximumf %26, %27 : vector<20x150xf32>
    %c0_29 = arith.constant 0 : index
    %c0_30 = arith.constant 0 : index
    %c0_31 = arith.constant 0 : index
    %29 = vector.load %arg4[%c0_29, %c0_30, %c0_31] : memref<1x20x150xf32, #tpu.memory_space<vmem>>, vector<1x20x150xf32>
    %30 = vector.shape_cast %29 : vector<1x20x150xf32> to vector<20x150xf32>
    %31 = vector.shape_cast %28 : vector<20x150xf32> to vector<1x20x150xf32>
    tpu.vector_store %arg4[%c0_29, %c0_30, %c0_31], %31 {strides = array<i32>} : memref<1x20x150xf32, #tpu.memory_space<vmem>>, vector<1x20x150xf32>,
    return
  }
  func.func @transform_0(%arg0: i32) -> (i32, i32, i32) {
    %c0_i32 = arith.constant 0 : i32
    %c0_i32_0 = arith.constant 0 : i32
    %c0_i32_1 = arith.constant 0 : i32
    return %arg0, %c0_i32, %c0_i32_0 : i32, i32, i32
  }
  func.func @transform_1(%arg0: i32) -> (i32, i32, i32) {
    %c0_i32 = arith.constant 0 : i32
    %c0_i32_0 = arith.constant 0 : i32
    %c0_i32_1 = arith.constant 0 : i32
    %c0_i32_2 = arith.constant 0 : i32
    return %c0_i32, %c0_i32_0, %c0_i32_1 : i32, i32, i32
  }
  func.func @transform_2(%arg0: i32) -> (i32, i32) {
    %c0_i32 = arith.constant 0 : i32
    %c0_i32_0 = arith.constant 0 : i32
    %c0_i32_1 = arith.constant 0 : i32
    return %c0_i32, %c0_i32_0 : i32, i32
  }
  func.func @transform_3(%arg0: i32) -> (i32, i32, i32) {
    %c0_i32 = arith.constant 0 : i32
    %c0_i32_0 = arith.constant 0 : i32
    %c0_i32_1 = arith.constant 0 : i32
    return %arg0, %c0_i32, %c0_i32_0 : i32, i32, i32
  }
}

module attributes {stable_mosaic.version = 11 : i64} {
  func.func @_conv_block_kernel(%arg0: i32, %arg1: memref<1x10x300xf32, #tpu.memory_space<vmem>>, %arg2: memref<3x150x160xf32, #tpu.memory_space<vmem>>, %arg3: memref<1x80xf32, #tpu.memory_space<vmem>>, %arg4: memref<1x8x80xf32, #tpu.memory_space<vmem>>, %arg5: memref<10x150xf32, #tpu.memory_space<vmem>>, %arg6: memref<8x160xf32, #tpu.memory_space<vmem>>) attributes {dimension_semantics = [#tpu.dimension_semantics<parallel>], iteration_bounds = array<i64: 2>, scalar_prefetch = 0 : i64, scratch_operands = 2 : i64, tpu.core_type = #tpu.core_type<tc>, window_params = [{transform_indices = @transform_0, window_bounds = array<i64: 1, 10, 300>}, {pipeline_mode = #tpu.pipeline_mode<synchronous>, transform_indices = @transform_1, window_bounds = array<i64: 3, 150, 160>}, {pipeline_mode = #tpu.pipeline_mode<synchronous>, transform_indices = @transform_2, window_bounds = array<i64: 1, 80>}, {transform_indices = @transform_3, window_bounds = array<i64: 1, 8, 80>}]} {
    %c0 = arith.constant 0 : index
    %c0_0 = arith.constant 0 : index
    %c0_1 = arith.constant 0 : index
    %0 = vector.load %arg1[%c0, %c0_0, %c0_1] : memref<1x10x300xf32, #tpu.memory_space<vmem>>, vector<1x10x150xf32>
    %1 = vector.shape_cast %0 : vector<1x10x150xf32> to vector<10x150xf32>
    %c0_2 = arith.constant 0 : index
    %c0_3 = arith.constant 0 : index
    %c150 = arith.constant 150 : index
    %2 = vector.load %arg1[%c0_2, %c0_3, %c150] : memref<1x10x300xf32, #tpu.memory_space<vmem>>, vector<1x10x150xf32>
    %3 = vector.shape_cast %2 : vector<1x10x150xf32> to vector<10x150xf32>
    %4 = arith.maximumf %1, %3 : vector<10x150xf32>
    %c0_4 = arith.constant 0 : index
    %c0_5 = arith.constant 0 : index
    %5 = vector.load %arg5[%c0_4, %c0_5] : memref<10x150xf32, #tpu.memory_space<vmem>>, vector<10x150xf32>
    tpu.vector_store %arg5[%c0_4, %c0_5], %4 {strides = array<i32>} : memref<10x150xf32, #tpu.memory_space<vmem>>, vector<10x150xf32>,
    %c0_6 = arith.constant 0 : index
    %c0_7 = arith.constant 0 : index
    %6 = vector.load %arg5[%c0_6, %c0_7] : memref<10x150xf32, #tpu.memory_space<vmem>>, vector<8x150xf32>
    %c0_8 = arith.constant 0 : index
    %c0_9 = arith.constant 0 : index
    %c0_10 = arith.constant 0 : index
    %7 = vector.load %arg2[%c0_8, %c0_9, %c0_10] : memref<3x150x160xf32, #tpu.memory_space<vmem>>, vector<1x150x160xf32>
    %8 = vector.shape_cast %7 : vector<1x150x160xf32> to vector<150x160xf32>
    %cst = arith.constant dense<0.000000e+00> : vector<8x160xf32>
    %9 = tpu.matmul %6, %8, %cst {dimension_numbers = #tpu.dot_dimension_numbers<[1], [0], [0], [1], [0, 0, 1, 1], [], []>} : vector<8x150xf32>, vector<150x160xf32>, vector<8x160xf32> -> vector<8x160xf32>
    %c1 = arith.constant 1 : index
    %c0_11 = arith.constant 0 : index
    %10 = vector.load %arg5[%c1, %c0_11] : memref<10x150xf32, #tpu.memory_space<vmem>>, vector<8x150xf32>
    %c1_12 = arith.constant 1 : index
    %c0_13 = arith.constant 0 : index
    %c0_14 = arith.constant 0 : index
    %11 = vector.load %arg2[%c1_12, %c0_13, %c0_14] : memref<3x150x160xf32, #tpu.memory_space<vmem>>, vector<1x150x160xf32>
    %12 = vector.shape_cast %11 : vector<1x150x160xf32> to vector<150x160xf32>
    %cst_15 = arith.constant dense<0.000000e+00> : vector<8x160xf32>
    %13 = tpu.matmul %10, %12, %cst_15 {dimension_numbers = #tpu.dot_dimension_numbers<[1], [0], [0], [1], [0, 0, 1, 1], [], []>} : vector<8x150xf32>, vector<150x160xf32>, vector<8x160xf32> -> vector<8x160xf32>
    %14 = arith.addf %9, %13 : vector<8x160xf32>
    %c2 = arith.constant 2 : index
    %c0_16 = arith.constant 0 : index
    %15 = vector.load %arg5[%c2, %c0_16] : memref<10x150xf32, #tpu.memory_space<vmem>>, vector<8x150xf32>
    %c2_17 = arith.constant 2 : index
    %c0_18 = arith.constant 0 : index
    %c0_19 = arith.constant 0 : index
    %16 = vector.load %arg2[%c2_17, %c0_18, %c0_19] : memref<3x150x160xf32, #tpu.memory_space<vmem>>, vector<1x150x160xf32>
    %17 = vector.shape_cast %16 : vector<1x150x160xf32> to vector<150x160xf32>
    %cst_20 = arith.constant dense<0.000000e+00> : vector<8x160xf32>
    %18 = tpu.matmul %15, %17, %cst_20 {dimension_numbers = #tpu.dot_dimension_numbers<[1], [0], [0], [1], [0, 0, 1, 1], [], []>} : vector<8x150xf32>, vector<150x160xf32>, vector<8x160xf32> -> vector<8x160xf32>
    %19 = arith.addf %14, %18 : vector<8x160xf32>
    %c0_21 = arith.constant 0 : index
    %c0_22 = arith.constant 0 : index
    %20 = vector.load %arg6[%c0_21, %c0_22] : memref<8x160xf32, #tpu.memory_space<vmem>>, vector<8x160xf32>
    tpu.vector_store %arg6[%c0_21, %c0_22], %19 {strides = array<i32>} : memref<8x160xf32, #tpu.memory_space<vmem>>, vector<8x160xf32>,
    %c0_23 = arith.constant 0 : index
    %c0_24 = arith.constant 0 : index
    %21 = vector.load %arg6[%c0_23, %c0_24] : memref<8x160xf32, #tpu.memory_space<vmem>>, vector<8x80xf32>
    %c0_25 = arith.constant 0 : index
    %c80 = arith.constant 80 : index
    %22 = vector.load %arg6[%c0_25, %c80] : memref<8x160xf32, #tpu.memory_space<vmem>>, vector<8x80xf32>
    %23 = arith.maximumf %21, %22 : vector<8x80xf32>
    %c0_26 = arith.constant 0 : index
    %c0_27 = arith.constant 0 : index
    %24 = vector.load %arg3[%c0_26, %c0_27] : memref<1x80xf32, #tpu.memory_space<vmem>>, vector<1x80xf32>
    %25 = vector.broadcast %24 : vector<1x80xf32> to vector<8x80xf32>
    %26 = arith.addf %23, %25 : vector<8x80xf32>
    %cst_28 = arith.constant 0.000000e+00 : f32
    %27 = vector.broadcast %cst_28 : f32 to vector<8x80xf32>
    %28 = arith.maximumf %26, %27 : vector<8x80xf32>
    %c0_29 = arith.constant 0 : index
    %c0_30 = arith.constant 0 : index
    %c0_31 = arith.constant 0 : index
    %29 = vector.load %arg4[%c0_29, %c0_30, %c0_31] : memref<1x8x80xf32, #tpu.memory_space<vmem>>, vector<1x8x80xf32>
    %30 = vector.shape_cast %29 : vector<1x8x80xf32> to vector<8x80xf32>
    %31 = vector.shape_cast %28 : vector<8x80xf32> to vector<1x8x80xf32>
    tpu.vector_store %arg4[%c0_29, %c0_30, %c0_31], %31 {strides = array<i32>} : memref<1x8x80xf32, #tpu.memory_space<vmem>>, vector<1x8x80xf32>,
    return
  }
  func.func @transform_0(%arg0: i32) -> (i32, i32, i32) {
    %c0_i32 = arith.constant 0 : i32
    %c0_i32_0 = arith.constant 0 : i32
    %c0_i32_1 = arith.constant 0 : i32
    return %arg0, %c0_i32, %c0_i32_0 : i32, i32, i32
  }
  func.func @transform_1(%arg0: i32) -> (i32, i32, i32) {
    %c0_i32 = arith.constant 0 : i32
    %c0_i32_0 = arith.constant 0 : i32
    %c0_i32_1 = arith.constant 0 : i32
    %c0_i32_2 = arith.constant 0 : i32
    return %c0_i32, %c0_i32_0, %c0_i32_1 : i32, i32, i32
  }
  func.func @transform_2(%arg0: i32) -> (i32, i32) {
    %c0_i32 = arith.constant 0 : i32
    %c0_i32_0 = arith.constant 0 : i32
    %c0_i32_1 = arith.constant 0 : i32
    return %c0_i32, %c0_i32_0 : i32, i32
  }
  func.func @transform_3(%arg0: i32) -> (i32, i32, i32) {
    %c0_i32 = arith.constant 0 : i32
    %c0_i32_0 = arith.constant 0 : i32
    %c0_i32_1 = arith.constant 0 : i32
    return %arg0, %c0_i32, %c0_i32_0 : i32, i32, i32
  }
}

module attributes {stable_mosaic.version = 11 : i64} {
  func.func @_fc_head_kernel(%arg0: i32, %arg1: memref<2x640xf32, #tpu.memory_space<vmem>>, %arg2: memref<320x256xf32, #tpu.memory_space<vmem>>, %arg3: memref<1x256xf32, #tpu.memory_space<vmem>>, %arg4: memref<256x128xf32, #tpu.memory_space<vmem>>, %arg5: memref<1x128xf32, #tpu.memory_space<vmem>>, %arg6: memref<128x27xf32, #tpu.memory_space<vmem>>, %arg7: memref<1x27xf32, #tpu.memory_space<vmem>>, %arg8: memref<2x27xf32, #tpu.memory_space<vmem>>) attributes {dimension_semantics = [#tpu.dimension_semantics<parallel>], iteration_bounds = array<i64: 1>, scalar_prefetch = 0 : i64, scratch_operands = 0 : i64, tpu.core_type = #tpu.core_type<tc>, window_params = [{transform_indices = @transform_0, window_bounds = array<i64: 2, 640>}, {pipeline_mode = #tpu.pipeline_mode<synchronous>, transform_indices = @transform_1, window_bounds = array<i64: 320, 256>}, {pipeline_mode = #tpu.pipeline_mode<synchronous>, transform_indices = @transform_2, window_bounds = array<i64: 1, 256>}, {pipeline_mode = #tpu.pipeline_mode<synchronous>, transform_indices = @transform_3, window_bounds = array<i64: 256, 128>}, {pipeline_mode = #tpu.pipeline_mode<synchronous>, transform_indices = @transform_4, window_bounds = array<i64: 1, 128>}, {pipeline_mode = #tpu.pipeline_mode<synchronous>, transform_indices = @transform_5, window_bounds = array<i64: 128, 27>}, {pipeline_mode = #tpu.pipeline_mode<synchronous>, transform_indices = @transform_6, window_bounds = array<i64: 1, 27>}, {transform_indices = @transform_7, window_bounds = array<i64: 2, 27>}]} {
    %c0 = arith.constant 0 : index
    %c0_0 = arith.constant 0 : index
    %0 = vector.load %arg1[%c0, %c0_0] : memref<2x640xf32, #tpu.memory_space<vmem>>, vector<2x80xf32>
    %c0_1 = arith.constant 0 : index
    %c80 = arith.constant 80 : index
    %1 = vector.load %arg1[%c0_1, %c80] : memref<2x640xf32, #tpu.memory_space<vmem>>, vector<2x80xf32>
    %2 = arith.maximumf %0, %1 : vector<2x80xf32>
    %c0_2 = arith.constant 0 : index
    %c0_3 = arith.constant 0 : index
    %3 = vector.load %arg2[%c0_2, %c0_3] : memref<320x256xf32, #tpu.memory_space<vmem>>, vector<80x256xf32>
    %cst = arith.constant dense<0.000000e+00> : vector<2x256xf32>
    %4 = tpu.matmul %2, %3, %cst {dimension_numbers = #tpu.dot_dimension_numbers<[1], [0], [0], [1], [0, 0, 1, 1], [], []>} : vector<2x80xf32>, vector<80x256xf32>, vector<2x256xf32> -> vector<2x256xf32>
    %c0_4 = arith.constant 0 : index
    %c160 = arith.constant 160 : index
    %5 = vector.load %arg1[%c0_4, %c160] : memref<2x640xf32, #tpu.memory_space<vmem>>, vector<2x80xf32>
    %c0_5 = arith.constant 0 : index
    %c240 = arith.constant 240 : index
    %6 = vector.load %arg1[%c0_5, %c240] : memref<2x640xf32, #tpu.memory_space<vmem>>, vector<2x80xf32>
    %7 = arith.maximumf %5, %6 : vector<2x80xf32>
    %c80_6 = arith.constant 80 : index
    %c0_7 = arith.constant 0 : index
    %8 = vector.load %arg2[%c80_6, %c0_7] : memref<320x256xf32, #tpu.memory_space<vmem>>, vector<80x256xf32>
    %cst_8 = arith.constant dense<0.000000e+00> : vector<2x256xf32>
    %9 = tpu.matmul %7, %8, %cst_8 {dimension_numbers = #tpu.dot_dimension_numbers<[1], [0], [0], [1], [0, 0, 1, 1], [], []>} : vector<2x80xf32>, vector<80x256xf32>, vector<2x256xf32> -> vector<2x256xf32>
    %10 = arith.addf %4, %9 : vector<2x256xf32>
    %c0_9 = arith.constant 0 : index
    %c320 = arith.constant 320 : index
    %11 = vector.load %arg1[%c0_9, %c320] : memref<2x640xf32, #tpu.memory_space<vmem>>, vector<2x80xf32>
    %c0_10 = arith.constant 0 : index
    %c400 = arith.constant 400 : index
    %12 = vector.load %arg1[%c0_10, %c400] : memref<2x640xf32, #tpu.memory_space<vmem>>, vector<2x80xf32>
    %13 = arith.maximumf %11, %12 : vector<2x80xf32>
    %c160_11 = arith.constant 160 : index
    %c0_12 = arith.constant 0 : index
    %14 = vector.load %arg2[%c160_11, %c0_12] : memref<320x256xf32, #tpu.memory_space<vmem>>, vector<80x256xf32>
    %cst_13 = arith.constant dense<0.000000e+00> : vector<2x256xf32>
    %15 = tpu.matmul %13, %14, %cst_13 {dimension_numbers = #tpu.dot_dimension_numbers<[1], [0], [0], [1], [0, 0, 1, 1], [], []>} : vector<2x80xf32>, vector<80x256xf32>, vector<2x256xf32> -> vector<2x256xf32>
    %16 = arith.addf %10, %15 : vector<2x256xf32>
    %c0_14 = arith.constant 0 : index
    %c480 = arith.constant 480 : index
    %17 = vector.load %arg1[%c0_14, %c480] : memref<2x640xf32, #tpu.memory_space<vmem>>, vector<2x80xf32>
    %c0_15 = arith.constant 0 : index
    %c560 = arith.constant 560 : index
    %18 = vector.load %arg1[%c0_15, %c560] : memref<2x640xf32, #tpu.memory_space<vmem>>, vector<2x80xf32>
    %19 = arith.maximumf %17, %18 : vector<2x80xf32>
    %c240_16 = arith.constant 240 : index
    %c0_17 = arith.constant 0 : index
    %20 = vector.load %arg2[%c240_16, %c0_17] : memref<320x256xf32, #tpu.memory_space<vmem>>, vector<80x256xf32>
    %cst_18 = arith.constant dense<0.000000e+00> : vector<2x256xf32>
    %21 = tpu.matmul %19, %20, %cst_18 {dimension_numbers = #tpu.dot_dimension_numbers<[1], [0], [0], [1], [0, 0, 1, 1], [], []>} : vector<2x80xf32>, vector<80x256xf32>, vector<2x256xf32> -> vector<2x256xf32>
    %22 = arith.addf %16, %21 : vector<2x256xf32>
    %c0_19 = arith.constant 0 : index
    %c0_20 = arith.constant 0 : index
    %23 = vector.load %arg3[%c0_19, %c0_20] : memref<1x256xf32, #tpu.memory_space<vmem>>, vector<1x256xf32>
    %24 = vector.broadcast %23 : vector<1x256xf32> to vector<2x256xf32>
    %25 = arith.addf %22, %24 : vector<2x256xf32>
    %cst_21 = arith.constant 0.000000e+00 : f32
    %26 = vector.broadcast %cst_21 : f32 to vector<2x256xf32>
    %27 = arith.maximumf %25, %26 : vector<2x256xf32>
    %c0_22 = arith.constant 0 : index
    %c0_23 = arith.constant 0 : index
    %28 = vector.load %arg4[%c0_22, %c0_23] : memref<256x128xf32, #tpu.memory_space<vmem>>, vector<256x128xf32>
    %cst_24 = arith.constant dense<0.000000e+00> : vector<2x128xf32>
    %29 = tpu.matmul %27, %28, %cst_24 {dimension_numbers = #tpu.dot_dimension_numbers<[1], [0], [0], [1], [0, 0, 1, 1], [], []>} : vector<2x256xf32>, vector<256x128xf32>, vector<2x128xf32> -> vector<2x128xf32>
    %c0_25 = arith.constant 0 : index
    %c0_26 = arith.constant 0 : index
    %30 = vector.load %arg5[%c0_25, %c0_26] : memref<1x128xf32, #tpu.memory_space<vmem>>, vector<1x128xf32>
    %31 = vector.broadcast %30 : vector<1x128xf32> to vector<2x128xf32>
    %32 = arith.addf %29, %31 : vector<2x128xf32>
    %cst_27 = arith.constant 0.000000e+00 : f32
    %33 = vector.broadcast %cst_27 : f32 to vector<2x128xf32>
    %34 = arith.maximumf %32, %33 : vector<2x128xf32>
    %c0_28 = arith.constant 0 : index
    %c0_29 = arith.constant 0 : index
    %35 = vector.load %arg6[%c0_28, %c0_29] : memref<128x27xf32, #tpu.memory_space<vmem>>, vector<128x27xf32>
    %cst_30 = arith.constant dense<0.000000e+00> : vector<2x27xf32>
    %36 = tpu.matmul %34, %35, %cst_30 {dimension_numbers = #tpu.dot_dimension_numbers<[1], [0], [0], [1], [0, 0, 1, 1], [], []>} : vector<2x128xf32>, vector<128x27xf32>, vector<2x27xf32> -> vector<2x27xf32>
    %c0_31 = arith.constant 0 : index
    %c0_32 = arith.constant 0 : index
    %37 = vector.load %arg7[%c0_31, %c0_32] : memref<1x27xf32, #tpu.memory_space<vmem>>, vector<1x27xf32>
    %38 = vector.broadcast %37 : vector<1x27xf32> to vector<2x27xf32>
    %39 = arith.addf %36, %38 : vector<2x27xf32>
    %c0_33 = arith.constant 0 : index
    %c0_34 = arith.constant 0 : index
    %40 = vector.load %arg8[%c0_33, %c0_34] : memref<2x27xf32, #tpu.memory_space<vmem>>, vector<2x27xf32>
    tpu.vector_store %arg8[%c0_33, %c0_34], %39 {strides = array<i32>} : memref<2x27xf32, #tpu.memory_space<vmem>>, vector<2x27xf32>,
    return
  }
  func.func @transform_0(%arg0: i32) -> (i32, i32) {
    %c0_i32 = arith.constant 0 : i32
    %c0_i32_0 = arith.constant 0 : i32
    return %arg0, %c0_i32 : i32, i32
  }
  func.func @transform_1(%arg0: i32) -> (i32, i32) {
    %c0_i32 = arith.constant 0 : i32
    %c0_i32_0 = arith.constant 0 : i32
    %c0_i32_1 = arith.constant 0 : i32
    return %c0_i32, %c0_i32_0 : i32, i32
  }
  func.func @transform_2(%arg0: i32) -> (i32, i32) {
    %c0_i32 = arith.constant 0 : i32
    %c0_i32_0 = arith.constant 0 : i32
    %c0_i32_1 = arith.constant 0 : i32
    return %c0_i32, %c0_i32_0 : i32, i32
  }
  func.func @transform_3(%arg0: i32) -> (i32, i32) {
    %c0_i32 = arith.constant 0 : i32
    %c0_i32_0 = arith.constant 0 : i32
    %c0_i32_1 = arith.constant 0 : i32
    return %c0_i32, %c0_i32_0 : i32, i32
  }
  func.func @transform_4(%arg0: i32) -> (i32, i32) {
    %c0_i32 = arith.constant 0 : i32
    %c0_i32_0 = arith.constant 0 : i32
    %c0_i32_1 = arith.constant 0 : i32
    return %c0_i32, %c0_i32_0 : i32, i32
  }
  func.func @transform_5(%arg0: i32) -> (i32, i32) {
    %c0_i32 = arith.constant 0 : i32
    %c0_i32_0 = arith.constant 0 : i32
    %c0_i32_1 = arith.constant 0 : i32
    return %c0_i32, %c0_i32_0 : i32, i32
  }
  func.func @transform_6(%arg0: i32) -> (i32, i32) {
    %c0_i32 = arith.constant 0 : i32
    %c0_i32_0 = arith.constant 0 : i32
    %c0_i32_1 = arith.constant 0 : i32
    return %c0_i32, %c0_i32_0 : i32, i32
  }
  func.func @transform_7(%arg0: i32) -> (i32, i32) {
    %c0_i32 = arith.constant 0 : i32
    %c0_i32_0 = arith.constant 0 : i32
    return %arg0, %c0_i32 : i32, i32
  }
}

</mosaic_0001>

<llo_original>
// kernel: net_forward.6
$region0: #{net_forward.6}
  #allocation0 [shape = 'u32[]', space=smem, size = 0x4, offset = 0x4, fixed_abs, tag = 'smem constant byte address 0x4 - core index']
  #allocation1 [shape = 'u32[72,128]{1,0:T(1,128)}', space=vmem, size = 0x9000, scoped, tag = 'internal scratch']
  #allocation2 [shape = 'f32[10,150]{1,0:T(8,128)}', space=vmem, size = 0x4000, scoped, tag = 'scratch operand']
  #allocation3 [shape = 'f32[8,160]{1,0:T(8,128)}', space=vmem, size = 0x2000, scoped, tag = 'scratch operand']
  %s0 = inlined_call_operand.vmem [shape: f32[2,10,300], index: 0, kind: input, shape index: {}]
  %s1 = inlined_call_operand.vmem [shape: f32[3,150,160], index: 1, kind: input, shape index: {}]
  %s2 = inlined_call_operand.vmem [shape: f32[1,80], index: 2, kind: input, shape index: {}]
  %s3 = inlined_call_operand.vmem [shape: f32[2,8,80], index: 3, kind: output, shape index: {}]
  %s4 = sld [smem:[#allocation0]]
  $region45: #{net_forward.6} parent=0
    _
  %s6 = ssub.s32 1, %s4
  %s7 = scalar_select 0, %s6, %s4
  loop: start=0, step=1, limit=4
  $region2: #{net_forward.6} parent=0 // loop_pre_header
    _
  $region3: #{net_forward.6} parent=0 // loop_header
    %s9 = sphi 0, %s13
    %p10 = scmp.ge.s32.totalorder %s9, 4
    %s19 = sphi 0, %s21
    %s22 = sphi 0, %s19
    %s23 = sphi 0, %s22
    %s39 = sphi 0, %s23
    %s43 = sphi 0, %s43
    %s45 = sphi 0, %s43
    %s46 = sphi 0, %s45
    %s60 = sphi 0, %s46
    %s64 = sphi 0, %s64
    %s66 = sphi 0, %s64
    %s67 = sphi 0, %s66
    %s81 = sphi 0, %s67
    %s87 = sphi 0, %s89
    %s90 = sphi 0, %s87
    %s91 = sphi 0, %s90
    %s107 = sphi 0, %s91
  $region4: #{net_forward.6} parent=0 // loop_header_branch
    %12 = sbr.rel (%p10) target = $region8
  $region5: #{net_forward.6} parent=0 // loop_body
    %s14 = ssub.s32 %s9, 1
    %s15 = ssub.s32 %s9, 2
    %s16 = sadd.s32 %s9, 1
    %s17 = ssub.s32 %s9, %s16
    %p18 = scmp.eq.s32.totalorder %s17, 0
    %s20 = sadd.s32 %s19, 1
    %s21 = scalar_select %p18, %s19, %s20
    %p24 = pneg %p18
    %p25 = scmp.eq.s32.totalorder %s9, 1
    %p26 = por %p24, %p25
    %p27 = scmp.ne.s32.totalorder %s19, %s22
    %p28 = scmp.eq.s32.totalorder %s9, 0
    %p29 = por %p27, %p28
    %p30 = scmp.ne.s32.totalorder %s19, %s22
    %p31 = scmp.eq.s32.totalorder %s14, 1
    %p32 = por %p30, %p31
    %p33 = scmp.ne.s32.totalorder %s22, %s23
    %p34 = scmp.eq.s32.totalorder %s14, 0
    %p35 = por %p33, %p34
    %p36 = scmp.ne.s32.totalorder %s22, %s23
    %p37 = scmp.eq.s32.totalorder %s15, 1
    %p38 = por %p36, %p37
    %p40 = scmp.ne.s32.totalorder %s23, %s39
    %p41 = scmp.eq.s32.totalorder %s15, 0
    %p42 = por %p40, %p41
    %s44 = sadd.s32 %s43, 1
    %p47 = scmp.eq.s32.totalorder %s9, 1
    %p48 = scmp.ne.s32.totalorder %s43, %s45
    %p49 = scmp.eq.s32.totalorder %s9, 0
    %p50 = por %p48, %p49
    %p51 = scmp.ne.s32.totalorder %s43, %s45
    %p52 = scmp.eq.s32.totalorder %s14, 1
    %p53 = por %p51, %p52
    %p54 = scmp.ne.s32.totalorder %s45, %s46
    %p55 = scmp.eq.s32.totalorder %s14, 0
    %p56 = por %p54, %p55
    %p57 = scmp.ne.s32.totalorder %s45, %s46
    %p58 = scmp.eq.s32.totalorder %s15, 1
    %p59 = por %p57, %p58
    %p61 = scmp.ne.s32.totalorder %s46, %s60
    %p62 = scmp.eq.s32.totalorder %s15, 0
    %p63 = por %p61, %p62
    %s65 = sadd.s32 %s64, 1
    %p68 = scmp.eq.s32.totalorder %s9, 1
    %p69 = scmp.ne.s32.totalorder %s64, %s66
    %p70 = scmp.eq.s32.totalorder %s9, 0
    %p71 = por %p69, %p70
    %p72 = scmp.ne.s32.totalorder %s64, %s66
    %p73 = scmp.eq.s32.totalorder %s14, 1
    %p74 = por %p72, %p73
    %p75 = scmp.ne.s32.totalorder %s66, %s67
    %p76 = scmp.eq.s32.totalorder %s14, 0
    %p77 = por %p75, %p76
    %p78 = scmp.ne.s32.totalorder %s66, %s67
    %p79 = scmp.eq.s32.totalorder %s15, 1
    %p80 = por %p78, %p79
    %p82 = scmp.ne.s32.totalorder %s67, %s81
    %p83 = scmp.eq.s32.totalorder %s15, 0
    %p84 = por %p82, %p83
    %s85 = ssub.s32 %s9, %s16
    %p86 = scmp.eq.s32.totalorder %s85, 0
    %s88 = sadd.s32 %s87, 1
    %s89 = scalar_select %p86, %s87, %s88
    %p92 = pneg %p86
    %p93 = scmp.eq.s32.totalorder %s9, 1
    %p94 = por %p92, %p93
    %p95 = scmp.ne.s32.totalorder %s87, %s90
    %p96 = scmp.eq.s32.totalorder %s9, 0
    %p97 = por %p95, %p96
    %p98 = scmp.ne.s32.totalorder %s87, %s90
    %p99 = scmp.eq.s32.totalorder %s14, 1
    %p100 = por %p98, %p99
    %p101 = scmp.ne.s32.totalorder %s90, %s91
    %p102 = scmp.eq.s32.totalorder %s14, 0
    %p103 = por %p101, %p102
    %p104 = scmp.ne.s32.totalorder %s90, %s91
    %p105 = scmp.eq.s32.totalorder %s15, 1
    %p106 = por %p104, %p105
    %p108 = scmp.ne.s32.totalorder %s91, %s107
    %p109 = scmp.eq.s32.totalorder %s15, 0
    %p110 = por %p108, %p109
    %p111 = scmp.le.s32.totalorder 1, %s9
    %p112 = scmp.lt.s32.totalorder %s9, 3
    %p113 = pnand %p111, %p112
    %p114 = pneg %p113
    // Predicated region
    $region9: #{net_forward.6} parent=5 // pred_check
      _
    $region10: #{net_forward.6} parent=5 // pred_check_branch
      %116 = sbr.rel (%p113) target = $region12
    $region11: #{net_forward.6} parent=5 // pred_region
      %s117 = ssub.s32 %s9, 1
      // Predicated region
      $region13: #{net_forward.6} parent=11 // pred_check
        %p118 = pneg %p56
      $region14: #{net_forward.6} parent=11 // pred_check_branch
        %120 = sbr.rel (%p118) target = $region16
      $region15: #{net_forward.6} parent=11 // pred_region
        _
      $region16: #{net_forward.6} parent=11 // pred_fallthru
        _
      // Predicated region
      $region17: #{net_forward.6} parent=11 // pred_check
        %p121 = pneg %p77
      $region18: #{net_forward.6} parent=11 // pred_check_branch
        %123 = sbr.rel (%p121) target = $region20
      $region19: #{net_forward.6} parent=11 // pred_region
        _
      $region20: #{net_forward.6} parent=11 // pred_fallthru
        _
    $region12: #{net_forward.6} parent=5 // pred_fallthru
      _
    %p124 = scmp.lt.s32.totalorder %s9, 2
    // Predicated region
    $region21: #{net_forward.6} parent=5 // pred_check
      %p125 = pneg %p124
    $region22: #{net_forward.6} parent=5 // pred_check_branch
      %127 = sbr.rel (%p125) target = $region24
    $region23: #{net_forward.6} parent=5 // pred_region
      // Predicated region
      $region25: #{net_forward.6} parent=23 // pred_check
        %p128 = pneg %p29
      $region26: #{net_forward.6} parent=23 // pred_check_branch
        %130 = sbr.rel (%p128) target = $region28
      $region27: #{net_forward.6} parent=23 // pred_region
        %p131 = scmp.lt.s32.totalorder %s9, 1
        %s132 = scalar_select %p131, %s9, 1
        %s133 = smul.addr %s132, 6
        %s134 = smul.addr %s133, 8
        %s135 = scalar_lea.vmem %s0, %s134
      $region28: #{net_forward.6} parent=23 // pred_fallthru
        _
    $region24: #{net_forward.6} parent=5 // pred_fallthru
      _
    %p136 = scmp.le.s32.totalorder 1, %s9
    %p137 = scmp.lt.s32.totalorder %s9, 3
    %p138 = pnand %p136, %p137
    %p139 = pneg %p138
    // Predicated region
    $region29: #{net_forward.6} parent=5 // pred_check
      _
    $region30: #{net_forward.6} parent=5 // pred_check_branch
      %141 = sbr.rel (%p138) target = $region32
    $region31: #{net_forward.6} parent=5 // pred_region
      %s142 = ssub.s32 %s9, 1
      %p143 = scmp.lt.s32.totalorder %s14, 1
      %s144 = scalar_select %p143, %s14, 1
      %s145 = smul.addr %s144, 6
      %s146 = smul.addr %s145, 8
      %s147 = scalar_lea.vmem %s0, %s146
      %p148 = pneg %p35
      %p149 = pneg %p32
      %p150 = pneg %p56
      %p151 = pneg %p53
      %p152 = pneg %p77
      %p153 = pneg %p74
      %p154 = pneg %p103
      %p155 = pneg %p100
      %p156 = scmp.lt.s32.totalorder %s14, 1
      %s157 = scalar_select %p156, %s14, 1
      %s158 = smul.addr %s157, 8
      %s159 = scalar_lea.vmem %s3, %s158
      %p160 = scmp.lt.s32.totalorder %s14, 1
      %s161 = scalar_select %p160, %s14, 1
      %s162 = smul.addr %s161, 6
      %s163 = smul.addr %s162, 8
      %s164 = scalar_lea.vmem %s0, %s163
      %p165 = scmp.lt.s32.totalorder %s14, 1
      %s166 = scalar_select %p165, %s14, 1
      %s167 = smul.addr %s166, 8
      %s168 = scalar_lea.vmem %s3, %s167
      %v169 = vld [vmem:[%s164] sm:$0xff]
      %v170 = vld [vmem:[%s164 + $0x8] sm:$0xff]
      %v171 = vld [vmem:[%s164 + $0x18] sm:$0x3]
      %v172 = vld [vmem:[%s164 + $0x20] sm:$0x3]
      %v173 = vld [vmem:[%s164 + $0x10] sm:$0xff]
      %v174 = vld [vmem:[%s164 + $0x28] sm:$0x3]
      %179 = vrot.lane.b32.xlu0 %v170, 106
      %v180 = vpop.permute.xlu0 %179
      %181 = vrot.lane.b32.xlu0 %v173, 106
      %v182 = vpop.permute.xlu0 %181
      %183 = vrot.lane.b32.xlu0 %v172, 106
      %v184 = vpop.permute.xlu0 %183
      %185 = vrot.lane.b32.xlu0 %v174, 106
      %v186 = vpop.permute.xlu0 %185
      %vm187 = vcmask 867328
      %v188 = vsel %vm187, %v180, %v182
      %v189 = vsel %vm187, %v184, %v186
      %v194 = vmax.f32 %v169, %v188
      %v195 = vmax.f32 %v170, %v182
      %v196 = vmax.f32 %v171, %v189
      %v197 = vmax.f32 %v172, %v186
      %198 = vst [vmem:[#allocation2] sm:$0xff] %v194
      %vm199 = vcmask 179200
      %200 = vst.msk [vmem:[#allocation2 + $0x8] sm:$0xff] %vm199, %v195
      %201 = vst [vmem:[#allocation2 + $0x10] sm:$0x3] %v196
      %vm202 = vcmask 173056
      %203 = vst.msk [vmem:[#allocation2 + $0x18] sm:$0x3] %vm202, %v197
      %v204 = vld [vmem:[#allocation2] sm:$0xff]
      %v205 = vld [vmem:[#allocation2 + $0x8] sm:$0xff]
      %v206 = vld [vmem:[%s1] sm:$0xff]
      %v207 = vld [vmem:[%s1 + $0x8] sm:$0xff]
      %v208 = vld [vmem:[%s1 + $0x10] sm:$0xff]
      %v209 = vld [vmem:[%s1 + $0x18] sm:$0xff]
      %v210 = vld [vmem:[%s1 + $0x20] sm:$0xff]
      %v211 = vld [vmem:[%s1 + $0x28] sm:$0xff]
      %v212 = vld [vmem:[%s1 + $0x30] sm:$0xff]
      %v213 = vld [vmem:[%s1 + $0x38] sm:$0xff]
      %v214 = vld [vmem:[%s1 + $0x40] sm:$0xff]
      %v215 = vld [vmem:[%s1 + $0x48] sm:$0xff]
      %v216 = vld [vmem:[%s1 + $0x50] sm:$0xff]
      %v217 = vld [vmem:[%s1 + $0x58] sm:$0xff]
      %v218 = vld [vmem:[%s1 + $0x60] sm:$0xff]
      %v219 = vld [vmem:[%s1 + $0x68] sm:$0xff]
      %v220 = vld [vmem:[%s1 + $0x70] sm:$0xff]
      %v221 = vld [vmem:[%s1 + $0x78] sm:$0xff]
      %v222 = vld [vmem:[%s1 + $0x80] sm:$0xff]
      %v223 = vld [vmem:[%s1 + $0x88] sm:$0xff]
      %v224 = vld [vmem:[%s1 + $0x90] sm:$0xff]
      %v225 = vld [vmem:[%s1 + $0x98] sm:$0xff]
      %v226 = vld [vmem:[%s1 + $0xa0] sm:$0xff]
      %v227 = vld [vmem:[%s1 + $0xa8] sm:$0xff]
      %v228 = vld [vmem:[%s1 + $0xb0] sm:$0xff]
      %v229 = vld [vmem:[%s1 + $0xb8] sm:$0xff]
      %v230 = vld [vmem:[%s1 + $0xc0] sm:$0xff]
      %v231 = vld [vmem:[%s1 + $0xc8] sm:$0xff]
      %v232 = vld [vmem:[%s1 + $0xd0] sm:$0xff]
      %v233 = vld [vmem:[%s1 + $0xd8] sm:$0xff]
      %v234 = vld [vmem:[%s1 + $0xe0] sm:$0xff]
      %v235 = vld [vmem:[%s1 + $0xe8] sm:$0xff]
      %v236 = vld [vmem:[%s1 + $0xf0] sm:$0xff]
      %v237 = vld [vmem:[%s1 + $0xf8] sm:$0xff]
      %v238 = vld [vmem:[%s1 + $0x100] sm:$0xff]
      %v239 = vld [vmem:[%s1 + $0x108] sm:$0xff]
      %v240 = vld [vmem:[%s1 + $0x110] sm:$0xff]
      %v241 = vld [vmem:[%s1 + $0x118] sm:$0xff]
      %v242 = vld [vmem:[%s1 + $0x120] sm:$0x3f]
      %v243 = vld [vmem:[%s1 + $0x128] sm:$0x3f]
      %v244 = vld [vmem:[#allocation2] sm:$0xfe]
      %v245 = vld [vmem:[#allocation2 + $0x8] sm:$0xfe]
      %v246 = vld [vmem:[#allocation2 + $0x10] sm:$0x1]
      %v247 = vld [vmem:[#allocation2 + $0x18] sm:$0x1]
      %s248 = scalar_lea.vmem %s1, 304
      %v249 = vld [vmem:[%s248] sm:$0xff]
      %v250 = vld [vmem:[%s248 + $0x8] sm:$0xff]
      %v251 = vld [vmem:[%s248 + $0x10] sm:$0xff]
      %v252 = vld [vmem:[%s248 + $0x18] sm:$0xff]
      %v253 = vld [vmem:[%s248 + $0x20] sm:$0xff]
      %v254 = vld [vmem:[%s248 + $0x28] sm:$0xff]
      %v255 = vld [vmem:[%s248 + $0x30] sm:$0xff]
      %v256 = vld [vmem:[%s248 + $0x38] sm:$0xff]
      %v257 = vld [vmem:[%s248 + $0x40] sm:$0xff]
      %v258 = vld [vmem:[%s248 + $0x48] sm:$0xff]
      %v259 = vld [vmem:[%s248 + $0x50] sm:$0xff]
      %v260 = vld [vmem:[%s248 + $0x58] sm:$0xff]
      %v261 = vld [vmem:[%s248 + $0x60] sm:$0xff]
      %v262 = vld [vmem:[%s248 + $0x68] sm:$0xff]
      %v263 = vld [vmem:[%s248 + $0x70] sm:$0xff]
      %v264 = vld [vmem:[%s248 + $0x78] sm:$0xff]
      %v265 = vld [vmem:[%s248 + $0x80] sm:$0xff]
      %v266 = vld [vmem:[%s248 + $0x88] sm:$0xff]
      %v267 = vld [vmem:[%s248 + $0x90] sm:$0xff]
      %v268 = vld [vmem:[%s248 + $0x98] sm:$0xff]
      %v269 = vld [vmem:[%s248 + $0xa0] sm:$0xff]
      %v270 = vld [vmem:[%s248 + $0xa8] sm:$0xff]
      %v271 = vld [vmem:[%s248 + $0xb0] sm:$0xff]
      %v272 = vld [vmem:[%s248 + $0xb8] sm:$0xff]
      %v273 = vld [vmem:[%s248 + $0xc0] sm:$0xff]
      %v274 = vld [vmem:[%s248 + $0xc8] sm:$0xff]
      %v275 = vld [vmem:[%s248 + $0xd0] sm:$0xff]
      %v276 = vld [vmem:[%s248 + $0xd8] sm:$0xff]
      %v277 = vld [vmem:[%s248 + $0xe0] sm:$0xff]
      %v278 = vld [vmem:[%s248 + $0xe8] sm:$0xff]
      %v279 = vld [vmem:[%s248 + $0xf0] sm:$0xff]
      %v280 = vld [vmem:[%s248 + $0xf8] sm:$0xff]
      %v281 = vld [vmem:[%s248 + $0x100] sm:$0xff]
      %v282 = vld [vmem:[%s248 + $0x108] sm:$0xff]
      %v283 = vld [vmem:[%s248 + $0x110] sm:$0xff]
      %v284 = vld [vmem:[%s248 + $0x118] sm:$0xff]
      %v285 = vld [vmem:[%s248 + $0x120] sm:$0x3f]
      %v286 = vld [vmem:[%s248 + $0x128] sm:$0x3f]
      %vm291 = vcmask 1046528
      %v292 = vrot.slane %v244, 1
      %v293 = vrot.slane %v246, 1
      %v294 = vsel %vm291, %v292, %v293
      %v295 = vrot.slane %v245, 1
      %v296 = vrot.slane %v247, 1
      %v297 = vsel %vm291, %v295, %v296
      %v299 = vsel %vm199, %v297, 0
      %vm301 = vcmask 1045504
      %v303 = vsel %vm301, %v285, 0
      %v306 = vsel %vm301, %v286, 0
      %308 = vmatpush.msra.mxu0 %v279
      %309 = vmatpush.msra.mxu0 %v277
      %310 = vmatpush.msra.mxu0 %v275
      %311 = vmatpush.msra.mxu0 %v273
      %312 = vmatpush.msra.mxu0 %v271
      %313 = vmatpush.msra.mxu0 %v269
      %314 = vmatpush.msra.mxu0 %v267
      %315 = vmatpush.msra.mxu0 %v265
      %316 = vmatpush.msra.mxu0 %v263
      %317 = vmatpush.msra.mxu0 %v261
      %318 = vmatpush.msra.mxu0 %v259
      %319 = vmatpush.msra.mxu0 %v257
      %320 = vmatpush.msra.mxu0 %v255
      %321 = vmatpush.msra.mxu0 %v253
      %322 = vmatpush.msra.mxu0 %v251
      %323 = vmatpush.msra.mxu0 %v249
      %324 = vmatmul.f32.gmra.mxu0 %v294
      %v325 = vpop.f32.mrf.mxu0
      %v326 = vadd.f32 0.0, %v325
      %327 = vdwg.mxu0
      %328 = vmatpush.msra.mxu0 0.0
      %329 = vmatpush.msra.mxu0 0.0
      %330 = vmatpush.msra.mxu0 0.0
      %331 = vmatpush.msra.mxu0 0.0
      %332 = vmatpush.msra.mxu0 0.0
      %333 = vmatpush.msra.mxu0 0.0
      %334 = vmatpush.msra.mxu0 0.0
      %335 = vmatpush.msra.mxu0 0.0
      %336 = vmatpush.msra.mxu0 0.0
      %337 = vmatpush.msra.mxu0 0.0
      %338 = vmatpush.msra.mxu0 0.0
      %339 = vmatpush.msra.mxu0 0.0
      %340 = vmatpush.msra.mxu0 0.0
      %341 = vmatpush.msra.mxu0 %v303
      %342 = vmatpush.msra.mxu0 %v283
      %343 = vmatpush.msra.mxu0 %v281
      %344 = vmatmul.f32.gmra.mxu0 %v299
      %v345 = vpop.f32.mrf.mxu0
      %v346 = vadd.f32 %v326, %v345
      %347 = vdwg.mxu0
      %348 = vmatpush.msra.mxu0 %v280
      %349 = vmatpush.msra.mxu0 %v278
      %350 = vmatpush.msra.mxu0 %v276
      %351 = vmatpush.msra.mxu0 %v274
      %352 = vmatpush.msra.mxu0 %v272
      %353 = vmatpush.msra.mxu0 %v270
      %354 = vmatpush.msra.mxu0 %v268
      %355 = vmatpush.msra.mxu0 %v266
      %356 = vmatpush.msra.mxu0 %v264
      %357 = vmatpush.msra.mxu0 %v262
      %358 = vmatpush.msra.mxu0 %v260
      %359 = vmatpush.msra.mxu0 %v258
      %360 = vmatpush.msra.mxu0 %v256
      %361 = vmatpush.msra.mxu0 %v254
      %362 = vmatpush.msra.mxu0 %v252
      %363 = vmatpush.msra.mxu0 %v250
      %364 = vmatmul.f32.gmra.mxu0 %v294
      %v365 = vpop.f32.mrf.mxu0
      %v366 = vadd.f32 0.0, %v365
      %367 = vdwg.mxu0
      %368 = vmatpush.msra.mxu0 0.0
      %369 = vmatpush.msra.mxu0 0.0
      %370 = vmatpush.msra.mxu0 0.0
      %371 = vmatpush.msra.mxu0 0.0
      %372 = vmatpush.msra.mxu0 0.0
      %373 = vmatpush.msra.mxu0 0.0
      %374 = vmatpush.msra.mxu0 0.0
      %375 = vmatpush.msra.mxu0 0.0
      %376 = vmatpush.msra.mxu0 0.0
      %377 = vmatpush.msra.mxu0 0.0
      %378 = vmatpush.msra.mxu0 0.0
      %379 = vmatpush.msra.mxu0 0.0
      %380 = vmatpush.msra.mxu0 0.0
      %381 = vmatpush.msra.mxu0 %v306
      %382 = vmatpush.msra.mxu0 %v284
      %383 = vmatpush.msra.mxu0 %v282
      %384 = vmatmul.f32.gmra.mxu0 %v299
      %v385 = vpop.f32.mrf.mxu0
      %v386 = vadd.f32 %v366, %v385
      %387 = vdwg.mxu0
      %v389 = vsel %vm199, %v205, 0
      %v392 = vsel %vm301, %v242, 0
      %v395 = vsel %vm301, %v243, 0
      %397 = vmatpush.msra.mxu0 %v236
      %398 = vmatpush.msra.mxu0 %v234
      %399 = vmatpush.msra.mxu0 %v232
      %400 = vmatpush.msra.mxu0 %v230
      %401 = vmatpush.msra.mxu0 %v228
      %402 = vmatpush.msra.mxu0 %v226
      %403 = vmatpush.msra.mxu0 %v224
      %404 = vmatpush.msra.mxu0 %v222
      %405 = vmatpush.msra.mxu0 %v220
      %406 = vmatpush.msra.mxu0 %v218
      %407 = vmatpush.msra.mxu0 %v216
      %408 = vmatpush.msra.mxu0 %v214
      %409 = vmatpush.msra.mxu0 %v212
      %410 = vmatpush.msra.mxu0 %v210
      %411 = vmatpush.msra.mxu0 %v208
      %412 = vmatpush.msra.mxu0 %v206
      %413 = vmatmul.f32.gmra.mxu0 %v204
      %v414 = vpop.f32.mrf.mxu0
      %v415 = vadd.f32 %v346, %v414
      %416 = vdwg.mxu0
      %417 = vmatpush.msra.mxu0 0.0
      %418 = vmatpush.msra.mxu0 0.0
      %419 = vmatpush.msra.mxu0 0.0
      %420 = vmatpush.msra.mxu0 0.0
      %421 = vmatpush.msra.mxu0 0.0
      %422 = vmatpush.msra.mxu0 0.0
      %423 = vmatpush.msra.mxu0 0.0
      %424 = vmatpush.msra.mxu0 0.0
      %425 = vmatpush.msra.mxu0 0.0
      %426 = vmatpush.msra.mxu0 0.0
      %427 = vmatpush.msra.mxu0 0.0
      %428 = vmatpush.msra.mxu0 0.0
      %429 = vmatpush.msra.mxu0 0.0
      %430 = vmatpush.msra.mxu0 %v392
      %431 = vmatpush.msra.mxu0 %v240
      %432 = vmatpush.msra.mxu0 %v238
      %433 = vmatmul.f32.gmra.mxu0 %v389
      %v434 = vpop.f32.mrf.mxu0
      %v435 = vadd.f32 %v415, %v434
      %436 = vdwg.mxu0
      %437 = vmatpush.msra.mxu0 %v237
      %438 = vmatpush.msra.mxu0 %v235
      %439 = vmatpush.msra.mxu0 %v233
      %440 = vmatpush.msra.mxu0 %v231
      %441 = vmatpush.msra.mxu0 %v229
      %442 = vmatpush.msra.mxu0 %v227
      %443 = vmatpush.msra.mxu0 %v225
      %444 = vmatpush.msra.mxu0 %v223
      %445 = vmatpush.msra.mxu0 %v221
      %446 = vmatpush.msra.mxu0 %v219
      %447 = vmatpush.msra.mxu0 %v217
      %448 = vmatpush.msra.mxu0 %v215
      %449 = vmatpush.msra.mxu0 %v213
      %450 = vmatpush.msra.mxu0 %v211
      %451 = vmatpush.msra.mxu0 %v209
      %452 = vmatpush.msra.mxu0 %v207
      %453 = vmatmul.f32.gmra.mxu0 %v204
      %v454 = vpop.f32.mrf.mxu0
      %v455 = vadd.f32 %v386, %v454
      %456 = vdwg.mxu0
      %457 = vmatpush.msra.mxu0 0.0
      %458 = vmatpush.msra.mxu0 0.0
      %459 = vmatpush.msra.mxu0 0.0
      %460 = vmatpush.msra.mxu0 0.0
      %461 = vmatpush.msra.mxu0 0.0
      %462 = vmatpush.msra.mxu0 0.0
      %463 = vmatpush.msra.mxu0 0.0
      %464 = vmatpush.msra.mxu0 0.0
      %465 = vmatpush.msra.mxu0 0.0
      %466 = vmatpush.msra.mxu0 0.0
      %467 = vmatpush.msra.mxu0 0.0
      %468 = vmatpush.msra.mxu0 0.0
      %469 = vmatpush.msra.mxu0 0.0
      %470 = vmatpush.msra.mxu0 %v395
      %471 = vmatpush.msra.mxu0 %v241
      %472 = vmatpush.msra.mxu0 %v239
      %473 = vmatmul.f32.gmra.mxu0 %v389
      %v474 = vpop.f32.mrf.mxu0
      %v475 = vadd.f32 %v455, %v474
      %476 = vdwg.mxu0
      %v477 = vld [vmem:[#allocation2] sm:$0xfc]
      %v478 = vld [vmem:[#allocation2 + $0x8] sm:$0xfc]
      %v479 = vld [vmem:[#allocation2 + $0x10] sm:$0x3]
      %v480 = vld [vmem:[#allocation2 + $0x18] sm:$0x3]
      %s481 = scalar_lea.vmem %s1, 608
      %v482 = vld [vmem:[%s481] sm:$0xff]
      %v483 = vld [vmem:[%s481 + $0x8] sm:$0xff]
      %v484 = vld [vmem:[%s481 + $0x10] sm:$0xff]
      %v485 = vld [vmem:[%s481 + $0x18] sm:$0xff]
      %v486 = vld [vmem:[%s481 + $0x20] sm:$0xff]
      %v487 = vld [vmem:[%s481 + $0x28] sm:$0xff]
      %v488 = vld [vmem:[%s481 + $0x30] sm:$0xff]
      %v489 = vld [vmem:[%s481 + $0x38] sm:$0xff]
      %v490 = vld [vmem:[%s481 + $0x40] sm:$0xff]
      %v491 = vld [vmem:[%s481 + $0x48] sm:$0xff]
      %v492 = vld [vmem:[%s481 + $0x50] sm:$0xff]
      %v493 = vld [vmem:[%s481 + $0x58] sm:$0xff]
      %v494 = vld [vmem:[%s481 + $0x60] sm:$0xff]
      %v495 = vld [vmem:[%s481 + $0x68] sm:$0xff]
      %v496 = vld [vmem:[%s481 + $0x70] sm:$0xff]
      %v497 = vld [vmem:[%s481 + $0x78] sm:$0xff]
      %v498 = vld [vmem:[%s481 + $0x80] sm:$0xff]
      %v499 = vld [vmem:[%s481 + $0x88] sm:$0xff]
      %v500 = vld [vmem:[%s481 + $0x90] sm:$0xff]
      %v501 = vld [vmem:[%s481 + $0x98] sm:$0xff]
      %v502 = vld [vmem:[%s481 + $0xa0] sm:$0xff]
      %v503 = vld [vmem:[%s481 + $0xa8] sm:$0xff]
      %v504 = vld [vmem:[%s481 + $0xb0] sm:$0xff]
      %v505 = vld [vmem:[%s481 + $0xb8] sm:$0xff]
      %v506 = vld [vmem:[%s481 + $0xc0] sm:$0xff]
      %v507 = vld [vmem:[%s481 + $0xc8] sm:$0xff]
      %v508 = vld [vmem:[%s481 + $0xd0] sm:$0xff]
      %v509 = vld [vmem:[%s481 + $0xd8] sm:$0xff]
      %v510 = vld [vmem:[%s481 + $0xe0] sm:$0xff]
      %v511 = vld [vmem:[%s481 + $0xe8] sm:$0xff]
      %v512 = vld [vmem:[%s481 + $0xf0] sm:$0xff]
      %v513 = vld [vmem:[%s481 + $0xf8] sm:$0xff]
      %v514 = vld [vmem:[%s481 + $0x100] sm:$0xff]
      %v515 = vld [vmem:[%s481 + $0x108] sm:$0xff]
      %v516 = vld [vmem:[%s481 + $0x110] sm:$0xff]
      %v517 = vld [vmem:[%s481 + $0x118] sm:$0xff]
      %v518 = vld [vmem:[%s481 + $0x120] sm:$0x3f]
      %v519 = vld [vmem:[%s481 + $0x128] sm:$0x3f]
      %v524 = vrot.slane %v477, 2
      %v525 = vrot.slane %v479, 2
      %v526 = vsel %vm301, %v524, %v525
      %v527 = vrot.slane %v478, 2
      %v528 = vrot.slane %v480, 2
      %v529 = vsel %vm301, %v527, %v528
      %v531 = vsel %vm199, %v529, 0
      %v534 = vsel %vm301, %v518, 0
      %v537 = vsel %vm301, %v519, 0
      %539 = vmatpush.msra.mxu0 %v512
      %540 = vmatpush.msra.mxu0 %v510
      %541 = vmatpush.msra.mxu0 %v508
      %542 = vmatpush.msra.mxu0 %v506
      %543 = vmatpush.msra.mxu0 %v504
      %544 = vmatpush.msra.mxu0 %v502
      %545 = vmatpush.msra.mxu0 %v500
      %546 = vmatpush.msra.mxu0 %v498
      %547 = vmatpush.msra.mxu0 %v496
      %548 = vmatpush.msra.mxu0 %v494
      %549 = vmatpush.msra.mxu0 %v492
      %550 = vmatpush.msra.mxu0 %v490
      %551 = vmatpush.msra.mxu0 %v488
      %552 = vmatpush.msra.mxu0 %v486
      %553 = vmatpush.msra.mxu0 %v484
      %554 = vmatpush.msra.mxu0 %v482
      %555 = vmatmul.f32.gmra.mxu0 %v526
      %v556 = vpop.f32.mrf.mxu0
      %v557 = vadd.f32 0.0, %v556
      %558 = vdwg.mxu0
      %559 = vmatpush.msra.mxu0 0.0
      %560 = vmatpush.msra.mxu0 0.0
      %561 = vmatpush.msra.mxu0 0.0
      %562 = vmatpush.msra.mxu0 0.0
      %563 = vmatpush.msra.mxu0 0.0
      %564 = vmatpush.msra.mxu0 0.0
      %565 = vmatpush.msra.mxu0 0.0
      %566 = vmatpush.msra.mxu0 0.0
      %567 = vmatpush.msra.mxu0 0.0
      %568 = vmatpush.msra.mxu0 0.0
      %569 = vmatpush.msra.mxu0 0.0
      %570 = vmatpush.msra.mxu0 0.0
      %571 = vmatpush.msra.mxu0 0.0
      %572 = vmatpush.msra.mxu0 %v534
      %573 = vmatpush.msra.mxu0 %v516
      %574 = vmatpush.msra.mxu0 %v514
      %575 = vmatmul.f32.gmra.mxu0 %v531
      %v576 = vpop.f32.mrf.mxu0
      %v577 = vadd.f32 %v557, %v576
      %578 = vdwg.mxu0
      %579 = vmatpush.msra.mxu0 %v513
      %580 = vmatpush.msra.mxu0 %v511
      %581 = vmatpush.msra.mxu0 %v509
      %582 = vmatpush.msra.mxu0 %v507
      %583 = vmatpush.msra.mxu0 %v505
      %584 = vmatpush.msra.mxu0 %v503
      %585 = vmatpush.msra.mxu0 %v501
      %586 = vmatpush.msra.mxu0 %v499
      %587 = vmatpush.msra.mxu0 %v497
      %588 = vmatpush.msra.mxu0 %v495
      %589 = vmatpush.msra.mxu0 %v493
      %590 = vmatpush.msra.mxu0 %v491
      %591 = vmatpush.msra.mxu0 %v489
      %592 = vmatpush.msra.mxu0 %v487
      %593 = vmatpush.msra.mxu0 %v485
      %594 = vmatpush.msra.mxu0 %v483
      %595 = vmatmul.f32.gmra.mxu0 %v526
      %v596 = vpop.f32.mrf.mxu0
      %v597 = vadd.f32 0.0, %v596
      %598 = vdwg.mxu0
      %599 = vmatpush.msra.mxu0 0.0
      %600 = vmatpush.msra.mxu0 0.0
      %601 = vmatpush.msra.mxu0 0.0
      %602 = vmatpush.msra.mxu0 0.0
      %603 = vmatpush.msra.mxu0 0.0
      %604 = vmatpush.msra.mxu0 0.0
      %605 = vmatpush.msra.mxu0 0.0
      %606 = vmatpush.msra.mxu0 0.0
      %607 = vmatpush.msra.mxu0 0.0
      %608 = vmatpush.msra.mxu0 0.0
      %609 = vmatpush.msra.mxu0 0.0
      %610 = vmatpush.msra.mxu0 0.0
      %611 = vmatpush.msra.mxu0 0.0
      %612 = vmatpush.msra.mxu0 %v537
      %613 = vmatpush.msra.mxu0 %v517
      %614 = vmatpush.msra.mxu0 %v515
      %615 = vmatmul.f32.gmra.mxu0 %v531
      %v616 = vpop.f32.mrf.mxu0
      %v617 = vadd.f32 %v597, %v616
      %618 = vdwg.mxu0
      %v619 = vadd.f32 %v435, %v577
      %v620 = vadd.f32 %v475, %v617
      %621 = vst [vmem:[#allocation3] sm:$0xff] %v619
      %vm622 = vcmask 261120
      %623 = vst.msk [vmem:[#allocation3 + $0x8] sm:$0xff] %vm622, %v620
      %v624 = vld [vmem:[#allocation3] sm:$0xff]
      %v625 = vld [vmem:[#allocation3 + $0x8] sm:$0xff]
      %628 = vrot.lane.b32.xlu0 %v624, 48
      %v629 = vpop.permute.xlu0 %628
      %630 = vrot.lane.b32.xlu0 %v625, 48
      %v631 = vpop.permute.xlu0 %630
      %vm632 = vcmask 392192
      %v633 = vsel %vm632, %v629, %v631
      %v635 = vmax.f32 %v624, %v633
      %v636 = vld [vmem:[%s2] sm:$0x1]
      %v638 = vperm.slane %v636, 0
      %v640 = vadd.f32 %v635, %v638
      %v641 = vmax.f32 %v640, 0.0
      %vm642 = vcmask 654336
      %643 = vst.msk [vmem:[%s168] sm:$0xff] %vm642, %v641
      %p644 = scmp.lt.s32.totalorder %s14, 1
      %s645 = scalar_select %p644, %s14, 1
      %s646 = smul.addr %s645, 8
      %s647 = scalar_lea.vmem %s3, %s646
      // Predicated region
      $region33: #{net_forward.6} parent=31 // pred_check
        %p648 = pneg %p100
      $region34: #{net_forward.6} parent=31 // pred_check_branch
        %650 = sbr.rel (%p648) target = $region36
      $region35: #{net_forward.6} parent=31 // pred_region
        _
      $region36: #{net_forward.6} parent=31 // pred_fallthru
        _
    $region32: #{net_forward.6} parent=5 // pred_fallthru
      _
    %p651 = scmp.le.s32.totalorder 2, %s9
    // Predicated region
    $region37: #{net_forward.6} parent=5 // pred_check
      %p652 = pneg %p651
    $region38: #{net_forward.6} parent=5 // pred_check_branch
      %654 = sbr.rel (%p652) target = $region40
    $region39: #{net_forward.6} parent=5 // pred_region
      %s655 = ssub.s32 %s9, 2
      // Predicated region
      $region41: #{net_forward.6} parent=39 // pred_check
        %p656 = pneg %p106
      $region42: #{net_forward.6} parent=39 // pred_check_branch
        %658 = sbr.rel (%p656) target = $region44
      $region43: #{net_forward.6} parent=39 // pred_region
        %p659 = scmp.lt.s32.totalorder %s15, 1
        %s660 = scalar_select %p659, %s15, 1
        %s661 = smul.addr %s660, 8
        %s662 = scalar_lea.vmem %s3, %s661
      $region44: #{net_forward.6} parent=39 // pred_fallthru
        _
    $region40: #{net_forward.6} parent=5 // pred_fallthru
      _
  $region6: #{net_forward.6} parent=0 // loop_footer
    %s13 = sadd.s32 1, %s9
  $region7: #{net_forward.6} parent=0 // loop_footer_branch
    %8 = sbr.rel target = $region3
  $region8: #{net_forward.6} parent=0 // loop_exit
    _

// kernel: net_forward.5
$region0: #{net_forward.5}
  #allocation0 [shape = 'u32[]', space=smem, size = 0x4, offset = 0x4, fixed_abs, tag = 'smem constant byte address 0x4 - core index']
  #allocation1 [shape = 'u32[72,128]{1,0:T(1,128)}', space=vmem, size = 0x9000, scoped, tag = 'internal scratch']
  #allocation2 [shape = 'f32[22,220]{1,0:T(8,128)}', space=vmem, size = 0x6000, scoped, tag = 'scratch operand']
  #allocation3 [shape = 'f32[20,300]{1,0:T(8,128)}', space=vmem, size = 0x9000, scoped, tag = 'scratch operand']
  %s0 = inlined_call_operand.vmem [shape: f32[2,22,440], index: 0, kind: input, shape index: {}]
  %s1 = inlined_call_operand.vmem [shape: f32[3,220,300], index: 1, kind: input, shape index: {}]
  %s2 = inlined_call_operand.vmem [shape: f32[1,150], index: 2, kind: input, shape index: {}]
  %s3 = inlined_call_operand.vmem [shape: f32[2,20,150], index: 3, kind: output, shape index: {}]
  %s4 = sld [smem:[#allocation0]]
  $region45: #{net_forward.5} parent=0
    _
  %s6 = ssub.s32 1, %s4
  %s7 = scalar_select 0, %s6, %s4
  loop: start=0, step=1, limit=4
  $region2: #{net_forward.5} parent=0 // loop_pre_header
    _
  $region3: #{net_forward.5} parent=0 // loop_header
    %s9 = sphi 0, %s13
    %p10 = scmp.ge.s32.totalorder %s9, 4
    %s19 = sphi 0, %s21
    %s22 = sphi 0, %s19
    %s23 = sphi 0, %s22
    %s39 = sphi 0, %s23
    %s43 = sphi 0, %s43
    %s45 = sphi 0, %s43
    %s46 = sphi 0, %s45
    %s60 = sphi 0, %s46
    %s64 = sphi 0, %s64
    %s66 = sphi 0, %s64
    %s67 = sphi 0, %s66
    %s81 = sphi 0, %s67
    %s87 = sphi 0, %s89
    %s90 = sphi 0, %s87
    %s91 = sphi 0, %s90
    %s107 = sphi 0, %s91
  $region4: #{net_forward.5} parent=0 // loop_header_branch
    %12 = sbr.rel (%p10) target = $region8
  $region5: #{net_forward.5} parent=0 // loop_body
    %s14 = ssub.s32 %s9, 1
    %s15 = ssub.s32 %s9, 2
    %s16 = sadd.s32 %s9, 1
    %s17 = ssub.s32 %s9, %s16
    %p18 = scmp.eq.s32.totalorder %s17, 0
    %s20 = sadd.s32 %s19, 1
    %s21 = scalar_select %p18, %s19, %s20
    %p24 = pneg %p18
    %p25 = scmp.eq.s32.totalorder %s9, 1
    %p26 = por %p24, %p25
    %p27 = scmp.ne.s32.totalorder %s19, %s22
    %p28 = scmp.eq.s32.totalorder %s9, 0
    %p29 = por %p27, %p28
    %p30 = scmp.ne.s32.totalorder %s19, %s22
    %p31 = scmp.eq.s32.totalorder %s14, 1
    %p32 = por %p30, %p31
    %p33 = scmp.ne.s32.totalorder %s22, %s23
    %p34 = scmp.eq.s32.totalorder %s14, 0
    %p35 = por %p33, %p34
    %p36 = scmp.ne.s32.totalorder %s22, %s23
    %p37 = scmp.eq.s32.totalorder %s15, 1
    %p38 = por %p36, %p37
    %p40 = scmp.ne.s32.totalorder %s23, %s39
    %p41 = scmp.eq.s32.totalorder %s15, 0
    %p42 = por %p40, %p41
    %s44 = sadd.s32 %s43, 1
    %p47 = scmp.eq.s32.totalorder %s9, 1
    %p48 = scmp.ne.s32.totalorder %s43, %s45
    %p49 = scmp.eq.s32.totalorder %s9, 0
    %p50 = por %p48, %p49
    %p51 = scmp.ne.s32.totalorder %s43, %s45
    %p52 = scmp.eq.s32.totalorder %s14, 1
    %p53 = por %p51, %p52
    %p54 = scmp.ne.s32.totalorder %s45, %s46
    %p55 = scmp.eq.s32.totalorder %s14, 0
    %p56 = por %p54, %p55
    %p57 = scmp.ne.s32.totalorder %s45, %s46
    %p58 = scmp.eq.s32.totalorder %s15, 1
    %p59 = por %p57, %p58
    %p61 = scmp.ne.s32.totalorder %s46, %s60
    %p62 = scmp.eq.s32.totalorder %s15, 0
    %p63 = por %p61, %p62
    %s65 = sadd.s32 %s64, 1
    %p68 = scmp.eq.s32.totalorder %s9, 1
    %p69 = scmp.ne.s32.totalorder %s64, %s66
    %p70 = scmp.eq.s32.totalorder %s9, 0
    %p71 = por %p69, %p70
    %p72 = scmp.ne.s32.totalorder %s64, %s66
    %p73 = scmp.eq.s32.totalorder %s14, 1
    %p74 = por %p72, %p73
    %p75 = scmp.ne.s32.totalorder %s66, %s67
    %p76 = scmp.eq.s32.totalorder %s14, 0
    %p77 = por %p75, %p76
    %p78 = scmp.ne.s32.totalorder %s66, %s67
    %p79 = scmp.eq.s32.totalorder %s15, 1
    %p80 = por %p78, %p79
    %p82 = scmp.ne.s32.totalorder %s67, %s81
    %p83 = scmp.eq.s32.totalorder %s15, 0
    %p84 = por %p82, %p83
    %s85 = ssub.s32 %s9, %s16
    %p86 = scmp.eq.s32.totalorder %s85, 0
    %s88 = sadd.s32 %s87, 1
    %s89 = scalar_select %p86, %s87, %s88
    %p92 = pneg %p86
    %p93 = scmp.eq.s32.totalorder %s9, 1
    %p94 = por %p92, %p93
    %p95 = scmp.ne.s32.totalorder %s87, %s90
    %p96 = scmp.eq.s32.totalorder %s9, 0
    %p97 = por %p95, %p96
    %p98 = scmp.ne.s32.totalorder %s87, %s90
    %p99 = scmp.eq.s32.totalorder %s14, 1
    %p100 = por %p98, %p99
    %p101 = scmp.ne.s32.totalorder %s90, %s91
    %p102 = scmp.eq.s32.totalorder %s14, 0
    %p103 = por %p101, %p102
    %p104 = scmp.ne.s32.totalorder %s90, %s91
    %p105 = scmp.eq.s32.totalorder %s15, 1
    %p106 = por %p104, %p105
    %p108 = scmp.ne.s32.totalorder %s91, %s107
    %p109 = scmp.eq.s32.totalorder %s15, 0
    %p110 = por %p108, %p109
    %p111 = scmp.le.s32.totalorder 1, %s9
    %p112 = scmp.lt.s32.totalorder %s9, 3
    %p113 = pnand %p111, %p112
    %p114 = pneg %p113
    // Predicated region
    $region9: #{net_forward.5} parent=5 // pred_check
      _
    $region10: #{net_forward.5} parent=5 // pred_check_branch
      %116 = sbr.rel (%p113) target = $region12
    $region11: #{net_forward.5} parent=5 // pred_region
      %s117 = ssub.s32 %s9, 1
      // Predicated region
      $region13: #{net_forward.5} parent=11 // pred_check
        %p118 = pneg %p56
      $region14: #{net_forward.5} parent=11 // pred_check_branch
        %120 = sbr.rel (%p118) target = $region16
      $region15: #{net_forward.5} parent=11 // pred_region
        _
      $region16: #{net_forward.5} parent=11 // pred_fallthru
        _
      // Predicated region
      $region17: #{net_forward.5} parent=11 // pred_check
        %p121 = pneg %p77
      $region18: #{net_forward.5} parent=11 // pred_check_branch
        %123 = sbr.rel (%p121) target = $region20
      $region19: #{net_forward.5} parent=11 // pred_region
        _
      $region20: #{net_forward.5} parent=11 // pred_fallthru
        _
    $region12: #{net_forward.5} parent=5 // pred_fallthru
      _
    %p124 = scmp.lt.s32.totalorder %s9, 2
    // Predicated region
    $region21: #{net_forward.5} parent=5 // pred_check
      %p125 = pneg %p124
    $region22: #{net_forward.5} parent=5 // pred_check_branch
      %127 = sbr.rel (%p125) target = $region24
    $region23: #{net_forward.5} parent=5 // pred_region
      // Predicated region
      $region25: #{net_forward.5} parent=23 // pred_check
        %p128 = pneg %p29
      $region26: #{net_forward.5} parent=23 // pred_check_branch
        %130 = sbr.rel (%p128) target = $region28
      $region27: #{net_forward.5} parent=23 // pred_region
        %p131 = scmp.lt.s32.totalorder %s9, 1
        %s132 = scalar_select %p131, %s9, 1
        %s133 = smul.addr %s132, 12
        %s134 = smul.addr %s133, 8
        %s135 = scalar_lea.vmem %s0, %s134
      $region28: #{net_forward.5} parent=23 // pred_fallthru
        _
    $region24: #{net_forward.5} parent=5 // pred_fallthru
      _
    %p136 = scmp.le.s32.totalorder 1, %s9
    %p137 = scmp.lt.s32.totalorder %s9, 3
    %p138 = pnand %p136, %p137
    %p139 = pneg %p138
    // Predicated region
    $region29: #{net_forward.5} parent=5 // pred_check
      _
    $region30: #{net_forward.5} parent=5 // pred_check_branch
      %141 = sbr.rel (%p138) target = $region32
    $region31: #{net_forward.5} parent=5 // pred_region
      %s142 = ssub.s32 %s9, 1
      %p143 = scmp.lt.s32.totalorder %s14, 1
      %s144 = scalar_select %p143, %s14, 1
      %s145 = smul.addr %s144, 12
      %s146 = smul.addr %s145, 8
      %s147 = scalar_lea.vmem %s0, %s146
      %p148 = pneg %p35
      %p149 = pneg %p32
      %p150 = pneg %p56
      %p151 = pneg %p53
      %p152 = pneg %p77
      %p153 = pneg %p74
      %p154 = pneg %p103
      %p155 = pneg %p100
      %p156 = scmp.lt.s32.totalorder %s14, 1
      %s157 = scalar_select %p156, %s14, 1
      %s158 = smul.addr %s157, 6
      %s159 = smul.addr %s158, 8
      %s160 = scalar_lea.vmem %s3, %s159
      %p161 = scmp.lt.s32.totalorder %s14, 1
      %s162 = scalar_select %p161, %s14, 1
      %s163 = smul.addr %s162, 12
      %s164 = smul.addr %s163, 8
      %s165 = scalar_lea.vmem %s0, %s164
      %p166 = scmp.lt.s32.totalorder %s14, 1
      %s167 = scalar_select %p166, %s14, 1
      %s168 = smul.addr %s167, 6
      %s169 = smul.addr %s168, 8
      %s170 = scalar_lea.vmem %s3, %s169
      %v171 = vld [vmem:[%s165] sm:$0xff]
      %v172 = vld [vmem:[%s165 + $0x8] sm:$0xff]
      %v173 = vld [vmem:[%s165 + $0x20] sm:$0xff]
      %v174 = vld [vmem:[%s165 + $0x28] sm:$0xff]
      %v175 = vld [vmem:[%s165 + $0x40] sm:$0x3f]
      %v176 = vld [vmem:[%s165 + $0x48] sm:$0x3f]
      %v177 = vld [vmem:[%s165 + $0x10] sm:$0xff]
      %v178 = vld [vmem:[%s165 + $0x18] sm:$0xff]
      %v179 = vld [vmem:[%s165 + $0x30] sm:$0xff]
      %v180 = vld [vmem:[%s165 + $0x38] sm:$0xff]
      %v181 = vld [vmem:[%s165 + $0x50] sm:$0x3f]
      %v182 = vld [vmem:[%s165 + $0x58] sm:$0x3f]
      %192 = vrot.lane.b32.xlu0 %v172, 36
      %v193 = vpop.permute.xlu0 %192
      %194 = vrot.lane.b32.xlu0 %v177, 36
      %v195 = vpop.permute.xlu0 %194
      %196 = vrot.lane.b32.xlu0 %v178, 36
      %v197 = vpop.permute.xlu0 %196
      %198 = vrot.lane.b32.xlu0 %v174, 36
      %v199 = vpop.permute.xlu0 %198
      %200 = vrot.lane.b32.xlu0 %v179, 36
      %v201 = vpop.permute.xlu0 %200
      %202 = vrot.lane.b32.xlu0 %v180, 36
      %v203 = vpop.permute.xlu0 %202
      %204 = vrot.lane.b32.xlu0 %v176, 36
      %v205 = vpop.permute.xlu0 %204
      %206 = vrot.lane.b32.xlu0 %v181, 36
      %v207 = vpop.permute.xlu0 %206
      %208 = vrot.lane.b32.xlu0 %v182, 36
      %v209 = vpop.permute.xlu0 %208
      %vm210 = vcmask 293888
      %v211 = vsel %vm210, %v193, %v195
      %v212 = vsel %vm210, %v195, %v197
      %v213 = vsel %vm210, %v199, %v201
      %v214 = vsel %vm210, %v201, %v203
      %v215 = vsel %vm210, %v205, %v207
      %v216 = vsel %vm210, %v207, %v209
      %v223 = vmax.f32 %v171, %v211
      %v224 = vmax.f32 %v172, %v212
      %v225 = vmax.f32 %v173, %v213
      %v226 = vmax.f32 %v174, %v214
      %v227 = vmax.f32 %v175, %v215
      %v228 = vmax.f32 %v176, %v216
      %229 = vst [vmem:[#allocation2] sm:$0xff] %v223
      %vm230 = vcmask 752640
      %231 = vst.msk [vmem:[#allocation2 + $0x8] sm:$0xff] %vm230, %v224
      %232 = vst [vmem:[#allocation2 + $0x10] sm:$0xff] %v225
      %233 = vst.msk [vmem:[#allocation2 + $0x18] sm:$0xff] %vm230, %v226
      %234 = vst [vmem:[#allocation2 + $0x20] sm:$0x3f] %v227
      %vm235 = vcmask 750592
      %236 = vst.msk [vmem:[#allocation2 + $0x28] sm:$0x3f] %vm235, %v228
      %v237 = vld [vmem:[#allocation2] sm:$0xff]
      %v238 = vld [vmem:[#allocation2 + $0x8] sm:$0xff]
      %v239 = vld [vmem:[#allocation2 + $0x10] sm:$0xff]
      %v240 = vld [vmem:[#allocation2 + $0x18] sm:$0xff]
      %v241 = vld [vmem:[#allocation2 + $0x20] sm:$0xf]
      %v242 = vld [vmem:[#allocation2 + $0x28] sm:$0xf]
      %v243 = vld [vmem:[%s1] sm:$0xff]
      %v244 = vld [vmem:[%s1 + $0x8] sm:$0xff]
      %v245 = vld [vmem:[%s1 + $0x10] sm:$0xff]
      %v246 = vld [vmem:[%s1 + $0x18] sm:$0xff]
      %v247 = vld [vmem:[%s1 + $0x20] sm:$0xff]
      %v248 = vld [vmem:[%s1 + $0x28] sm:$0xff]
      %v249 = vld [vmem:[%s1 + $0x30] sm:$0xff]
      %v250 = vld [vmem:[%s1 + $0x38] sm:$0xff]
      %v251 = vld [vmem:[%s1 + $0x40] sm:$0xff]
      %v252 = vld [vmem:[%s1 + $0x48] sm:$0xff]
      %v253 = vld [vmem:[%s1 + $0x50] sm:$0xff]
      %v254 = vld [vmem:[%s1 + $0x58] sm:$0xff]
      %v255 = vld [vmem:[%s1 + $0x60] sm:$0xff]
      %v256 = vld [vmem:[%s1 + $0x68] sm:$0xff]
      %v257 = vld [vmem:[%s1 + $0x70] sm:$0xff]
      %v258 = vld [vmem:[%s1 + $0x78] sm:$0xff]
      %v259 = vld [vmem:[%s1 + $0x80] sm:$0xff]
      %v260 = vld [vmem:[%s1 + $0x88] sm:$0xff]
      %v261 = vld [vmem:[%s1 + $0x90] sm:$0xff]
      %v262 = vld [vmem:[%s1 + $0x98] sm:$0xff]
      %v263 = vld [vmem:[%s1 + $0xa0] sm:$0xff]
      %v264 = vld [vmem:[%s1 + $0xa8] sm:$0xff]
      %v265 = vld [vmem:[%s1 + $0xb0] sm:$0xff]
      %v266 = vld [vmem:[%s1 + $0xb8] sm:$0xff]
      %v267 = vld [vmem:[%s1 + $0xc0] sm:$0xff]
      %v268 = vld [vmem:[%s1 + $0xc8] sm:$0xff]
      %v269 = vld [vmem:[%s1 + $0xd0] sm:$0xff]
      %v270 = vld [vmem:[%s1 + $0xd8] sm:$0xff]
      %v271 = vld [vmem:[%s1 + $0xe0] sm:$0xff]
      %v272 = vld [vmem:[%s1 + $0xe8] sm:$0xff]
      %v273 = vld [vmem:[%s1 + $0xf0] sm:$0xff]
      %v274 = vld [vmem:[%s1 + $0xf8] sm:$0xff]
      %v275 = vld [vmem:[%s1 + $0x100] sm:$0xff]
      %v276 = vld [vmem:[%s1 + $0x108] sm:$0xff]
      %v277 = vld [vmem:[%s1 + $0x110] sm:$0xff]
      %v278 = vld [vmem:[%s1 + $0x118] sm:$0xff]
      %v279 = vld [vmem:[%s1 + $0x120] sm:$0xff]
      %v280 = vld [vmem:[%s1 + $0x128] sm:$0xff]
      %v281 = vld [vmem:[%s1 + $0x130] sm:$0xff]
      %v282 = vld [vmem:[%s1 + $0x138] sm:$0xff]
      %v283 = vld [vmem:[%s1 + $0x140] sm:$0xff]
      %v284 = vld [vmem:[%s1 + $0x148] sm:$0xff]
      %v285 = vld [vmem:[%s1 + $0x150] sm:$0xff]
      %v286 = vld [vmem:[%s1 + $0x158] sm:$0xff]
      %v287 = vld [vmem:[%s1 + $0x160] sm:$0xff]
      %v288 = vld [vmem:[%s1 + $0x168] sm:$0xff]
      %v289 = vld [vmem:[%s1 + $0x170] sm:$0xff]
      %v290 = vld [vmem:[%s1 + $0x178] sm:$0xff]
      %v291 = vld [vmem:[%s1 + $0x180] sm:$0xff]
      %v292 = vld [vmem:[%s1 + $0x188] sm:$0xff]
      %v293 = vld [vmem:[%s1 + $0x190] sm:$0xff]
      %v294 = vld [vmem:[%s1 + $0x198] sm:$0xff]
      %v295 = vld [vmem:[%s1 + $0x1a0] sm:$0xff]
      %v296 = vld [vmem:[%s1 + $0x1a8] sm:$0xff]
      %v297 = vld [vmem:[%s1 + $0x1b0] sm:$0xff]
      %v298 = vld [vmem:[%s1 + $0x1b8] sm:$0xff]
      %v299 = vld [vmem:[%s1 + $0x1c0] sm:$0xff]
      %v300 = vld [vmem:[%s1 + $0x1c8] sm:$0xff]
      %v301 = vld [vmem:[%s1 + $0x1d0] sm:$0xff]
      %v302 = vld [vmem:[%s1 + $0x1d8] sm:$0xff]
      %v303 = vld [vmem:[%s1 + $0x1e0] sm:$0xff]
      %v304 = vld [vmem:[%s1 + $0x1e8] sm:$0xff]
      %v305 = vld [vmem:[%s1 + $0x1f0] sm:$0xff]
      %v306 = vld [vmem:[%s1 + $0x1f8] sm:$0xff]
      %v307 = vld [vmem:[%s1 + $0x200] sm:$0xff]
      %v308 = vld [vmem:[%s1 + $0x208] sm:$0xff]
      %v309 = vld [vmem:[%s1 + $0x210] sm:$0xff]
      %v310 = vld [vmem:[%s1 + $0x218] sm:$0xff]
      %v311 = vld [vmem:[%s1 + $0x220] sm:$0xff]
      %v312 = vld [vmem:[%s1 + $0x228] sm:$0xff]
      %v313 = vld [vmem:[%s1 + $0x230] sm:$0xff]
      %v314 = vld [vmem:[%s1 + $0x238] sm:$0xff]
      %v315 = vld [vmem:[%s1 + $0x240] sm:$0xff]
      %v316 = vld [vmem:[%s1 + $0x248] sm:$0xff]
      %v317 = vld [vmem:[%s1 + $0x250] sm:$0xff]
      %v318 = vld [vmem:[%s1 + $0x258] sm:$0xff]
      %v319 = vld [vmem:[%s1 + $0x260] sm:$0xff]
      %v320 = vld [vmem:[%s1 + $0x268] sm:$0xff]
      %v321 = vld [vmem:[%s1 + $0x270] sm:$0xff]
      %v322 = vld [vmem:[%s1 + $0x278] sm:$0xff]
      %v323 = vld [vmem:[%s1 + $0x280] sm:$0xff]
      %v324 = vld [vmem:[%s1 + $0x288] sm:$0xf]
      %v325 = vld [vmem:[%s1 + $0x290] sm:$0xf]
      %v326 = vld [vmem:[%s1 + $0x298] sm:$0xf]
      %v327 = vld [vmem:[#allocation2] sm:$0xfe]
      %v328 = vld [vmem:[#allocation2 + $0x8] sm:$0xfe]
      %v329 = vld [vmem:[#allocation2 + $0x20] sm:$0x1f]
      %v330 = vld [vmem:[#allocation2 + $0x28] sm:$0x1f]
      %s331 = scalar_lea.vmem %s1, 672
      %v332 = vld [vmem:[%s331] sm:$0xff]
      %v333 = vld [vmem:[%s331 + $0x8] sm:$0xff]
      %v334 = vld [vmem:[%s331 + $0x10] sm:$0xff]
      %v335 = vld [vmem:[%s331 + $0x18] sm:$0xff]
      %v336 = vld [vmem:[%s331 + $0x20] sm:$0xff]
      %v337 = vld [vmem:[%s331 + $0x28] sm:$0xff]
      %v338 = vld [vmem:[%s331 + $0x30] sm:$0xff]
      %v339 = vld [vmem:[%s331 + $0x38] sm:$0xff]
      %v340 = vld [vmem:[%s331 + $0x40] sm:$0xff]
      %v341 = vld [vmem:[%s331 + $0x48] sm:$0xff]
      %v342 = vld [vmem:[%s331 + $0x50] sm:$0xff]
      %v343 = vld [vmem:[%s331 + $0x58] sm:$0xff]
      %v344 = vld [vmem:[%s331 + $0x60] sm:$0xff]
      %v345 = vld [vmem:[%s331 + $0x68] sm:$0xff]
      %v346 = vld [vmem:[%s331 + $0x70] sm:$0xff]
      %v347 = vld [vmem:[%s331 + $0x78] sm:$0xff]
      %v348 = vld [vmem:[%s331 + $0x80] sm:$0xff]
      %v349 = vld [vmem:[%s331 + $0x88] sm:$0xff]
      %v350 = vld [vmem:[%s331 + $0x90] sm:$0xff]
      %v351 = vld [vmem:[%s331 + $0x98] sm:$0xff]
      %v352 = vld [vmem:[%s331 + $0xa0] sm:$0xff]
      %v353 = vld [vmem:[%s331 + $0xa8] sm:$0xff]
      %v354 = vld [vmem:[%s331 + $0xb0] sm:$0xff]
      %v355 = vld [vmem:[%s331 + $0xb8] sm:$0xff]
      %v356 = vld [vmem:[%s331 + $0xc0] sm:$0xff]
      %v357 = vld [vmem:[%s331 + $0xc8] sm:$0xff]
      %v358 = vld [vmem:[%s331 + $0xd0] sm:$0xff]
      %v359 = vld [vmem:[%s331 + $0xd8] sm:$0xff]
      %v360 = vld [vmem:[%s331 + $0xe0] sm:$0xff]
      %v361 = vld [vmem:[%s331 + $0xe8] sm:$0xff]
      %v362 = vld [vmem:[%s331 + $0xf0] sm:$0xff]
      %v363 = vld [vmem:[%s331 + $0xf8] sm:$0xff]
      %v364 = vld [vmem:[%s331 + $0x100] sm:$0xff]
      %v365 = vld [vmem:[%s331 + $0x108] sm:$0xff]
      %v366 = vld [vmem:[%s331 + $0x110] sm:$0xff]
      %v367 = vld [vmem:[%s331 + $0x118] sm:$0xff]
      %v368 = vld [vmem:[%s331 + $0x120] sm:$0xff]
      %v369 = vld [vmem:[%s331 + $0x128] sm:$0xff]
      %v370 = vld [vmem:[%s331 + $0x130] sm:$0xff]
      %v371 = vld [vmem:[%s331 + $0x138] sm:$0xff]
      %v372 = vld [vmem:[%s331 + $0x140] sm:$0xff]
      %v373 = vld [vmem:[%s331 + $0x148] sm:$0xff]
      %v374 = vld [vmem:[%s331 + $0x150] sm:$0xff]
      %v375 = vld [vmem:[%s331 + $0x158] sm:$0xff]
      %v376 = vld [vmem:[%s331 + $0x160] sm:$0xff]
      %v377 = vld [vmem:[%s331 + $0x168] sm:$0xff]
      %v378 = vld [vmem:[%s331 + $0x170] sm:$0xff]
      %v379 = vld [vmem:[%s331 + $0x178] sm:$0xff]
      %v380 = vld [vmem:[%s331 + $0x180] sm:$0xff]
      %v381 = vld [vmem:[%s331 + $0x188] sm:$0xff]
      %v382 = vld [vmem:[%s331 + $0x190] sm:$0xff]
      %v383 = vld [vmem:[%s331 + $0x198] sm:$0xff]
      %v384 = vld [vmem:[%s331 + $0x1a0] sm:$0xff]
      %v385 = vld [vmem:[%s331 + $0x1a8] sm:$0xff]
      %v386 = vld [vmem:[%s331 + $0x1b0] sm:$0xff]
      %v387 = vld [vmem:[%s331 + $0x1b8] sm:$0xff]
      %v388 = vld [vmem:[%s331 + $0x1c0] sm:$0xff]
      %v389 = vld [vmem:[%s331 + $0x1c8] sm:$0xff]
      %v390 = vld [vmem:[%s331 + $0x1d0] sm:$0xff]
      %v391 = vld [vmem:[%s331 + $0x1d8] sm:$0xff]
      %v392 = vld [vmem:[%s331 + $0x1e0] sm:$0xff]
      %v393 = vld [vmem:[%s331 + $0x1e8] sm:$0xff]
      %v394 = vld [vmem:[%s331 + $0x1f0] sm:$0xff]
      %v395 = vld [vmem:[%s331 + $0x1f8] sm:$0xff]
      %v396 = vld [vmem:[%s331 + $0x200] sm:$0xff]
      %v397 = vld [vmem:[%s331 + $0x208] sm:$0xff]
      %v398 = vld [vmem:[%s331 + $0x210] sm:$0xff]
      %v399 = vld [vmem:[%s331 + $0x218] sm:$0xff]
      %v400 = vld [vmem:[%s331 + $0x220] sm:$0xff]
      %v401 = vld [vmem:[%s331 + $0x228] sm:$0xff]
      %v402 = vld [vmem:[%s331 + $0x230] sm:$0xff]
      %v403 = vld [vmem:[%s331 + $0x238] sm:$0xff]
      %v404 = vld [vmem:[%s331 + $0x240] sm:$0xff]
      %v405 = vld [vmem:[%s331 + $0x248] sm:$0xff]
      %v406 = vld [vmem:[%s331 + $0x250] sm:$0xff]
      %v407 = vld [vmem:[%s331 + $0x258] sm:$0xff]
      %v408 = vld [vmem:[%s331 + $0x260] sm:$0xff]
      %v409 = vld [vmem:[%s331 + $0x268] sm:$0xff]
      %v410 = vld [vmem:[%s331 + $0x270] sm:$0xff]
      %v411 = vld [vmem:[%s331 + $0x278] sm:$0xff]
      %v412 = vld [vmem:[%s331 + $0x280] sm:$0xff]
      %v413 = vld [vmem:[%s331 + $0x288] sm:$0xf]
      %v414 = vld [vmem:[%s331 + $0x290] sm:$0xf]
      %v415 = vld [vmem:[%s331 + $0x298] sm:$0xf]
      %vm422 = vcmask 1046528
      %v423 = vrot.slane %v327, 1
      %v424 = vrot.slane %v239, 1
      %v425 = vsel %vm422, %v423, %v424
      %v426 = vrot.slane %v328, 1
      %v427 = vrot.slane %v240, 1
      %v428 = vsel %vm422, %v426, %v427
      %v429 = vrot.slane %v329, 1
      %v430 = vsel %vm422, %v424, %v429
      %v431 = vrot.slane %v330, 1
      %v432 = vsel %vm422, %v427, %v431
      %v436 = vsel %vm230, %v428, 0
      %v438 = vsel %vm230, %v432, 0
      %v440 = vsel %vm230, %v431, 0
      %vm442 = vcmask 1043456
      %v444 = vsel %vm442, %v413, 0
      %v447 = vsel %vm442, %v414, 0
      %v450 = vsel %vm442, %v415, 0
      %452 = vmatpush.msra.mxu0 %v377
      %453 = vmatpush.msra.mxu0 %v374
      %454 = vmatpush.msra.mxu0 %v371
      %455 = vmatpush.msra.mxu0 %v368
      %456 = vmatpush.msra.mxu0 %v365
      %457 = vmatpush.msra.mxu0 %v362
      %458 = vmatpush.msra.mxu0 %v359
      %459 = vmatpush.msra.mxu0 %v356
      %460 = vmatpush.msra.mxu0 %v353
      %461 = vmatpush.msra.mxu0 %v350
      %462 = vmatpush.msra.mxu0 %v347
      %463 = vmatpush.msra.mxu0 %v344
      %464 = vmatpush.msra.mxu0 %v341
      %465 = vmatpush.msra.mxu0 %v338
      %466 = vmatpush.msra.mxu0 %v335
      %467 = vmatpush.msra.mxu0 %v332
      %468 = vmatmul.f32.gmra.mxu0 %v425
      %v469 = vpop.f32.mrf.mxu0
      %v470 = vadd.f32 0.0, %v469
      %471 = vmatmul.f32.gmra.mxu0 %v430
      %v472 = vpop.f32.mrf.mxu0
      %v473 = vadd.f32 0.0, %v472
      %474 = vmatmul.f32.gmra.mxu0 %v429
      %v475 = vpop.f32.mrf.mxu0
      %v476 = vadd.f32 0.0, %v475
      %477 = vdwg.mxu0
      %478 = vmatpush.msra.mxu0 0.0
      %479 = vmatpush.msra.mxu0 0.0
      %480 = vmatpush.msra.mxu0 0.0
      %481 = vmatpush.msra.mxu0 0.0
      %482 = vmatpush.msra.mxu0 %v444
      %483 = vmatpush.msra.mxu0 %v410
      %484 = vmatpush.msra.mxu0 %v407
      %485 = vmatpush.msra.mxu0 %v404
      %486 = vmatpush.msra.mxu0 %v401
      %487 = vmatpush.msra.mxu0 %v398
      %488 = vmatpush.msra.mxu0 %v395
      %489 = vmatpush.msra.mxu0 %v392
      %490 = vmatpush.msra.mxu0 %v389
      %491 = vmatpush.msra.mxu0 %v386
      %492 = vmatpush.msra.mxu0 %v383
      %493 = vmatpush.msra.mxu0 %v380
      %494 = vmatmul.f32.gmra.mxu0 %v436
      %v495 = vpop.f32.mrf.mxu0
      %v496 = vadd.f32 %v470, %v495
      %497 = vmatmul.f32.gmra.mxu0 %v438
      %v498 = vpop.f32.mrf.mxu0
      %v499 = vadd.f32 %v473, %v498
      %500 = vmatmul.f32.gmra.mxu0 %v440
      %v501 = vpop.f32.mrf.mxu0
      %v502 = vadd.f32 %v476, %v501
      %503 = vdwg.mxu0
      %504 = vmatpush.msra.mxu0 %v378
      %505 = vmatpush.msra.mxu0 %v375
      %506 = vmatpush.msra.mxu0 %v372
      %507 = vmatpush.msra.mxu0 %v369
      %508 = vmatpush.msra.mxu0 %v366
      %509 = vmatpush.msra.mxu0 %v363
      %510 = vmatpush.msra.mxu0 %v360
      %511 = vmatpush.msra.mxu0 %v357
      %512 = vmatpush.msra.mxu0 %v354
      %513 = vmatpush.msra.mxu0 %v351
      %514 = vmatpush.msra.mxu0 %v348
      %515 = vmatpush.msra.mxu0 %v345
      %516 = vmatpush.msra.mxu0 %v342
      %517 = vmatpush.msra.mxu0 %v339
      %518 = vmatpush.msra.mxu0 %v336
      %519 = vmatpush.msra.mxu0 %v333
      %520 = vmatmul.f32.gmra.mxu0 %v425
      %v521 = vpop.f32.mrf.mxu0
      %v522 = vadd.f32 0.0, %v521
      %523 = vmatmul.f32.gmra.mxu0 %v430
      %v524 = vpop.f32.mrf.mxu0
      %v525 = vadd.f32 0.0, %v524
      %526 = vmatmul.f32.gmra.mxu0 %v429
      %v527 = vpop.f32.mrf.mxu0
      %v528 = vadd.f32 0.0, %v527
      %529 = vdwg.mxu0
      %530 = vmatpush.msra.mxu0 0.0
      %531 = vmatpush.msra.mxu0 0.0
      %532 = vmatpush.msra.mxu0 0.0
      %533 = vmatpush.msra.mxu0 0.0
      %534 = vmatpush.msra.mxu0 %v447
      %535 = vmatpush.msra.mxu0 %v411
      %536 = vmatpush.msra.mxu0 %v408
      %537 = vmatpush.msra.mxu0 %v405
      %538 = vmatpush.msra.mxu0 %v402
      %539 = vmatpush.msra.mxu0 %v399
      %540 = vmatpush.msra.mxu0 %v396
      %541 = vmatpush.msra.mxu0 %v393
      %542 = vmatpush.msra.mxu0 %v390
      %543 = vmatpush.msra.mxu0 %v387
      %544 = vmatpush.msra.mxu0 %v384
      %545 = vmatpush.msra.mxu0 %v381
      %546 = vmatmul.f32.gmra.mxu0 %v436
      %v547 = vpop.f32.mrf.mxu0
      %v548 = vadd.f32 %v522, %v547
      %549 = vmatmul.f32.gmra.mxu0 %v438
      %v550 = vpop.f32.mrf.mxu0
      %v551 = vadd.f32 %v525, %v550
      %552 = vmatmul.f32.gmra.mxu0 %v440
      %v553 = vpop.f32.mrf.mxu0
      %v554 = vadd.f32 %v528, %v553
      %555 = vdwg.mxu0
      %556 = vmatpush.msra.mxu0 %v379
      %557 = vmatpush.msra.mxu0 %v376
      %558 = vmatpush.msra.mxu0 %v373
      %559 = vmatpush.msra.mxu0 %v370
      %560 = vmatpush.msra.mxu0 %v367
      %561 = vmatpush.msra.mxu0 %v364
      %562 = vmatpush.msra.mxu0 %v361
      %563 = vmatpush.msra.mxu0 %v358
      %564 = vmatpush.msra.mxu0 %v355
      %565 = vmatpush.msra.mxu0 %v352
      %566 = vmatpush.msra.mxu0 %v349
      %567 = vmatpush.msra.mxu0 %v346
      %568 = vmatpush.msra.mxu0 %v343
      %569 = vmatpush.msra.mxu0 %v340
      %570 = vmatpush.msra.mxu0 %v337
      %571 = vmatpush.msra.mxu0 %v334
      %572 = vmatmul.f32.gmra.mxu0 %v425
      %v573 = vpop.f32.mrf.mxu0
      %v574 = vadd.f32 0.0, %v573
      %575 = vmatmul.f32.gmra.mxu0 %v430
      %v576 = vpop.f32.mrf.mxu0
      %v577 = vadd.f32 0.0, %v576
      %578 = vmatmul.f32.gmra.mxu0 %v429
      %v579 = vpop.f32.mrf.mxu0
      %v580 = vadd.f32 0.0, %v579
      %581 = vdwg.mxu0
      %582 = vmatpush.msra.mxu0 0.0
      %583 = vmatpush.msra.mxu0 0.0
      %584 = vmatpush.msra.mxu0 0.0
      %585 = vmatpush.msra.mxu0 0.0
      %586 = vmatpush.msra.mxu0 %v450
      %587 = vmatpush.msra.mxu0 %v412
      %588 = vmatpush.msra.mxu0 %v409
      %589 = vmatpush.msra.mxu0 %v406
      %590 = vmatpush.msra.mxu0 %v403
      %591 = vmatpush.msra.mxu0 %v400
      %592 = vmatpush.msra.mxu0 %v397
      %593 = vmatpush.msra.mxu0 %v394
      %594 = vmatpush.msra.mxu0 %v391
      %595 = vmatpush.msra.mxu0 %v388
      %596 = vmatpush.msra.mxu0 %v385
      %597 = vmatpush.msra.mxu0 %v382
      %598 = vmatmul.f32.gmra.mxu0 %v436
      %v599 = vpop.f32.mrf.mxu0
      %v600 = vadd.f32 %v574, %v599
      %601 = vmatmul.f32.gmra.mxu0 %v438
      %v602 = vpop.f32.mrf.mxu0
      %v603 = vadd.f32 %v577, %v602
      %604 = vmatmul.f32.gmra.mxu0 %v440
      %v605 = vpop.f32.mrf.mxu0
      %v606 = vadd.f32 %v580, %v605
      %607 = vdwg.mxu0
      %v609 = vsel %vm230, %v238, 0
      %v611 = vsel %vm230, %v240, 0
      %v614 = vsel %vm230, %v242, 0
      %v617 = vsel %vm442, %v324, 0
      %v620 = vsel %vm442, %v325, 0
      %v623 = vsel %vm442, %v326, 0
      %625 = vmatpush.msra.mxu0 %v288
      %626 = vmatpush.msra.mxu0 %v285
      %627 = vmatpush.msra.mxu0 %v282
      %628 = vmatpush.msra.mxu0 %v279
      %629 = vmatpush.msra.mxu0 %v276
      %630 = vmatpush.msra.mxu0 %v273
      %631 = vmatpush.msra.mxu0 %v270
      %632 = vmatpush.msra.mxu0 %v267
      %633 = vmatpush.msra.mxu0 %v264
      %634 = vmatpush.msra.mxu0 %v261
      %635 = vmatpush.msra.mxu0 %v258
      %636 = vmatpush.msra.mxu0 %v255
      %637 = vmatpush.msra.mxu0 %v252
      %638 = vmatpush.msra.mxu0 %v249
      %639 = vmatpush.msra.mxu0 %v246
      %640 = vmatpush.msra.mxu0 %v243
      %641 = vmatmul.f32.gmra.mxu0 %v237
      %v642 = vpop.f32.mrf.mxu0
      %v643 = vadd.f32 %v496, %v642
      %644 = vmatmul.f32.gmra.mxu0 %v239
      %v645 = vpop.f32.mrf.mxu0
      %v646 = vadd.f32 %v499, %v645
      %647 = vmatmul.f32.gmra.mxu0 %v241
      %v648 = vpop.f32.mrf.mxu0
      %v649 = vadd.f32 %v502, %v648
      %650 = vdwg.mxu0
      %651 = vmatpush.msra.mxu0 0.0
      %652 = vmatpush.msra.mxu0 0.0
      %653 = vmatpush.msra.mxu0 0.0
      %654 = vmatpush.msra.mxu0 0.0
      %655 = vmatpush.msra.mxu0 %v617
      %656 = vmatpush.msra.mxu0 %v321
      %657 = vmatpush.msra.mxu0 %v318
      %658 = vmatpush.msra.mxu0 %v315
      %659 = vmatpush.msra.mxu0 %v312
      %660 = vmatpush.msra.mxu0 %v309
      %661 = vmatpush.msra.mxu0 %v306
      %662 = vmatpush.msra.mxu0 %v303
      %663 = vmatpush.msra.mxu0 %v300
      %664 = vmatpush.msra.mxu0 %v297
      %665 = vmatpush.msra.mxu0 %v294
      %666 = vmatpush.msra.mxu0 %v291
      %667 = vmatmul.f32.gmra.mxu0 %v609
      %v668 = vpop.f32.mrf.mxu0
      %v669 = vadd.f32 %v643, %v668
      %670 = vmatmul.f32.gmra.mxu0 %v611
      %v671 = vpop.f32.mrf.mxu0
      %v672 = vadd.f32 %v646, %v671
      %673 = vmatmul.f32.gmra.mxu0 %v614
      %v674 = vpop.f32.mrf.mxu0
      %v675 = vadd.f32 %v649, %v674
      %676 = vdwg.mxu0
      %677 = vmatpush.msra.mxu0 %v289
      %678 = vmatpush.msra.mxu0 %v286
      %679 = vmatpush.msra.mxu0 %v283
      %680 = vmatpush.msra.mxu0 %v280
      %681 = vmatpush.msra.mxu0 %v277
      %682 = vmatpush.msra.mxu0 %v274
      %683 = vmatpush.msra.mxu0 %v271
      %684 = vmatpush.msra.mxu0 %v268
      %685 = vmatpush.msra.mxu0 %v265
      %686 = vmatpush.msra.mxu0 %v262
      %687 = vmatpush.msra.mxu0 %v259
      %688 = vmatpush.msra.mxu0 %v256
      %689 = vmatpush.msra.mxu0 %v253
      %690 = vmatpush.msra.mxu0 %v250
      %691 = vmatpush.msra.mxu0 %v247
      %692 = vmatpush.msra.mxu0 %v244
      %693 = vmatmul.f32.gmra.mxu0 %v237
      %v694 = vpop.f32.mrf.mxu0
      %v695 = vadd.f32 %v548, %v694
      %696 = vmatmul.f32.gmra.mxu0 %v239
      %v697 = vpop.f32.mrf.mxu0
      %v698 = vadd.f32 %v551, %v697
      %699 = vmatmul.f32.gmra.mxu0 %v241
      %v700 = vpop.f32.mrf.mxu0
      %v701 = vadd.f32 %v554, %v700
      %702 = vdwg.mxu0
      %703 = vmatpush.msra.mxu0 0.0
      %704 = vmatpush.msra.mxu0 0.0
      %705 = vmatpush.msra.mxu0 0.0
      %706 = vmatpush.msra.mxu0 0.0
      %707 = vmatpush.msra.mxu0 %v620
      %708 = vmatpush.msra.mxu0 %v322
      %709 = vmatpush.msra.mxu0 %v319
      %710 = vmatpush.msra.mxu0 %v316
      %711 = vmatpush.msra.mxu0 %v313
      %712 = vmatpush.msra.mxu0 %v310
      %713 = vmatpush.msra.mxu0 %v307
      %714 = vmatpush.msra.mxu0 %v304
      %715 = vmatpush.msra.mxu0 %v301
      %716 = vmatpush.msra.mxu0 %v298
      %717 = vmatpush.msra.mxu0 %v295
      %718 = vmatpush.msra.mxu0 %v292
      %719 = vmatmul.f32.gmra.mxu0 %v609
      %v720 = vpop.f32.mrf.mxu0
      %v721 = vadd.f32 %v695, %v720
      %722 = vmatmul.f32.gmra.mxu0 %v611
      %v723 = vpop.f32.mrf.mxu0
      %v724 = vadd.f32 %v698, %v723
      %725 = vmatmul.f32.gmra.mxu0 %v614
      %v726 = vpop.f32.mrf.mxu0
      %v727 = vadd.f32 %v701, %v726
      %728 = vdwg.mxu0
      %729 = vmatpush.msra.mxu0 %v290
      %730 = vmatpush.msra.mxu0 %v287
      %731 = vmatpush.msra.mxu0 %v284
      %732 = vmatpush.msra.mxu0 %v281
      %733 = vmatpush.msra.mxu0 %v278
      %734 = vmatpush.msra.mxu0 %v275
      %735 = vmatpush.msra.mxu0 %v272
      %736 = vmatpush.msra.mxu0 %v269
      %737 = vmatpush.msra.mxu0 %v266
      %738 = vmatpush.msra.mxu0 %v263
      %739 = vmatpush.msra.mxu0 %v260
      %740 = vmatpush.msra.mxu0 %v257
      %741 = vmatpush.msra.mxu0 %v254
      %742 = vmatpush.msra.mxu0 %v251
      %743 = vmatpush.msra.mxu0 %v248
      %744 = vmatpush.msra.mxu0 %v245
      %745 = vmatmul.f32.gmra.mxu0 %v237
      %v746 = vpop.f32.mrf.mxu0
      %v747 = vadd.f32 %v600, %v746
      %748 = vmatmul.f32.gmra.mxu0 %v239
      %v749 = vpop.f32.mrf.mxu0
      %v750 = vadd.f32 %v603, %v749
      %751 = vmatmul.f32.gmra.mxu0 %v241
      %v752 = vpop.f32.mrf.mxu0
      %v753 = vadd.f32 %v606, %v752
      %754 = vdwg.mxu0
      %755 = vmatpush.msra.mxu0 0.0
      %756 = vmatpush.msra.mxu0 0.0
      %757 = vmatpush.msra.mxu0 0.0
      %758 = vmatpush.msra.mxu0 0.0
      %759 = vmatpush.msra.mxu0 %v623
      %760 = vmatpush.msra.mxu0 %v323
      %761 = vmatpush.msra.mxu0 %v320
      %762 = vmatpush.msra.mxu0 %v317
      %763 = vmatpush.msra.mxu0 %v314
      %764 = vmatpush.msra.mxu0 %v311
      %765 = vmatpush.msra.mxu0 %v308
      %766 = vmatpush.msra.mxu0 %v305
      %767 = vmatpush.msra.mxu0 %v302
      %768 = vmatpush.msra.mxu0 %v299
      %769 = vmatpush.msra.mxu0 %v296
      %770 = vmatpush.msra.mxu0 %v293
      %771 = vmatmul.f32.gmra.mxu0 %v609
      %v772 = vpop.f32.mrf.mxu0
      %v773 = vadd.f32 %v747, %v772
      %774 = vmatmul.f32.gmra.mxu0 %v611
      %v775 = vpop.f32.mrf.mxu0
      %v776 = vadd.f32 %v750, %v775
      %777 = vmatmul.f32.gmra.mxu0 %v614
      %v778 = vpop.f32.mrf.mxu0
      %v779 = vadd.f32 %v753, %v778
      %780 = vdwg.mxu0
      %v781 = vld [vmem:[#allocation2] sm:$0xfc]
      %v782 = vld [vmem:[#allocation2 + $0x8] sm:$0xfc]
      %v783 = vld [vmem:[#allocation2 + $0x20] sm:$0x3f]
      %v784 = vld [vmem:[#allocation2 + $0x28] sm:$0x3f]
      %s785 = scalar_lea.vmem %s1, 1344
      %v786 = vld [vmem:[%s785] sm:$0xff]
      %v787 = vld [vmem:[%s785 + $0x8] sm:$0xff]
      %v788 = vld [vmem:[%s785 + $0x10] sm:$0xff]
      %v789 = vld [vmem:[%s785 + $0x18] sm:$0xff]
      %v790 = vld [vmem:[%s785 + $0x20] sm:$0xff]
      %v791 = vld [vmem:[%s785 + $0x28] sm:$0xff]
      %v792 = vld [vmem:[%s785 + $0x30] sm:$0xff]
      %v793 = vld [vmem:[%s785 + $0x38] sm:$0xff]
      %v794 = vld [vmem:[%s785 + $0x40] sm:$0xff]
      %v795 = vld [vmem:[%s785 + $0x48] sm:$0xff]
      %v796 = vld [vmem:[%s785 + $0x50] sm:$0xff]
      %v797 = vld [vmem:[%s785 + $0x58] sm:$0xff]
      %v798 = vld [vmem:[%s785 + $0x60] sm:$0xff]
      %v799 = vld [vmem:[%s785 + $0x68] sm:$0xff]
      %v800 = vld [vmem:[%s785 + $0x70] sm:$0xff]
      %v801 = vld [vmem:[%s785 + $0x78] sm:$0xff]
      %v802 = vld [vmem:[%s785 + $0x80] sm:$0xff]
      %v803 = vld [vmem:[%s785 + $0x88] sm:$0xff]
      %v804 = vld [vmem:[%s785 + $0x90] sm:$0xff]
      %v805 = vld [vmem:[%s785 + $0x98] sm:$0xff]
      %v806 = vld [vmem:[%s785 + $0xa0] sm:$0xff]
      %v807 = vld [vmem:[%s785 + $0xa8] sm:$0xff]
      %v808 = vld [vmem:[%s785 + $0xb0] sm:$0xff]
      %v809 = vld [vmem:[%s785 + $0xb8] sm:$0xff]
      %v810 = vld [vmem:[%s785 + $0xc0] sm:$0xff]
      %v811 = vld [vmem:[%s785 + $0xc8] sm:$0xff]
      %v812 = vld [vmem:[%s785 + $0xd0] sm:$0xff]
      %v813 = vld [vmem:[%s785 + $0xd8] sm:$0xff]
      %v814 = vld [vmem:[%s785 + $0xe0] sm:$0xff]
      %v815 = vld [vmem:[%s785 + $0xe8] sm:$0xff]
      %v816 = vld [vmem:[%s785 + $0xf0] sm:$0xff]
      %v817 = vld [vmem:[%s785 + $0xf8] sm:$0xff]
      %v818 = vld [vmem:[%s785 + $0x100] sm:$0xff]
      %v819 = vld [vmem:[%s785 + $0x108] sm:$0xff]
      %v820 = vld [vmem:[%s785 + $0x110] sm:$0xff]
      %v821 = vld [vmem:[%s785 + $0x118] sm:$0xff]
      %v822 = vld [vmem:[%s785 + $0x120] sm:$0xff]
      %v823 = vld [vmem:[%s785 + $0x128] sm:$0xff]
      %v824 = vld [vmem:[%s785 + $0x130] sm:$0xff]
      %v825 = vld [vmem:[%s785 + $0x138] sm:$0xff]
      %v826 = vld [vmem:[%s785 + $0x140] sm:$0xff]
      %v827 = vld [vmem:[%s785 + $0x148] sm:$0xff]
      %v828 = vld [vmem:[%s785 + $0x150] sm:$0xff]
      %v829 = vld [vmem:[%s785 + $0x158] sm:$0xff]
      %v830 = vld [vmem:[%s785 + $0x160] sm:$0xff]
      %v831 = vld [vmem:[%s785 + $0x168] sm:$0xff]
      %v832 = vld [vmem:[%s785 + $0x170] sm:$0xff]
      %v833 = vld [vmem:[%s785 + $0x178] sm:$0xff]
      %v834 = vld [vmem:[%s785 + $0x180] sm:$0xff]
      %v835 = vld [vmem:[%s785 + $0x188] sm:$0xff]
      %v836 = vld [vmem:[%s785 + $0x190] sm:$0xff]
      %v837 = vld [vmem:[%s785 + $0x198] sm:$0xff]
      %v838 = vld [vmem:[%s785 + $0x1a0] sm:$0xff]
      %v839 = vld [vmem:[%s785 + $0x1a8] sm:$0xff]
      %v840 = vld [vmem:[%s785 + $0x1b0] sm:$0xff]
      %v841 = vld [vmem:[%s785 + $0x1b8] sm:$0xff]
      %v842 = vld [vmem:[%s785 + $0x1c0] sm:$0xff]
      %v843 = vld [vmem:[%s785 + $0x1c8] sm:$0xff]
      %v844 = vld [vmem:[%s785 + $0x1d0] sm:$0xff]
      %v845 = vld [vmem:[%s785 + $0x1d8] sm:$0xff]
      %v846 = vld [vmem:[%s785 + $0x1e0] sm:$0xff]
      %v847 = vld [vmem:[%s785 + $0x1e8] sm:$0xff]
      %v848 = vld [vmem:[%s785 + $0x1f0] sm:$0xff]
      %v849 = vld [vmem:[%s785 + $0x1f8] sm:$0xff]
      %v850 = vld [vmem:[%s785 + $0x200] sm:$0xff]
      %v851 = vld [vmem:[%s785 + $0x208] sm:$0xff]
      %v852 = vld [vmem:[%s785 + $0x210] sm:$0xff]
      %v853 = vld [vmem:[%s785 + $0x218] sm:$0xff]
      %v854 = vld [vmem:[%s785 + $0x220] sm:$0xff]
      %v855 = vld [vmem:[%s785 + $0x228] sm:$0xff]
      %v856 = vld [vmem:[%s785 + $0x230] sm:$0xff]
      %v857 = vld [vmem:[%s785 + $0x238] sm:$0xff]
      %v858 = vld [vmem:[%s785 + $0x240] sm:$0xff]
      %v859 = vld [vmem:[%s785 + $0x248] sm:$0xff]
      %v860 = vld [vmem:[%s785 + $0x250] sm:$0xff]
      %v861 = vld [vmem:[%s785 + $0x258] sm:$0xff]
      %v862 = vld [vmem:[%s785 + $0x260] sm:$0xff]
      %v863 = vld [vmem:[%s785 + $0x268] sm:$0xff]
      %v864 = vld [vmem:[%s785 + $0x270] sm:$0xff]
      %v865 = vld [vmem:[%s785 + $0x278] sm:$0xff]
      %v866 = vld [vmem:[%s785 + $0x280] sm:$0xff]
      %v867 = vld [vmem:[%s785 + $0x288] sm:$0xf]
      %v868 = vld [vmem:[%s785 + $0x290] sm:$0xf]
      %v869 = vld [vmem:[%s785 + $0x298] sm:$0xf]
      %vm874 = vcmask 1045504
      %v875 = vrot.slane %v781, 2
      %v876 = vrot.slane %v239, 2
      %v877 = vsel %vm874, %v875, %v876
      %v878 = vrot.slane %v782, 2
      %v879 = vrot.slane %v240, 2
      %v880 = vsel %vm874, %v878, %v879
      %v881 = vrot.slane %v783, 2
      %v882 = vsel %vm874, %v876, %v881
      %v883 = vrot.slane %v784, 2
      %v884 = vsel %vm874, %v879, %v883
      %v888 = vsel %vm230, %v880, 0
      %v890 = vsel %vm230, %v884, 0
      %v892 = vsel %vm230, %v883, 0
      %v895 = vsel %vm442, %v867, 0
      %v898 = vsel %vm442, %v868, 0
      %v901 = vsel %vm442, %v869, 0
      %903 = vmatpush.msra.mxu0 %v831
      %904 = vmatpush.msra.mxu0 %v828
      %905 = vmatpush.msra.mxu0 %v825
      %906 = vmatpush.msra.mxu0 %v822
      %907 = vmatpush.msra.mxu0 %v819
      %908 = vmatpush.msra.mxu0 %v816
      %909 = vmatpush.msra.mxu0 %v813
      %910 = vmatpush.msra.mxu0 %v810
      %911 = vmatpush.msra.mxu0 %v807
      %912 = vmatpush.msra.mxu0 %v804
      %913 = vmatpush.msra.mxu0 %v801
      %914 = vmatpush.msra.mxu0 %v798
      %915 = vmatpush.msra.mxu0 %v795
      %916 = vmatpush.msra.mxu0 %v792
      %917 = vmatpush.msra.mxu0 %v789
      %918 = vmatpush.msra.mxu0 %v786
      %919 = vmatmul.f32.gmra.mxu0 %v877
      %v920 = vpop.f32.mrf.mxu0
      %v921 = vadd.f32 0.0, %v920
      %922 = vmatmul.f32.gmra.mxu0 %v882
      %v923 = vpop.f32.mrf.mxu0
      %v924 = vadd.f32 0.0, %v923
      %925 = vmatmul.f32.gmra.mxu0 %v881
      %v926 = vpop.f32.mrf.mxu0
      %v927 = vadd.f32 0.0, %v926
      %928 = vdwg.mxu0
      %929 = vmatpush.msra.mxu0 0.0
      %930 = vmatpush.msra.mxu0 0.0
      %931 = vmatpush.msra.mxu0 0.0
      %932 = vmatpush.msra.mxu0 0.0
      %933 = vmatpush.msra.mxu0 %v895
      %934 = vmatpush.msra.mxu0 %v864
      %935 = vmatpush.msra.mxu0 %v861
      %936 = vmatpush.msra.mxu0 %v858
      %937 = vmatpush.msra.mxu0 %v855
      %938 = vmatpush.msra.mxu0 %v852
      %939 = vmatpush.msra.mxu0 %v849
      %940 = vmatpush.msra.mxu0 %v846
      %941 = vmatpush.msra.mxu0 %v843
      %942 = vmatpush.msra.mxu0 %v840
      %943 = vmatpush.msra.mxu0 %v837
      %944 = vmatpush.msra.mxu0 %v834
      %945 = vmatmul.f32.gmra.mxu0 %v888
      %v946 = vpop.f32.mrf.mxu0
      %v947 = vadd.f32 %v921, %v946
      %948 = vmatmul.f32.gmra.mxu0 %v890
      %v949 = vpop.f32.mrf.mxu0
      %v950 = vadd.f32 %v924, %v949
      %951 = vmatmul.f32.gmra.mxu0 %v892
      %v952 = vpop.f32.mrf.mxu0
      %v953 = vadd.f32 %v927, %v952
      %954 = vdwg.mxu0
      %955 = vmatpush.msra.mxu0 %v832
      %956 = vmatpush.msra.mxu0 %v829
      %957 = vmatpush.msra.mxu0 %v826
      %958 = vmatpush.msra.mxu0 %v823
      %959 = vmatpush.msra.mxu0 %v820
      %960 = vmatpush.msra.mxu0 %v817
      %961 = vmatpush.msra.mxu0 %v814
      %962 = vmatpush.msra.mxu0 %v811
      %963 = vmatpush.msra.mxu0 %v808
      %964 = vmatpush.msra.mxu0 %v805
      %965 = vmatpush.msra.mxu0 %v802
      %966 = vmatpush.msra.mxu0 %v799
      %967 = vmatpush.msra.mxu0 %v796
      %968 = vmatpush.msra.mxu0 %v793
      %969 = vmatpush.msra.mxu0 %v790
      %970 = vmatpush.msra.mxu0 %v787
      %971 = vmatmul.f32.gmra.mxu0 %v877
      %v972 = vpop.f32.mrf.mxu0
      %v973 = vadd.f32 0.0, %v972
      %974 = vmatmul.f32.gmra.mxu0 %v882
      %v975 = vpop.f32.mrf.mxu0
      %v976 = vadd.f32 0.0, %v975
      %977 = vmatmul.f32.gmra.mxu0 %v881
      %v978 = vpop.f32.mrf.mxu0
      %v979 = vadd.f32 0.0, %v978
      %980 = vdwg.mxu0
      %981 = vmatpush.msra.mxu0 0.0
      %982 = vmatpush.msra.mxu0 0.0
      %983 = vmatpush.msra.mxu0 0.0
      %984 = vmatpush.msra.mxu0 0.0
      %985 = vmatpush.msra.mxu0 %v898
      %986 = vmatpush.msra.mxu0 %v865
      %987 = vmatpush.msra.mxu0 %v862
      %988 = vmatpush.msra.mxu0 %v859
      %989 = vmatpush.msra.mxu0 %v856
      %990 = vmatpush.msra.mxu0 %v853
      %991 = vmatpush.msra.mxu0 %v850
      %992 = vmatpush.msra.mxu0 %v847
      %993 = vmatpush.msra.mxu0 %v844
      %994 = vmatpush.msra.mxu0 %v841
      %995 = vmatpush.msra.mxu0 %v838
      %996 = vmatpush.msra.mxu0 %v835
      %997 = vmatmul.f32.gmra.mxu0 %v888
      %v998 = vpop.f32.mrf.mxu0
      %v999 = vadd.f32 %v973, %v998
      %1000 = vmatmul.f32.gmra.mxu0 %v890
      %v1001 = vpop.f32.mrf.mxu0
      %v1002 = vadd.f32 %v976, %v1001
      %1003 = vmatmul.f32.gmra.mxu0 %v892
      %v1004 = vpop.f32.mrf.mxu0
      %v1005 = vadd.f32 %v979, %v1004
      %1006 = vdwg.mxu0
      %1007 = vmatpush.msra.mxu0 %v833
      %1008 = vmatpush.msra.mxu0 %v830
      %1009 = vmatpush.msra.mxu0 %v827
      %1010 = vmatpush.msra.mxu0 %v824
      %1011 = vmatpush.msra.mxu0 %v821
      %1012 = vmatpush.msra.mxu0 %v818
      %1013 = vmatpush.msra.mxu0 %v815
      %1014 = vmatpush.msra.mxu0 %v812
      %1015 = vmatpush.msra.mxu0 %v809
      %1016 = vmatpush.msra.mxu0 %v806
      %1017 = vmatpush.msra.mxu0 %v803
      %1018 = vmatpush.msra.mxu0 %v800
      %1019 = vmatpush.msra.mxu0 %v797
      %1020 = vmatpush.msra.mxu0 %v794
      %1021 = vmatpush.msra.mxu0 %v791
      %1022 = vmatpush.msra.mxu0 %v788
      %1023 = vmatmul.f32.gmra.mxu0 %v877
      %v1024 = vpop.f32.mrf.mxu0
      %v1025 = vadd.f32 0.0, %v1024
      %1026 = vmatmul.f32.gmra.mxu0 %v882
      %v1027 = vpop.f32.mrf.mxu0
      %v1028 = vadd.f32 0.0, %v1027
      %1029 = vmatmul.f32.gmra.mxu0 %v881
      %v1030 = vpop.f32.mrf.mxu0
      %v1031 = vadd.f32 0.0, %v1030
      %1032 = vdwg.mxu0
      %1033 = vmatpush.msra.mxu0 0.0
      %1034 = vmatpush.msra.mxu0 0.0
      %1035 = vmatpush.msra.mxu0 0.0
      %1036 = vmatpush.msra.mxu0 0.0
      %1037 = vmatpush.msra.mxu0 %v901
      %1038 = vmatpush.msra.mxu0 %v866
      %1039 = vmatpush.msra.mxu0 %v863
      %1040 = vmatpush.msra.mxu0 %v860
      %1041 = vmatpush.msra.mxu0 %v857
      %1042 = vmatpush.msra.mxu0 %v854
      %1043 = vmatpush.msra.mxu0 %v851
      %1044 = vmatpush.msra.mxu0 %v848
      %1045 = vmatpush.msra.mxu0 %v845
      %1046 = vmatpush.msra.mxu0 %v842
      %1047 = vmatpush.msra.mxu0 %v839
      %1048 = vmatpush.msra.mxu0 %v836
      %1049 = vmatmul.f32.gmra.mxu0 %v888
      %v1050 = vpop.f32.mrf.mxu0
      %v1051 = vadd.f32 %v1025, %v1050
      %1052 = vmatmul.f32.gmra.mxu0 %v890
      %v1053 = vpop.f32.mrf.mxu0
      %v1054 = vadd.f32 %v1028, %v1053
      %1055 = vmatmul.f32.gmra.mxu0 %v892
      %v1056 = vpop.f32.mrf.mxu0
      %v1057 = vadd.f32 %v1031, %v1056
      %1058 = vdwg.mxu0
      %v1059 = vadd.f32 %v669, %v947
      %v1060 = vadd.f32 %v721, %v999
      %v1061 = vadd.f32 %v773, %v1051
      %v1062 = vadd.f32 %v672, %v950
      %v1063 = vadd.f32 %v724, %v1002
      %v1064 = vadd.f32 %v776, %v1054
      %v1065 = vadd.f32 %v675, %v953
      %v1066 = vadd.f32 %v727, %v1005
      %v1067 = vadd.f32 %v779, %v1057
      %1068 = vst [vmem:[#allocation3] sm:$0xff] %v1059
      %1069 = vst [vmem:[#allocation3 + $0x8] sm:$0xff] %v1060
      %vm1070 = vcmask 359424
      %1071 = vst.msk [vmem:[#allocation3 + $0x10] sm:$0xff] %vm1070, %v1061
      %1072 = vst [vmem:[#allocation3 + $0x18] sm:$0xff] %v1062
      %1073 = vst [vmem:[#allocation3 + $0x20] sm:$0xff] %v1063
      %1074 = vst.msk [vmem:[#allocation3 + $0x28] sm:$0xff] %vm1070, %v1064
      %1075 = vst [vmem:[#allocation3 + $0x30] sm:$0xf] %v1065
      %1076 = vst [vmem:[#allocation3 + $0x38] sm:$0xf] %v1066
      %vm1077 = vcmask 355328
      %1078 = vst.msk [vmem:[#allocation3 + $0x40] sm:$0xf] %vm1077, %v1067
      %v1079 = vld [vmem:[#allocation3] sm:$0xff]
      %v1080 = vld [vmem:[#allocation3 + $0x8] sm:$0xff]
      %v1081 = vld [vmem:[#allocation3 + $0x18] sm:$0xff]
      %v1082 = vld [vmem:[#allocation3 + $0x20] sm:$0xff]
      %v1083 = vld [vmem:[#allocation3 + $0x30] sm:$0xf]
      %v1084 = vld [vmem:[#allocation3 + $0x38] sm:$0xf]
      %v1085 = vld [vmem:[#allocation3 + $0x10] sm:$0xff]
      %v1086 = vld [vmem:[#allocation3 + $0x28] sm:$0xff]
      %v1087 = vld [vmem:[#allocation3 + $0x40] sm:$0xf]
      %1094 = vrot.lane.b32.xlu0 %v1080, 106
      %v1095 = vpop.permute.xlu0 %1094
      %1096 = vrot.lane.b32.xlu0 %v1085, 106
      %v1097 = vpop.permute.xlu0 %1096
      %1098 = vrot.lane.b32.xlu0 %v1082, 106
      %v1099 = vpop.permute.xlu0 %1098
      %1100 = vrot.lane.b32.xlu0 %v1086, 106
      %v1101 = vpop.permute.xlu0 %1100
      %1102 = vrot.lane.b32.xlu0 %v1084, 106
      %v1103 = vpop.permute.xlu0 %1102
      %1104 = vrot.lane.b32.xlu0 %v1087, 106
      %v1105 = vpop.permute.xlu0 %1104
      %vm1106 = vcmask 867328
      %v1107 = vsel %vm1106, %v1095, %v1097
      %v1108 = vsel %vm1106, %v1099, %v1101
      %v1109 = vsel %vm1106, %v1103, %v1105
      %v1116 = vmax.f32 %v1079, %v1107
      %v1117 = vmax.f32 %v1080, %v1097
      %v1118 = vmax.f32 %v1081, %v1108
      %v1119 = vmax.f32 %v1082, %v1101
      %v1120 = vmax.f32 %v1083, %v1109
      %v1121 = vmax.f32 %v1084, %v1105
      %v1122 = vld [vmem:[%s2] sm:$0x3]
      %v1124 = vperm.slane %v1122, 0
      %v1125 = vperm.slane %v1122, 1
      %v1128 = vadd.f32 %v1116, %v1124
      %v1129 = vadd.f32 %v1117, %v1125
      %v1130 = vadd.f32 %v1118, %v1124
      %v1131 = vadd.f32 %v1119, %v1125
      %v1132 = vadd.f32 %v1120, %v1124
      %v1133 = vadd.f32 %v1121, %v1125
      %v1134 = vmax.f32 %v1128, 0.0
      %v1135 = vmax.f32 %v1129, 0.0
      %v1136 = vmax.f32 %v1130, 0.0
      %v1137 = vmax.f32 %v1131, 0.0
      %v1138 = vmax.f32 %v1132, 0.0
      %v1139 = vmax.f32 %v1133, 0.0
      %1140 = vst [vmem:[%s170] sm:$0xff] %v1134
      %vm1141 = vcmask 179200
      %1142 = vst.msk [vmem:[%s170 + $0x8] sm:$0xff] %vm1141, %v1135
      %1143 = vst [vmem:[%s170 + $0x10] sm:$0xff] %v1136
      %1144 = vst.msk [vmem:[%s170 + $0x18] sm:$0xff] %vm1141, %v1137
      %1145 = vst [vmem:[%s170 + $0x20] sm:$0xf] %v1138
      %vm1146 = vcmask 175104
      %1147 = vst.msk [vmem:[%s170 + $0x28] sm:$0xf] %vm1146, %v1139
      %p1148 = scmp.lt.s32.totalorder %s14, 1
      %s1149 = scalar_select %p1148, %s14, 1
      %s1150 = smul.addr %s1149, 6
      %s1151 = smul.addr %s1150, 8
      %s1152 = scalar_lea.vmem %s3, %s1151
      // Predicated region
      $region33: #{net_forward.5} parent=31 // pred_check
        %p1153 = pneg %p100
      $region34: #{net_forward.5} parent=31 // pred_check_branch
        %1155 = sbr.rel (%p1153) target = $region36
      $region35: #{net_forward.5} parent=31 // pred_region
        _
      $region36: #{net_forward.5} parent=31 // pred_fallthru
        _
    $region32: #{net_forward.5} parent=5 // pred_fallthru
      _
    %p1156 = scmp.le.s32.totalorder 2, %s9
    // Predicated region
    $region37: #{net_forward.5} parent=5 // pred_check
      %p1157 = pneg %p1156
    $region38: #{net_forward.5} parent=5 // pred_check_branch
      %1159 = sbr.rel (%p1157) target = $region40
    $region39: #{net_forward.5} parent=5 // pred_region
      %s1160 = ssub.s32 %s9, 2
      // Predicated region
      $region41: #{net_forward.5} parent=39 // pred_check
        %p1161 = pneg %p106
      $region42: #{net_forward.5} parent=39 // pred_check_branch
        %1163 = sbr.rel (%p1161) target = $region44
      $region43: #{net_forward.5} parent=39 // pred_region
        %p1164 = scmp.lt.s32.totalorder %s15, 1
        %s1165 = scalar_select %p1164, %s15, 1
        %s1166 = smul.addr %s1165, 6
        %s1167 = smul.addr %s1166, 8
        %s1168 = scalar_lea.vmem %s3, %s1167
      $region44: #{net_forward.5} parent=39 // pred_fallthru
        _
    $region40: #{net_forward.5} parent=5 // pred_fallthru
      _
  $region6: #{net_forward.5} parent=0 // loop_footer
    %s13 = sadd.s32 1, %s9
  $region7: #{net_forward.5} parent=0 // loop_footer_branch
    %8 = sbr.rel target = $region3
  $region8: #{net_forward.5} parent=0 // loop_exit
    _

// kernel: net_forward.7
$region0: #{net_forward.7}
  #allocation0 [shape = 'u32[]', space=smem, size = 0x4, offset = 0x4, fixed_abs, tag = 'smem constant byte address 0x4 - core index']
  #allocation1 [shape = 'u32[72,128]{1,0:T(1,128)}', space=vmem, size = 0x9000, scoped, tag = 'internal scratch']
  %s0 = inlined_call_operand.vmem [shape: f32[2,640], index: 0, kind: input, shape index: {}]
  %s1 = inlined_call_operand.vmem [shape: f32[320,256], index: 1, kind: input, shape index: {}]
  %s2 = inlined_call_operand.vmem [shape: f32[1,256], index: 2, kind: input, shape index: {}]
  %s3 = inlined_call_operand.vmem [shape: f32[256,128], index: 3, kind: input, shape index: {}]
  %s4 = inlined_call_operand.vmem [shape: f32[1,128], index: 4, kind: input, shape index: {}]
  %s5 = inlined_call_operand.vmem [shape: f32[128,27], index: 5, kind: input, shape index: {}]
  %s6 = inlined_call_operand.vmem [shape: f32[1,27], index: 6, kind: input, shape index: {}]
  %s7 = inlined_call_operand.hbm [shape: f32[2,27], index: 7, kind: output, shape index: {}]
  %s8 = sld [smem:[#allocation0]]
  $region38: #{net_forward.7} parent=0
    _
  %s10 = ssub.s32 1, %s8
  %s11 = scalar_select 0, %s10, %s8
  $region1: #{net_forward.7} parent=0
    #allocation2 [shape = 'u8[1024]{0}', space=vmem, size = 0x400, scoped, tag = 'output window, operand 0, single buffered']
    #allocation3 [shape = 's32[1]{0}', space=sflag, size = 0x4, scoped, tag = 'scoped memory for net_forward.7']
    %12 = vsyncpa [#allocation3], 0
    // Predicated region
    $region2: #{net_forward.7} parent=1 // pred_check
      _
    $region3: #{net_forward.7} parent=1 // pred_check_branch
      %14 = sbr.rel (0) target = $region5
    $region4: #{net_forward.7} parent=1 // pred_region
      _
    $region5: #{net_forward.7} parent=1 // pred_fallthru
      _
    // Predicated region
    $region6: #{net_forward.7} parent=1 // pred_check
      _
    $region7: #{net_forward.7} parent=1 // pred_check_branch
      %16 = sbr.rel (0) target = $region9
    $region8: #{net_forward.7} parent=1 // pred_region
      _
    $region9: #{net_forward.7} parent=1 // pred_fallthru
      _
    // Predicated region
    $region10: #{net_forward.7} parent=1 // pred_check
      _
    $region11: #{net_forward.7} parent=1 // pred_check_branch
      %18 = sbr.rel (0) target = $region13
    $region12: #{net_forward.7} parent=1 // pred_region
      _
    $region13: #{net_forward.7} parent=1 // pred_fallthru
      _
    // Predicated region
    $region14: #{net_forward.7} parent=1 // pred_check
      _
    $region15: #{net_forward.7} parent=1 // pred_check_branch
      %20 = sbr.rel (0) target = $region17
    $region16: #{net_forward.7} parent=1 // pred_region
      _
    $region17: #{net_forward.7} parent=1 // pred_fallthru
      _
    // Predicated region
    $region18: #{net_forward.7} parent=1 // pred_check
      _
    $region19: #{net_forward.7} parent=1 // pred_check_branch
      %22 = sbr.rel (0) target = $region21
    $region20: #{net_forward.7} parent=1 // pred_region
      _
    $region21: #{net_forward.7} parent=1 // pred_fallthru
      _
    // Predicated region
    $region22: #{net_forward.7} parent=1 // pred_check
      _
    $region23: #{net_forward.7} parent=1 // pred_check_branch
      %24 = sbr.rel (0) target = $region25
    $region24: #{net_forward.7} parent=1 // pred_region
      _
    $region25: #{net_forward.7} parent=1 // pred_fallthru
      _
    // Predicated region
    $region26: #{net_forward.7} parent=1 // pred_check
      _
    $region27: #{net_forward.7} parent=1 // pred_check_branch
      %26 = sbr.rel (0) target = $region29
    $region28: #{net_forward.7} parent=1 // pred_region
      _
    $region29: #{net_forward.7} parent=1 // pred_fallthru
      _
    %v27 = vld [vmem:[%s0] sm:$0x3]
    %v28 = vld [vmem:[%s0] sm:$0xf]
    %30 = vrot.lane.b32.xlu0 %v28, 48
    %v31 = vpop.permute.xlu0 %30
    %v32 = vrot.slane %v31, 2
    %vm33 = vcmask 392192
    %v34 = vsel %vm33, %v31, %v32
    %v36 = vmax.f32 %v27, %v34
    %v37 = vld [vmem:[%s1] sm:$0xff]
    %v38 = vld [vmem:[%s1 + $0x8] sm:$0xff]
    %v39 = vld [vmem:[%s1 + $0x10] sm:$0xff]
    %v40 = vld [vmem:[%s1 + $0x18] sm:$0xff]
    %v41 = vld [vmem:[%s1 + $0x20] sm:$0xff]
    %v42 = vld [vmem:[%s1 + $0x28] sm:$0xff]
    %v43 = vld [vmem:[%s1 + $0x30] sm:$0xff]
    %v44 = vld [vmem:[%s1 + $0x38] sm:$0xff]
    %v45 = vld [vmem:[%s1 + $0x40] sm:$0xff]
    %v46 = vld [vmem:[%s1 + $0x48] sm:$0xff]
    %v47 = vld [vmem:[%s1 + $0x50] sm:$0xff]
    %v48 = vld [vmem:[%s1 + $0x58] sm:$0xff]
    %v49 = vld [vmem:[%s1 + $0x60] sm:$0xff]
    %v50 = vld [vmem:[%s1 + $0x68] sm:$0xff]
    %v51 = vld [vmem:[%s1 + $0x70] sm:$0xff]
    %v52 = vld [vmem:[%s1 + $0x78] sm:$0xff]
    %v53 = vld [vmem:[%s1 + $0x80] sm:$0xff]
    %v54 = vld [vmem:[%s1 + $0x88] sm:$0xff]
    %v55 = vld [vmem:[%s1 + $0x90] sm:$0xff]
    %v56 = vld [vmem:[%s1 + $0x98] sm:$0xff]
    %v57 = vld [vmem:[%s0 + $0x2] sm:$0x3]
    %v58 = vld [vmem:[%s0 + $0x2] sm:$0xf]
    %60 = vrot.lane.b32.xlu0 %v58, 48
    %v61 = vpop.permute.xlu0 %60
    %v62 = vrot.slane %v61, 2
    %v63 = vsel %vm33, %v61, %v62
    %v65 = vmax.f32 %v57, %v63
    %v66 = vld [vmem:[%s1 + $0xa0] sm:$0xff]
    %v67 = vld [vmem:[%s1 + $0xa8] sm:$0xff]
    %v68 = vld [vmem:[%s1 + $0xb0] sm:$0xff]
    %v69 = vld [vmem:[%s1 + $0xb8] sm:$0xff]
    %v70 = vld [vmem:[%s1 + $0xc0] sm:$0xff]
    %v71 = vld [vmem:[%s1 + $0xc8] sm:$0xff]
    %v72 = vld [vmem:[%s1 + $0xd0] sm:$0xff]
    %v73 = vld [vmem:[%s1 + $0xd8] sm:$0xff]
    %v74 = vld [vmem:[%s1 + $0xe0] sm:$0xff]
    %v75 = vld [vmem:[%s1 + $0xe8] sm:$0xff]
    %v76 = vld [vmem:[%s1 + $0xf0] sm:$0xff]
    %v77 = vld [vmem:[%s1 + $0xf8] sm:$0xff]
    %v78 = vld [vmem:[%s1 + $0x100] sm:$0xff]
    %v79 = vld [vmem:[%s1 + $0x108] sm:$0xff]
    %v80 = vld [vmem:[%s1 + $0x110] sm:$0xff]
    %v81 = vld [vmem:[%s1 + $0x118] sm:$0xff]
    %v82 = vld [vmem:[%s1 + $0x120] sm:$0xff]
    %v83 = vld [vmem:[%s1 + $0x128] sm:$0xff]
    %v84 = vld [vmem:[%s1 + $0x130] sm:$0xff]
    %v85 = vld [vmem:[%s1 + $0x138] sm:$0xff]
    %87 = vst [vmem:[#allocation1] ss:$4 sm:$0xff] %v65
    %v88 = vld.sshfl [vmem:[#allocation1] sm:$0xff pattern:$0x73625140]
    %89 = vrot.lane.b32.xlu0 %v88, 96
    %v90 = vpop.permute.xlu0 %89
    %vm91 = vcmask 654336
    %v92 = vsel %vm91, %v90, 0
    %94 = vmatpush.msra.mxu0 0.0
    %95 = vmatpush.msra.mxu0 0.0
    %96 = vmatpush.msra.mxu0 0.0
    %97 = vmatpush.msra.mxu0 0.0
    %98 = vmatpush.msra.mxu0 0.0
    %99 = vmatpush.msra.mxu0 0.0
    %100 = vmatpush.msra.mxu0 %v84
    %101 = vmatpush.msra.mxu0 %v82
    %102 = vmatpush.msra.mxu0 %v80
    %103 = vmatpush.msra.mxu0 %v78
    %104 = vmatpush.msra.mxu0 %v76
    %105 = vmatpush.msra.mxu0 %v74
    %106 = vmatpush.msra.mxu0 %v72
    %107 = vmatpush.msra.mxu0 %v70
    %108 = vmatpush.msra.mxu0 %v68
    %109 = vmatpush.msra.mxu0 %v66
    %110 = vmatmul.f32.gmra.mxu0 %v92
    %v111 = vpop.f32.mrf.mxu0
    %v112 = vadd.f32 0.0, %v111
    %113 = vdwg.mxu0
    %114 = vmatpush.msra.mxu0 0.0
    %115 = vmatpush.msra.mxu0 0.0
    %116 = vmatpush.msra.mxu0 0.0
    %117 = vmatpush.msra.mxu0 0.0
    %118 = vmatpush.msra.mxu0 0.0
    %119 = vmatpush.msra.mxu0 0.0
    %120 = vmatpush.msra.mxu0 %v85
    %121 = vmatpush.msra.mxu0 %v83
    %122 = vmatpush.msra.mxu0 %v81
    %123 = vmatpush.msra.mxu0 %v79
    %124 = vmatpush.msra.mxu0 %v77
    %125 = vmatpush.msra.mxu0 %v75
    %126 = vmatpush.msra.mxu0 %v73
    %127 = vmatpush.msra.mxu0 %v71
    %128 = vmatpush.msra.mxu0 %v69
    %129 = vmatpush.msra.mxu0 %v67
    %130 = vmatmul.f32.gmra.mxu0 %v92
    %v131 = vpop.f32.mrf.mxu0
    %v132 = vadd.f32 0.0, %v131
    %133 = vdwg.mxu0
    %v135 = vsel %vm91, %v36, 0
    %137 = vmatpush.msra.mxu0 0.0
    %138 = vmatpush.msra.mxu0 0.0
    %139 = vmatpush.msra.mxu0 0.0
    %140 = vmatpush.msra.mxu0 0.0
    %141 = vmatpush.msra.mxu0 0.0
    %142 = vmatpush.msra.mxu0 0.0
    %143 = vmatpush.msra.mxu0 %v55
    %144 = vmatpush.msra.mxu0 %v53
    %145 = vmatpush.msra.mxu0 %v51
    %146 = vmatpush.msra.mxu0 %v49
    %147 = vmatpush.msra.mxu0 %v47
    %148 = vmatpush.msra.mxu0 %v45
    %149 = vmatpush.msra.mxu0 %v43
    %150 = vmatpush.msra.mxu0 %v41
    %151 = vmatpush.msra.mxu0 %v39
    %152 = vmatpush.msra.mxu0 %v37
    %153 = vmatmul.f32.gmra.mxu0 %v135
    %v154 = vpop.f32.mrf.mxu0
    %v155 = vadd.f32 %v112, %v154
    %156 = vdwg.mxu0
    %157 = vmatpush.msra.mxu0 0.0
    %158 = vmatpush.msra.mxu0 0.0
    %159 = vmatpush.msra.mxu0 0.0
    %160 = vmatpush.msra.mxu0 0.0
    %161 = vmatpush.msra.mxu0 0.0
    %162 = vmatpush.msra.mxu0 0.0
    %163 = vmatpush.msra.mxu0 %v56
    %164 = vmatpush.msra.mxu0 %v54
    %165 = vmatpush.msra.mxu0 %v52
    %166 = vmatpush.msra.mxu0 %v50
    %167 = vmatpush.msra.mxu0 %v48
    %168 = vmatpush.msra.mxu0 %v46
    %169 = vmatpush.msra.mxu0 %v44
    %170 = vmatpush.msra.mxu0 %v42
    %171 = vmatpush.msra.mxu0 %v40
    %172 = vmatpush.msra.mxu0 %v38
    %173 = vmatmul.f32.gmra.mxu0 %v135
    %v174 = vpop.f32.mrf.mxu0
    %v175 = vadd.f32 %v132, %v174
    %176 = vdwg.mxu0
    %v177 = vld [vmem:[%s0 + $0x4] sm:$0xf]
    %v178 = vld [vmem:[%s0 + $0x6] sm:$0x3]
    %180 = vrot.lane.b32.xlu0 %v178, 48
    %v181 = vpop.permute.xlu0 %180
    %v182 = vrot.slane %v181, 6
    %v183 = vsel %vm33, %v182, %v181
    %v185 = vmax.f32 %v177, %v183
    %v186 = vld [vmem:[%s1 + $0x140] sm:$0xff]
    %v187 = vld [vmem:[%s1 + $0x148] sm:$0xff]
    %v188 = vld [vmem:[%s1 + $0x150] sm:$0xff]
    %v189 = vld [vmem:[%s1 + $0x158] sm:$0xff]
    %v190 = vld [vmem:[%s1 + $0x160] sm:$0xff]
    %v191 = vld [vmem:[%s1 + $0x168] sm:$0xff]
    %v192 = vld [vmem:[%s1 + $0x170] sm:$0xff]
    %v193 = vld [vmem:[%s1 + $0x178] sm:$0xff]
    %v194 = vld [vmem:[%s1 + $0x180] sm:$0xff]
    %v195 = vld [vmem:[%s1 + $0x188] sm:$0xff]
    %v196 = vld [vmem:[%s1 + $0x190] sm:$0xff]
    %v197 = vld [vmem:[%s1 + $0x198] sm:$0xff]
    %v198 = vld [vmem:[%s1 + $0x1a0] sm:$0xff]
    %v199 = vld [vmem:[%s1 + $0x1a8] sm:$0xff]
    %v200 = vld [vmem:[%s1 + $0x1b0] sm:$0xff]
    %v201 = vld [vmem:[%s1 + $0x1b8] sm:$0xff]
    %v202 = vld [vmem:[%s1 + $0x1c0] sm:$0xff]
    %v203 = vld [vmem:[%s1 + $0x1c8] sm:$0xff]
    %v204 = vld [vmem:[%s1 + $0x1d0] sm:$0xff]
    %v205 = vld [vmem:[%s1 + $0x1d8] sm:$0xff]
    %207 = vst [vmem:[#allocation1] ss:$4 sm:$0xff] %v185
    %v208 = vld.sshfl [vmem:[#allocation1] sm:$0xff pattern:$0x73625140]
    %v209 = vld.sshfl [vmem:[#allocation1 + $0x8] sm:$0xff pattern:$0x73625140]
    %210 = vrot.lane.b32.xlu0 %v208, 64
    %v211 = vpop.permute.xlu0 %210
    %212 = vrot.lane.b32.xlu0 %v209, 64
    %v213 = vpop.permute.xlu0 %212
    %vm214 = vcmask 523264
    %v215 = vsel %vm214, %v211, %v213
    %v216 = vsel %vm91, %v215, 0
    %218 = vmatpush.msra.mxu0 0.0
    %219 = vmatpush.msra.mxu0 0.0
    %220 = vmatpush.msra.mxu0 0.0
    %221 = vmatpush.msra.mxu0 0.0
    %222 = vmatpush.msra.mxu0 0.0
    %223 = vmatpush.msra.mxu0 0.0
    %224 = vmatpush.msra.mxu0 %v204
    %225 = vmatpush.msra.mxu0 %v202
    %226 = vmatpush.msra.mxu0 %v200
    %227 = vmatpush.msra.mxu0 %v198
    %228 = vmatpush.msra.mxu0 %v196
    %229 = vmatpush.msra.mxu0 %v194
    %230 = vmatpush.msra.mxu0 %v192
    %231 = vmatpush.msra.mxu0 %v190
    %232 = vmatpush.msra.mxu0 %v188
    %233 = vmatpush.msra.mxu0 %v186
    %234 = vmatmul.f32.gmra.mxu0 %v216
    %v235 = vpop.f32.mrf.mxu0
    %v236 = vadd.f32 0.0, %v235
    %237 = vdwg.mxu0
    %238 = vmatpush.msra.mxu0 0.0
    %239 = vmatpush.msra.mxu0 0.0
    %240 = vmatpush.msra.mxu0 0.0
    %241 = vmatpush.msra.mxu0 0.0
    %242 = vmatpush.msra.mxu0 0.0
    %243 = vmatpush.msra.mxu0 0.0
    %244 = vmatpush.msra.mxu0 %v205
    %245 = vmatpush.msra.mxu0 %v203
    %246 = vmatpush.msra.mxu0 %v201
    %247 = vmatpush.msra.mxu0 %v199
    %248 = vmatpush.msra.mxu0 %v197
    %249 = vmatpush.msra.mxu0 %v195
    %250 = vmatpush.msra.mxu0 %v193
    %251 = vmatpush.msra.mxu0 %v191
    %252 = vmatpush.msra.mxu0 %v189
    %253 = vmatpush.msra.mxu0 %v187
    %254 = vmatmul.f32.gmra.mxu0 %v216
    %v255 = vpop.f32.mrf.mxu0
    %v256 = vadd.f32 0.0, %v255
    %257 = vdwg.mxu0
    %v258 = vadd.f32 %v155, %v236
    %v259 = vadd.f32 %v175, %v256
    %v260 = vld [vmem:[%s0 + $0x6] sm:$0xf]
    %v261 = vld [vmem:[%s0 + $0x8] sm:$0x3]
    %263 = vrot.lane.b32.xlu0 %v261, 48
    %v264 = vpop.permute.xlu0 %263
    %v265 = vrot.slane %v264, 6
    %v266 = vsel %vm33, %v265, %v264
    %v268 = vmax.f32 %v260, %v266
    %v269 = vld [vmem:[%s1 + $0x1e0] sm:$0xff]
    %v270 = vld [vmem:[%s1 + $0x1e8] sm:$0xff]
    %v271 = vld [vmem:[%s1 + $0x1f0] sm:$0xff]
    %v272 = vld [vmem:[%s1 + $0x1f8] sm:$0xff]
    %v273 = vld [vmem:[%s1 + $0x200] sm:$0xff]
    %v274 = vld [vmem:[%s1 + $0x208] sm:$0xff]
    %v275 = vld [vmem:[%s1 + $0x210] sm:$0xff]
    %v276 = vld [vmem:[%s1 + $0x218] sm:$0xff]
    %v277 = vld [vmem:[%s1 + $0x220] sm:$0xff]
    %v278 = vld [vmem:[%s1 + $0x228] sm:$0xff]
    %v279 = vld [vmem:[%s1 + $0x230] sm:$0xff]
    %v280 = vld [vmem:[%s1 + $0x238] sm:$0xff]
    %v281 = vld [vmem:[%s1 + $0x240] sm:$0xff]
    %v282 = vld [vmem:[%s1 + $0x248] sm:$0xff]
    %v283 = vld [vmem:[%s1 + $0x250] sm:$0xff]
    %v284 = vld [vmem:[%s1 + $0x258] sm:$0xff]
    %v285 = vld [vmem:[%s1 + $0x260] sm:$0xff]
    %v286 = vld [vmem:[%s1 + $0x268] sm:$0xff]
    %v287 = vld [vmem:[%s1 + $0x270] sm:$0xff]
    %v288 = vld [vmem:[%s1 + $0x278] sm:$0xff]
    %290 = vst [vmem:[#allocation1] ss:$4 sm:$0xff] %v268
    %v291 = vld.sshfl [vmem:[#allocation1] sm:$0xff pattern:$0x73625140]
    %v292 = vld.sshfl [vmem:[#allocation1 + $0x8] sm:$0xff pattern:$0x73625140]
    %293 = vrot.lane.b32.xlu0 %v291, 32
    %v294 = vpop.permute.xlu0 %293
    %295 = vrot.lane.b32.xlu0 %v292, 32
    %v296 = vpop.permute.xlu0 %295
    %vm297 = vcmask 261120
    %v298 = vsel %vm297, %v294, %v296
    %v299 = vsel %vm91, %v298, 0
    %301 = vmatpush.msra.mxu0 0.0
    %302 = vmatpush.msra.mxu0 0.0
    %303 = vmatpush.msra.mxu0 0.0
    %304 = vmatpush.msra.mxu0 0.0
    %305 = vmatpush.msra.mxu0 0.0
    %306 = vmatpush.msra.mxu0 0.0
    %307 = vmatpush.msra.mxu0 %v287
    %308 = vmatpush.msra.mxu0 %v285
    %309 = vmatpush.msra.mxu0 %v283
    %310 = vmatpush.msra.mxu0 %v281
    %311 = vmatpush.msra.mxu0 %v279
    %312 = vmatpush.msra.mxu0 %v277
    %313 = vmatpush.msra.mxu0 %v275
    %314 = vmatpush.msra.mxu0 %v273
    %315 = vmatpush.msra.mxu0 %v271
    %316 = vmatpush.msra.mxu0 %v269
    %317 = vmatmul.f32.gmra.mxu0 %v299
    %v318 = vpop.f32.mrf.mxu0
    %v319 = vadd.f32 0.0, %v318
    %320 = vdwg.mxu0
    %321 = vmatpush.msra.mxu0 0.0
    %322 = vmatpush.msra.mxu0 0.0
    %323 = vmatpush.msra.mxu0 0.0
    %324 = vmatpush.msra.mxu0 0.0
    %325 = vmatpush.msra.mxu0 0.0
    %326 = vmatpush.msra.mxu0 0.0
    %327 = vmatpush.msra.mxu0 %v288
    %328 = vmatpush.msra.mxu0 %v286
    %329 = vmatpush.msra.mxu0 %v284
    %330 = vmatpush.msra.mxu0 %v282
    %331 = vmatpush.msra.mxu0 %v280
    %332 = vmatpush.msra.mxu0 %v278
    %333 = vmatpush.msra.mxu0 %v276
    %334 = vmatpush.msra.mxu0 %v274
    %335 = vmatpush.msra.mxu0 %v272
    %336 = vmatpush.msra.mxu0 %v270
    %337 = vmatmul.f32.gmra.mxu0 %v299
    %v338 = vpop.f32.mrf.mxu0
    %v339 = vadd.f32 0.0, %v338
    %340 = vdwg.mxu0
    %v341 = vadd.f32 %v258, %v319
    %v342 = vadd.f32 %v259, %v339
    %v343 = vld [vmem:[%s2] sm:$0x3]
    %v345 = vperm.slane %v343, 0
    %v346 = vperm.slane %v343, 1
    %v349 = vadd.f32 %v341, %v345
    %v350 = vadd.f32 %v342, %v346
    %v351 = vmax.f32 %v349, 0.0
    %v352 = vmax.f32 %v350, 0.0
    %v353 = vld [vmem:[%s3] sm:$0xff]
    %v354 = vld [vmem:[%s3 + $0x8] sm:$0xff]
    %v355 = vld [vmem:[%s3 + $0x10] sm:$0xff]
    %v356 = vld [vmem:[%s3 + $0x18] sm:$0xff]
    %v357 = vld [vmem:[%s3 + $0x20] sm:$0xff]
    %v358 = vld [vmem:[%s3 + $0x28] sm:$0xff]
    %v359 = vld [vmem:[%s3 + $0x30] sm:$0xff]
    %v360 = vld [vmem:[%s3 + $0x38] sm:$0xff]
    %v361 = vld [vmem:[%s3 + $0x40] sm:$0xff]
    %v362 = vld [vmem:[%s3 + $0x48] sm:$0xff]
    %v363 = vld [vmem:[%s3 + $0x50] sm:$0xff]
    %v364 = vld [vmem:[%s3 + $0x58] sm:$0xff]
    %v365 = vld [vmem:[%s3 + $0x60] sm:$0xff]
    %v366 = vld [vmem:[%s3 + $0x68] sm:$0xff]
    %v367 = vld [vmem:[%s3 + $0x70] sm:$0xff]
    %v368 = vld [vmem:[%s3 + $0x78] sm:$0xff]
    %v369 = vld [vmem:[%s3 + $0x80] sm:$0xff]
    %v370 = vld [vmem:[%s3 + $0x88] sm:$0xff]
    %v371 = vld [vmem:[%s3 + $0x90] sm:$0xff]
    %v372 = vld [vmem:[%s3 + $0x98] sm:$0xff]
    %v373 = vld [vmem:[%s3 + $0xa0] sm:$0xff]
    %v374 = vld [vmem:[%s3 + $0xa8] sm:$0xff]
    %v375 = vld [vmem:[%s3 + $0xb0] sm:$0xff]
    %v376 = vld [vmem:[%s3 + $0xb8] sm:$0xff]
    %v377 = vld [vmem:[%s3 + $0xc0] sm:$0xff]
    %v378 = vld [vmem:[%s3 + $0xc8] sm:$0xff]
    %v379 = vld [vmem:[%s3 + $0xd0] sm:$0xff]
    %v380 = vld [vmem:[%s3 + $0xd8] sm:$0xff]
    %v381 = vld [vmem:[%s3 + $0xe0] sm:$0xff]
    %v382 = vld [vmem:[%s3 + $0xe8] sm:$0xff]
    %v383 = vld [vmem:[%s3 + $0xf0] sm:$0xff]
    %v384 = vld [vmem:[%s3 + $0xf8] sm:$0xff]
    %v385 = vld [vmem:[%s4] sm:$0x1]
    %v387 = vperm.slane %v385, 0
    %389 = vmatpush.msra.mxu0 %v368
    %390 = vmatpush.msra.mxu0 %v367
    %391 = vmatpush.msra.mxu0 %v366
    %392 = vmatpush.msra.mxu0 %v365
    %393 = vmatpush.msra.mxu0 %v364
    %394 = vmatpush.msra.mxu0 %v363
    %395 = vmatpush.msra.mxu0 %v362
    %396 = vmatpush.msra.mxu0 %v361
    %397 = vmatpush.msra.mxu0 %v360
    %398 = vmatpush.msra.mxu0 %v359
    %399 = vmatpush.msra.mxu0 %v358
    %400 = vmatpush.msra.mxu0 %v357
    %401 = vmatpush.msra.mxu0 %v356
    %402 = vmatpush.msra.mxu0 %v355
    %403 = vmatpush.msra.mxu0 %v354
    %404 = vmatpush.msra.mxu0 %v353
    %405 = vmatmul.f32.gmra.mxu0 %v351
    %v406 = vpop.f32.mrf.mxu0
    %v407 = vadd.f32 %v387, %v406
    %408 = vdwg.mxu0
    %409 = vmatpush.msra.mxu0 %v384
    %410 = vmatpush.msra.mxu0 %v383
    %411 = vmatpush.msra.mxu0 %v382
    %412 = vmatpush.msra.mxu0 %v381
    %413 = vmatpush.msra.mxu0 %v380
    %414 = vmatpush.msra.mxu0 %v379
    %415 = vmatpush.msra.mxu0 %v378
    %416 = vmatpush.msra.mxu0 %v377
    %417 = vmatpush.msra.mxu0 %v376
    %418 = vmatpush.msra.mxu0 %v375
    %419 = vmatpush.msra.mxu0 %v374
    %420 = vmatpush.msra.mxu0 %v373
    %421 = vmatpush.msra.mxu0 %v372
    %422 = vmatpush.msra.mxu0 %v371
    %423 = vmatpush.msra.mxu0 %v370
    %424 = vmatpush.msra.mxu0 %v369
    %425 = vmatmul.f32.gmra.mxu0 %v352
    %v426 = vpop.f32.mrf.mxu0
    %v427 = vadd.f32 %v407, %v426
    %428 = vdwg.mxu0
    %v429 = vmax.f32 %v427, 0.0
    %v430 = vld [vmem:[%s5] sm:$0xff]
    %v431 = vld [vmem:[%s5 + $0x8] sm:$0xff]
    %v432 = vld [vmem:[%s5 + $0x10] sm:$0xff]
    %v433 = vld [vmem:[%s5 + $0x18] sm:$0xff]
    %v434 = vld [vmem:[%s5 + $0x20] sm:$0xff]
    %v435 = vld [vmem:[%s5 + $0x28] sm:$0xff]
    %v436 = vld [vmem:[%s5 + $0x30] sm:$0xff]
    %v437 = vld [vmem:[%s5 + $0x38] sm:$0xff]
    %v438 = vld [vmem:[%s5 + $0x40] sm:$0xff]
    %v439 = vld [vmem:[%s5 + $0x48] sm:$0xff]
    %v440 = vld [vmem:[%s5 + $0x50] sm:$0xff]
    %v441 = vld [vmem:[%s5 + $0x58] sm:$0xff]
    %v442 = vld [vmem:[%s5 + $0x60] sm:$0xff]
    %v443 = vld [vmem:[%s5 + $0x68] sm:$0xff]
    %v444 = vld [vmem:[%s5 + $0x70] sm:$0xff]
    %v445 = vld [vmem:[%s5 + $0x78] sm:$0xff]
    %v446 = vld [vmem:[%s6] sm:$0x1]
    %v448 = vperm.slane %v446, 0
    %450 = vmatpush.msra.mxu0 %v445
    %451 = vmatpush.msra.mxu0 %v444
    %452 = vmatpush.msra.mxu0 %v443
    %453 = vmatpush.msra.mxu0 %v442
    %454 = vmatpush.msra.mxu0 %v441
    %455 = vmatpush.msra.mxu0 %v440
    %456 = vmatpush.msra.mxu0 %v439
    %457 = vmatpush.msra.mxu0 %v438
    %458 = vmatpush.msra.mxu0 %v437
    %459 = vmatpush.msra.mxu0 %v436
    %460 = vmatpush.msra.mxu0 %v435
    %461 = vmatpush.msra.mxu0 %v434
    %462 = vmatpush.msra.mxu0 %v433
    %463 = vmatpush.msra.mxu0 %v432
    %464 = vmatpush.msra.mxu0 %v431
    %465 = vmatpush.msra.mxu0 %v430
    %466 = vmatmul.f32.gmra.mxu0 %v429
    %v467 = vpop.f32.mrf.mxu0
    %v468 = vadd.f32 %v448, %v467
    %469 = vdwg.mxu0
    %vm470 = vcmask 214016
    %471 = vst.msk [vmem:[#allocation2] sm:$0x3] %vm470, %v468
    // Predicated region
    $region30: #{net_forward.7} parent=1 // pred_check
      _
    $region31: #{net_forward.7} parent=1 // pred_check_branch
      %473 = sbr.rel (0) target = $region33
    $region32: #{net_forward.7} parent=1 // pred_region
      %475 = vsyncadd [#allocation3], 0
      %s477 = sshll.u32 [#allocation2], 4
      %s478 = int_to_ptr.vmem [resolvable:$true] %s477
      %s479 = sshll.u32 %s7, 4
      %s480 = int_to_ptr.hbm [resolvable:$true] %s479
      %482 = dma.vmem_to_hbm [thread:$0]  %s478, 32, %s480, [#allocation3]
    $region33: #{net_forward.7} parent=1 // pred_fallthru
      _
    // Predicated region
    $region34: #{net_forward.7} parent=1 // pred_check
      _
    $region35: #{net_forward.7} parent=1 // pred_check_branch
      %484 = sbr.rel (0) target = $region37
    $region36: #{net_forward.7} parent=1 // pred_region
      %486 = dma.done [#allocation3], 32
    $region37: #{net_forward.7} parent=1 // pred_fallthru
      _
    %487 = vsyncpa [#allocation3], 1

// kernel: net_forward.4
$region0: #{net_forward.4}
  #allocation0 [shape = 'u32[]', space=smem, size = 0x4, offset = 0x4, fixed_abs, tag = 'smem constant byte address 0x4 - core index']
  #allocation1 [shape = 'u32[72,128]{1,0:T(1,128)}', space=vmem, size = 0x9000, scoped, tag = 'internal scratch']
  #allocation2 [shape = 'f32[44,440]{1,0:T(8,128)}', space=vmem, size = 0x18000, scoped, tag = 'scratch operand']
  %s0 = inlined_call_operand.vmem [shape: f32[2,48,144], index: 0, kind: input, shape index: {}]
  %s1 = inlined_call_operand.hbm [shape: f32[5,144,440], index: 1, kind: input, shape index: {}]
  %s2 = inlined_call_operand.hbm [shape: f32[1,220], index: 2, kind: input, shape index: {}]
  %s3 = inlined_call_operand.vmem [shape: f32[2,44,220], index: 3, kind: output, shape index: {}]
  %s4 = sld [smem:[#allocation0]]
  $region53: #{net_forward.4} parent=0
    _
  %s6 = ssub.s32 1, %s4
  %s7 = scalar_select 0, %s6, %s4
  $region1: #{net_forward.4} parent=0
    #allocation3 [shape = 'u8[1474560]{0}', space=vmem, size = 0x168000, scoped, tag = 'input window, operand 1, single buffered']
    #allocation4 [shape = 's32[2]{0}', space=sflag, size = 0x8, scoped, tag = 'scoped memory for net_forward.4']
    #allocation5 [shape = 'u8[1024]{0}', space=vmem, size = 0x400, scoped, tag = 'input window, operand 2, single buffered']
    #allocation6 [shape = 's32[1]{0}', space=sflag, size = 0x4, scoped, tag = 'scoped memory for net_forward.4']
    %8 = vsyncpa [#allocation4], 0
    %9 = vsyncpa [#allocation6], 0
    loop: start=0, step=1, limit=4
    $region2: #{net_forward.4} parent=1 // loop_pre_header
      _
    $region3: #{net_forward.4} parent=1 // loop_header
      %s11 = sphi 0, %s15
      %p12 = scmp.ge.s32.totalorder %s11, 4
      %s21 = sphi 0, %s23
      %s24 = sphi 0, %s21
      %s25 = sphi 0, %s24
      %s41 = sphi 0, %s25
      %s45 = sphi 0, %s45
      %s47 = sphi 0, %s45
      %s48 = sphi 0, %s47
      %s62 = sphi 0, %s48
      %s66 = sphi 0, %s66
      %s68 = sphi 0, %s66
      %s69 = sphi 0, %s68
      %s83 = sphi 0, %s69
      %s89 = sphi 0, %s91
      %s92 = sphi 0, %s89
      %s93 = sphi 0, %s92
      %s109 = sphi 0, %s93
    $region4: #{net_forward.4} parent=1 // loop_header_branch
      %14 = sbr.rel (%p12) target = $region8
    $region5: #{net_forward.4} parent=1 // loop_body
      %s16 = ssub.s32 %s11, 1
      %s17 = ssub.s32 %s11, 2
      %s18 = sadd.s32 %s11, 1
      %s19 = ssub.s32 %s11, %s18
      %p20 = scmp.eq.s32.totalorder %s19, 0
      %s22 = sadd.s32 %s21, 1
      %s23 = scalar_select %p20, %s21, %s22
      %p26 = pneg %p20
      %p27 = scmp.eq.s32.totalorder %s11, 1
      %p28 = por %p26, %p27
      %p29 = scmp.ne.s32.totalorder %s21, %s24
      %p30 = scmp.eq.s32.totalorder %s11, 0
      %p31 = por %p29, %p30
      %p32 = scmp.ne.s32.totalorder %s21, %s24
      %p33 = scmp.eq.s32.totalorder %s16, 1
      %p34 = por %p32, %p33
      %p35 = scmp.ne.s32.totalorder %s24, %s25
      %p36 = scmp.eq.s32.totalorder %s16, 0
      %p37 = por %p35, %p36
      %p38 = scmp.ne.s32.totalorder %s24, %s25
      %p39 = scmp.eq.s32.totalorder %s17, 1
      %p40 = por %p38, %p39
      %p42 = scmp.ne.s32.totalorder %s25, %s41
      %p43 = scmp.eq.s32.totalorder %s17, 0
      %p44 = por %p42, %p43
      %s46 = sadd.s32 %s45, 1
      %p49 = scmp.eq.s32.totalorder %s11, 1
      %p50 = scmp.ne.s32.totalorder %s45, %s47
      %p51 = scmp.eq.s32.totalorder %s11, 0
      %p52 = por %p50, %p51
      %p53 = scmp.ne.s32.totalorder %s45, %s47
      %p54 = scmp.eq.s32.totalorder %s16, 1
      %p55 = por %p53, %p54
      %p56 = scmp.ne.s32.totalorder %s47, %s48
      %p57 = scmp.eq.s32.totalorder %s16, 0
      %p58 = por %p56, %p57
      %p59 = scmp.ne.s32.totalorder %s47, %s48
      %p60 = scmp.eq.s32.totalorder %s17, 1
      %p61 = por %p59, %p60
      %p63 = scmp.ne.s32.totalorder %s48, %s62
      %p64 = scmp.eq.s32.totalorder %s17, 0
      %p65 = por %p63, %p64
      %s67 = sadd.s32 %s66, 1
      %p70 = scmp.eq.s32.totalorder %s11, 1
      %p71 = scmp.ne.s32.totalorder %s66, %s68
      %p72 = scmp.eq.s32.totalorder %s11, 0
      %p73 = por %p71, %p72
      %p74 = scmp.ne.s32.totalorder %s66, %s68
      %p75 = scmp.eq.s32.totalorder %s16, 1
      %p76 = por %p74, %p75
      %p77 = scmp.ne.s32.totalorder %s68, %s69
      %p78 = scmp.eq.s32.totalorder %s16, 0
      %p79 = por %p77, %p78
      %p80 = scmp.ne.s32.totalorder %s68, %s69
      %p81 = scmp.eq.s32.totalorder %s17, 1
      %p82 = por %p80, %p81
      %p84 = scmp.ne.s32.totalorder %s69, %s83
      %p85 = scmp.eq.s32.totalorder %s17, 0
      %p86 = por %p84, %p85
      %s87 = ssub.s32 %s11, %s18
      %p88 = scmp.eq.s32.totalorder %s87, 0
      %s90 = sadd.s32 %s89, 1
      %s91 = scalar_select %p88, %s89, %s90
      %p94 = pneg %p88
      %p95 = scmp.eq.s32.totalorder %s11, 1
      %p96 = por %p94, %p95
      %p97 = scmp.ne.s32.totalorder %s89, %s92
      %p98 = scmp.eq.s32.totalorder %s11, 0
      %p99 = por %p97, %p98
      %p100 = scmp.ne.s32.totalorder %s89, %s92
      %p101 = scmp.eq.s32.totalorder %s16, 1
      %p102 = por %p100, %p101
      %p103 = scmp.ne.s32.totalorder %s92, %s93
      %p104 = scmp.eq.s32.totalorder %s16, 0
      %p105 = por %p103, %p104
      %p106 = scmp.ne.s32.totalorder %s92, %s93
      %p107 = scmp.eq.s32.totalorder %s17, 1
      %p108 = por %p106, %p107
      %p110 = scmp.ne.s32.totalorder %s93, %s109
      %p111 = scmp.eq.s32.totalorder %s17, 0
      %p112 = por %p110, %p111
      %p113 = scmp.le.s32.totalorder 1, %s11
      %p114 = scmp.lt.s32.totalorder %s11, 3
      %p115 = pnand %p113, %p114
      %p116 = pneg %p115
      // Predicated region
      $region9: #{net_forward.4} parent=5 // pred_check
        _
      $region10: #{net_forward.4} parent=5 // pred_check_branch
        %118 = sbr.rel (%p115) target = $region12
      $region11: #{net_forward.4} parent=5 // pred_region
        %s119 = ssub.s32 %s11, 1
        // Predicated region
        $region13: #{net_forward.4} parent=11 // pred_check
          %p120 = pneg %p58
        $region14: #{net_forward.4} parent=11 // pred_check_branch
          %122 = sbr.rel (%p120) target = $region16
        $region15: #{net_forward.4} parent=11 // pred_region
          %124 = vsyncadd [#allocation4], 0
          %s125 = sshll.u32 %s1, 4
          %s126 = int_to_ptr.hbm [resolvable:$true] %s125
          %s127 = sshll.u32 [#allocation3], 4
          %s128 = int_to_ptr.vmem [resolvable:$true] %s127
          %133 = dma.hbm_to_vmem [thread:$0]  %s126, 46080, %s128, [#allocation4], 512, 512, 32
        $region16: #{net_forward.4} parent=11 // pred_fallthru
          _
        // Predicated region
        $region17: #{net_forward.4} parent=11 // pred_check
          %p134 = pneg %p79
        $region18: #{net_forward.4} parent=11 // pred_check_branch
          %136 = sbr.rel (%p134) target = $region20
        $region19: #{net_forward.4} parent=11 // pred_region
          %138 = vsyncadd [#allocation6], 0
          %s140 = sshll.u32 %s2, 4
          %s141 = int_to_ptr.hbm [resolvable:$true] %s140
          %s142 = sshll.u32 [#allocation5], 4
          %s143 = int_to_ptr.vmem [resolvable:$true] %s142
          %145 = dma.hbm_to_vmem [thread:$0]  %s141, 32, %s143, [#allocation6]
        $region20: #{net_forward.4} parent=11 // pred_fallthru
          _
      $region12: #{net_forward.4} parent=5 // pred_fallthru
        _
      %p146 = scmp.lt.s32.totalorder %s11, 2
      // Predicated region
      $region21: #{net_forward.4} parent=5 // pred_check
        %p147 = pneg %p146
      $region22: #{net_forward.4} parent=5 // pred_check_branch
        %149 = sbr.rel (%p147) target = $region24
      $region23: #{net_forward.4} parent=5 // pred_region
        // Predicated region
        $region25: #{net_forward.4} parent=23 // pred_check
          %p150 = pneg %p31
        $region26: #{net_forward.4} parent=23 // pred_check_branch
          %152 = sbr.rel (%p150) target = $region28
        $region27: #{net_forward.4} parent=23 // pred_region
          %p153 = scmp.lt.s32.totalorder %s11, 1
          %s154 = scalar_select %p153, %s11, 1
          %s155 = smul.addr %s154, 12
          %s156 = smul.addr %s155, 8
          %s157 = scalar_lea.vmem %s0, %s156
        $region28: #{net_forward.4} parent=23 // pred_fallthru
          _
      $region24: #{net_forward.4} parent=5 // pred_fallthru
        _
      %p158 = scmp.le.s32.totalorder 1, %s11
      %p159 = scmp.lt.s32.totalorder %s11, 3
      %p160 = pnand %p158, %p159
      %p161 = pneg %p160
      // Predicated region
      $region29: #{net_forward.4} parent=5 // pred_check
        _
      $region30: #{net_forward.4} parent=5 // pred_check_branch
        %163 = sbr.rel (%p160) target = $region32
      $region31: #{net_forward.4} parent=5 // pred_region
        %s164 = ssub.s32 %s11, 1
        // Predicated region
        $region33: #{net_forward.4} parent=31 // pred_check
          %p165 = pneg %p58
        $region34: #{net_forward.4} parent=31 // pred_check_branch
          %167 = sbr.rel (%p165) target = $region36
        $region35: #{net_forward.4} parent=31 // pred_region
          %169 = dma.done [#allocation4], 46080
        $region36: #{net_forward.4} parent=31 // pred_fallthru
          _
        // Predicated region
        $region37: #{net_forward.4} parent=31 // pred_check
          %p170 = pneg %p79
        $region38: #{net_forward.4} parent=31 // pred_check_branch
          %172 = sbr.rel (%p170) target = $region40
        $region39: #{net_forward.4} parent=31 // pred_region
          %174 = dma.done [#allocation6], 32
        $region40: #{net_forward.4} parent=31 // pred_fallthru
          _
        %p175 = scmp.lt.s32.totalorder %s16, 1
        %s176 = scalar_select %p175, %s16, 1
        %s177 = smul.addr %s176, 12
        %s178 = smul.addr %s177, 8
        %s179 = scalar_lea.vmem %s0, %s178
        %p180 = pneg %p37
        %p181 = pneg %p34
        %p182 = pneg %p58
        %p183 = pneg %p55
        %p184 = pneg %p79
        %p185 = pneg %p76
        %p186 = pneg %p105
        %p187 = pneg %p102
        %p188 = scmp.lt.s32.totalorder %s16, 1
        %s189 = scalar_select %p188, %s16, 1
        %s190 = smul.addr %s189, 12
        %s191 = smul.addr %s190, 8
        %s192 = scalar_lea.vmem %s3, %s191
        %p193 = scmp.lt.s32.totalorder %s16, 1
        %s194 = scalar_select %p193, %s16, 1
        %s195 = smul.addr %s194, 12
        %s196 = smul.addr %s195, 8
        %s197 = scalar_lea.vmem %s0, %s196
        %p198 = scmp.lt.s32.totalorder %s16, 1
        %s199 = scalar_select %p198, %s16, 1
        %s200 = smul.addr %s199, 12
        %s201 = smul.addr %s200, 8
        %s202 = scalar_lea.vmem %s3, %s201
        %v203 = vld [vmem:[%s197] sm:$0xff]
        %v204 = vld [vmem:[%s197 + $0x8] sm:$0xff]
        %v205 = vld [vmem:[%s197 + $0x10] sm:$0xff]
        %v206 = vld [vmem:[%s197 + $0x18] sm:$0xff]
        %v207 = vld [vmem:[%s197 + $0x20] sm:$0xff]
        %v208 = vld [vmem:[%s197 + $0x28] sm:$0xff]
        %v209 = vld [vmem:[%s197 + $0x30] sm:$0xff]
        %v210 = vld [vmem:[%s197 + $0x38] sm:$0xff]
        %v211 = vld [vmem:[%s197 + $0x40] sm:$0xff]
        %v212 = vld [vmem:[%s197 + $0x48] sm:$0xff]
        %v213 = vld [vmem:[%s197 + $0x50] sm:$0xf]
        %v214 = vld [vmem:[%s197 + $0x58] sm:$0xf]
        %v215 = vld [vmem:[#allocation3] sm:$0xff]
        %v216 = vld [vmem:[#allocation3 + $0x8] sm:$0xff]
        %v217 = vld [vmem:[#allocation3 + $0x10] sm:$0xff]
        %v218 = vld [vmem:[#allocation3 + $0x18] sm:$0xff]
        %v219 = vld [vmem:[#allocation3 + $0x20] sm:$0xff]
        %v220 = vld [vmem:[#allocation3 + $0x28] sm:$0xff]
        %v221 = vld [vmem:[#allocation3 + $0x30] sm:$0xff]
        %v222 = vld [vmem:[#allocation3 + $0x38] sm:$0xff]
        %v223 = vld [vmem:[#allocation3 + $0x40] sm:$0xff]
        %v224 = vld [vmem:[#allocation3 + $0x48] sm:$0xff]
        %v225 = vld [vmem:[#allocation3 + $0x50] sm:$0xff]
        %v226 = vld [vmem:[#allocation3 + $0x58] sm:$0xff]
        %v227 = vld [vmem:[#allocation3 + $0x60] sm:$0xff]
        %v228 = vld [vmem:[#allocation3 + $0x68] sm:$0xff]
        %v229 = vld [vmem:[#allocation3 + $0x70] sm:$0xff]
        %v230 = vld [vmem:[#allocation3 + $0x78] sm:$0xff]
        %v231 = vld [vmem:[#allocation3 + $0x80] sm:$0xff]
        %v232 = vld [vmem:[#allocation3 + $0x88] sm:$0xff]
        %v233 = vld [vmem:[#allocation3 + $0x90] sm:$0xff]
        %v234 = vld [vmem:[#allocation3 + $0x98] sm:$0xff]
        %v235 = vld [vmem:[#allocation3 + $0xa0] sm:$0xff]
        %v236 = vld [vmem:[#allocation3 + $0xa8] sm:$0xff]
        %v237 = vld [vmem:[#allocation3 + $0xb0] sm:$0xff]
        %v238 = vld [vmem:[#allocation3 + $0xb8] sm:$0xff]
        %v239 = vld [vmem:[#allocation3 + $0xc0] sm:$0xff]
        %v240 = vld [vmem:[#allocation3 + $0xc8] sm:$0xff]
        %v241 = vld [vmem:[#allocation3 + $0xd0] sm:$0xff]
        %v242 = vld [vmem:[#allocation3 + $0xd8] sm:$0xff]
        %v243 = vld [vmem:[#allocation3 + $0xe0] sm:$0xff]
        %v244 = vld [vmem:[#allocation3 + $0xe8] sm:$0xff]
        %v245 = vld [vmem:[#allocation3 + $0xf0] sm:$0xff]
        %v246 = vld [vmem:[#allocation3 + $0xf8] sm:$0xff]
        %v247 = vld [vmem:[#allocation3 + $0x100] sm:$0xff]
        %v248 = vld [vmem:[#allocation3 + $0x108] sm:$0xff]
        %v249 = vld [vmem:[#allocation3 + $0x110] sm:$0xff]
        %v250 = vld [vmem:[#allocation3 + $0x118] sm:$0xff]
        %v251 = vld [vmem:[#allocation3 + $0x120] sm:$0xff]
        %v252 = vld [vmem:[#allocation3 + $0x128] sm:$0xff]
        %v253 = vld [vmem:[#allocation3 + $0x130] sm:$0xff]
        %v254 = vld [vmem:[#allocation3 + $0x138] sm:$0xff]
        %v255 = vld [vmem:[#allocation3 + $0x140] sm:$0xff]
        %v256 = vld [vmem:[#allocation3 + $0x148] sm:$0xff]
        %v257 = vld [vmem:[#allocation3 + $0x150] sm:$0xff]
        %v258 = vld [vmem:[#allocation3 + $0x158] sm:$0xff]
        %v259 = vld [vmem:[#allocation3 + $0x160] sm:$0xff]
        %v260 = vld [vmem:[#allocation3 + $0x168] sm:$0xff]
        %v261 = vld [vmem:[#allocation3 + $0x170] sm:$0xff]
        %v262 = vld [vmem:[#allocation3 + $0x178] sm:$0xff]
        %v263 = vld [vmem:[#allocation3 + $0x180] sm:$0xff]
        %v264 = vld [vmem:[#allocation3 + $0x188] sm:$0xff]
        %v265 = vld [vmem:[#allocation3 + $0x190] sm:$0xff]
        %v266 = vld [vmem:[#allocation3 + $0x198] sm:$0xff]
        %v267 = vld [vmem:[#allocation3 + $0x1a0] sm:$0xff]
        %v268 = vld [vmem:[#allocation3 + $0x1a8] sm:$0xff]
        %v269 = vld [vmem:[#allocation3 + $0x1b0] sm:$0xff]
        %v270 = vld [vmem:[#allocation3 + $0x1b8] sm:$0xff]
        %v271 = vld [vmem:[#allocation3 + $0x1c0] sm:$0xff]
        %v272 = vld [vmem:[#allocation3 + $0x1c8] sm:$0xff]
        %v273 = vld [vmem:[#allocation3 + $0x1d0] sm:$0xff]
        %v274 = vld [vmem:[#allocation3 + $0x1d8] sm:$0xff]
        %v275 = vld [vmem:[#allocation3 + $0x1e0] sm:$0xff]
        %v276 = vld [vmem:[#allocation3 + $0x1e8] sm:$0xff]
        %v277 = vld [vmem:[#allocation3 + $0x1f0] sm:$0xff]
        %v278 = vld [vmem:[#allocation3 + $0x1f8] sm:$0xff]
        %v279 = vld [vmem:[#allocation3 + $0x200] sm:$0xff]
        %v280 = vld [vmem:[#allocation3 + $0x208] sm:$0xff]
        %v281 = vld [vmem:[#allocation3 + $0x210] sm:$0xff]
        %v282 = vld [vmem:[#allocation3 + $0x218] sm:$0xff]
        %v283 = vld [vmem:[#allocation3 + $0x220] sm:$0xff]
        %v284 = vld [vmem:[#allocation3 + $0x228] sm:$0xff]
        %v285 = vld [vmem:[#allocation3 + $0x230] sm:$0xff]
        %v286 = vld [vmem:[#allocation3 + $0x238] sm:$0xff]
        %v287 = vld [vmem:[%s197] sm:$0xfe]
        %v288 = vld [vmem:[%s197 + $0x8] sm:$0xfe]
        %v289 = vld [vmem:[%s197 + $0x50] sm:$0x1f]
        %v290 = vld [vmem:[%s197 + $0x58] sm:$0x1f]
        %s291 = scalar_lea.vmem [#allocation3], 576
        %v292 = vld [vmem:[%s291] sm:$0xff]
        %v293 = vld [vmem:[%s291 + $0x8] sm:$0xff]
        %v294 = vld [vmem:[%s291 + $0x10] sm:$0xff]
        %v295 = vld [vmem:[%s291 + $0x18] sm:$0xff]
        %v296 = vld [vmem:[%s291 + $0x20] sm:$0xff]
        %v297 = vld [vmem:[%s291 + $0x28] sm:$0xff]
        %v298 = vld [vmem:[%s291 + $0x30] sm:$0xff]
        %v299 = vld [vmem:[%s291 + $0x38] sm:$0xff]
        %v300 = vld [vmem:[%s291 + $0x40] sm:$0xff]
        %v301 = vld [vmem:[%s291 + $0x48] sm:$0xff]
        %v302 = vld [vmem:[%s291 + $0x50] sm:$0xff]
        %v303 = vld [vmem:[%s291 + $0x58] sm:$0xff]
        %v304 = vld [vmem:[%s291 + $0x60] sm:$0xff]
        %v305 = vld [vmem:[%s291 + $0x68] sm:$0xff]
        %v306 = vld [vmem:[%s291 + $0x70] sm:$0xff]
        %v307 = vld [vmem:[%s291 + $0x78] sm:$0xff]
        %v308 = vld [vmem:[%s291 + $0x80] sm:$0xff]
        %v309 = vld [vmem:[%s291 + $0x88] sm:$0xff]
        %v310 = vld [vmem:[%s291 + $0x90] sm:$0xff]
        %v311 = vld [vmem:[%s291 + $0x98] sm:$0xff]
        %v312 = vld [vmem:[%s291 + $0xa0] sm:$0xff]
        %v313 = vld [vmem:[%s291 + $0xa8] sm:$0xff]
        %v314 = vld [vmem:[%s291 + $0xb0] sm:$0xff]
        %v315 = vld [vmem:[%s291 + $0xb8] sm:$0xff]
        %v316 = vld [vmem:[%s291 + $0xc0] sm:$0xff]
        %v317 = vld [vmem:[%s291 + $0xc8] sm:$0xff]
        %v318 = vld [vmem:[%s291 + $0xd0] sm:$0xff]
        %v319 = vld [vmem:[%s291 + $0xd8] sm:$0xff]
        %v320 = vld [vmem:[%s291 + $0xe0] sm:$0xff]
        %v321 = vld [vmem:[%s291 + $0xe8] sm:$0xff]
        %v322 = vld [vmem:[%s291 + $0xf0] sm:$0xff]
        %v323 = vld [vmem:[%s291 + $0xf8] sm:$0xff]
        %v324 = vld [vmem:[%s291 + $0x100] sm:$0xff]
        %v325 = vld [vmem:[%s291 + $0x108] sm:$0xff]
        %v326 = vld [vmem:[%s291 + $0x110] sm:$0xff]
        %v327 = vld [vmem:[%s291 + $0x118] sm:$0xff]
        %v328 = vld [vmem:[%s291 + $0x120] sm:$0xff]
        %v329 = vld [vmem:[%s291 + $0x128] sm:$0xff]
        %v330 = vld [vmem:[%s291 + $0x130] sm:$0xff]
        %v331 = vld [vmem:[%s291 + $0x138] sm:$0xff]
        %v332 = vld [vmem:[%s291 + $0x140] sm:$0xff]
        %v333 = vld [vmem:[%s291 + $0x148] sm:$0xff]
        %v334 = vld [vmem:[%s291 + $0x150] sm:$0xff]
        %v335 = vld [vmem:[%s291 + $0x158] sm:$0xff]
        %v336 = vld [vmem:[%s291 + $0x160] sm:$0xff]
        %v337 = vld [vmem:[%s291 + $0x168] sm:$0xff]
        %v338 = vld [vmem:[%s291 + $0x170] sm:$0xff]
        %v339 = vld [vmem:[%s291 + $0x178] sm:$0xff]
        %v340 = vld [vmem:[%s291 + $0x180] sm:$0xff]
        %v341 = vld [vmem:[%s291 + $0x188] sm:$0xff]
        %v342 = vld [vmem:[%s291 + $0x190] sm:$0xff]
        %v343 = vld [vmem:[%s291 + $0x198] sm:$0xff]
        %v344 = vld [vmem:[%s291 + $0x1a0] sm:$0xff]
        %v345 = vld [vmem:[%s291 + $0x1a8] sm:$0xff]
        %v346 = vld [vmem:[%s291 + $0x1b0] sm:$0xff]
        %v347 = vld [vmem:[%s291 + $0x1b8] sm:$0xff]
        %v348 = vld [vmem:[%s291 + $0x1c0] sm:$0xff]
        %v349 = vld [vmem:[%s291 + $0x1c8] sm:$0xff]
        %v350 = vld [vmem:[%s291 + $0x1d0] sm:$0xff]
        %v351 = vld [vmem:[%s291 + $0x1d8] sm:$0xff]
        %v352 = vld [vmem:[%s291 + $0x1e0] sm:$0xff]
        %v353 = vld [vmem:[%s291 + $0x1e8] sm:$0xff]
        %v354 = vld [vmem:[%s291 + $0x1f0] sm:$0xff]
        %v355 = vld [vmem:[%s291 + $0x1f8] sm:$0xff]
        %v356 = vld [vmem:[%s291 + $0x200] sm:$0xff]
        %v357 = vld [vmem:[%s291 + $0x208] sm:$0xff]
        %v358 = vld [vmem:[%s291 + $0x210] sm:$0xff]
        %v359 = vld [vmem:[%s291 + $0x218] sm:$0xff]
        %v360 = vld [vmem:[%s291 + $0x220] sm:$0xff]
        %v361 = vld [vmem:[%s291 + $0x228] sm:$0xff]
        %v362 = vld [vmem:[%s291 + $0x230] sm:$0xff]
        %v363 = vld [vmem:[%s291 + $0x238] sm:$0xff]
        %vm376 = vcmask 1046528
        %v377 = vrot.slane %v287, 1
        %v378 = vrot.slane %v205, 1
        %v379 = vsel %vm376, %v377, %v378
        %v380 = vrot.slane %v288, 1
        %v381 = vrot.slane %v206, 1
        %v382 = vsel %vm376, %v380, %v381
        %v383 = vrot.slane %v207, 1
        %v384 = vsel %vm376, %v378, %v383
        %v385 = vrot.slane %v208, 1
        %v386 = vsel %vm376, %v381, %v385
        %v387 = vrot.slane %v209, 1
        %v388 = vsel %vm376, %v383, %v387
        %v389 = vrot.slane %v210, 1
        %v390 = vsel %vm376, %v385, %v389
        %v391 = vrot.slane %v211, 1
        %v392 = vsel %vm376, %v387, %v391
        %v393 = vrot.slane %v212, 1
        %v394 = vsel %vm376, %v389, %v393
        %v395 = vrot.slane %v289, 1
        %v396 = vsel %vm376, %v391, %v395
        %v397 = vrot.slane %v290, 1
        %v398 = vsel %vm376, %v393, %v397
        %vm405 = vcmask 130048
        %v406 = vsel %vm405, %v382, 0
        %v408 = vsel %vm405, %v386, 0
        %v410 = vsel %vm405, %v390, 0
        %v412 = vsel %vm405, %v394, 0
        %v414 = vsel %vm405, %v398, 0
        %v416 = vsel %vm405, %v397, 0
        %418 = vmatpush.msra.mxu0 %v352
        %419 = vmatpush.msra.mxu0 %v348
        %420 = vmatpush.msra.mxu0 %v344
        %421 = vmatpush.msra.mxu0 %v340
        %422 = vmatpush.msra.mxu0 %v336
        %423 = vmatpush.msra.mxu0 %v332
        %424 = vmatpush.msra.mxu0 %v328
        %425 = vmatpush.msra.mxu0 %v324
        %426 = vmatpush.msra.mxu0 %v320
        %427 = vmatpush.msra.mxu0 %v316
        %428 = vmatpush.msra.mxu0 %v312
        %429 = vmatpush.msra.mxu0 %v308
        %430 = vmatpush.msra.mxu0 %v304
        %431 = vmatpush.msra.mxu0 %v300
        %432 = vmatpush.msra.mxu0 %v296
        %433 = vmatpush.msra.mxu0 %v292
        %434 = vmatmul.f32.gmra.mxu0 %v379
        %v435 = vpop.f32.mrf.mxu0
        %v436 = vadd.f32 0.0, %v435
        %437 = vmatmul.f32.gmra.mxu0 %v384
        %v438 = vpop.f32.mrf.mxu0
        %v439 = vadd.f32 0.0, %v438
        %440 = vmatmul.f32.gmra.mxu0 %v388
        %v441 = vpop.f32.mrf.mxu0
        %v442 = vadd.f32 0.0, %v441
        %443 = vmatmul.f32.gmra.mxu0 %v392
        %v444 = vpop.f32.mrf.mxu0
        %v445 = vadd.f32 0.0, %v444
        %446 = vmatmul.f32.gmra.mxu0 %v396
        %v447 = vpop.f32.mrf.mxu0
        %v448 = vadd.f32 0.0, %v447
        %449 = vmatmul.f32.gmra.mxu0 %v395
        %v450 = vpop.f32.mrf.mxu0
        %v451 = vadd.f32 0.0, %v450
        %452 = vdwg.mxu0
        %453 = vmatpush.msra.mxu0 0.0
        %454 = vmatpush.msra.mxu0 0.0
        %455 = vmatpush.msra.mxu0 0.0
        %456 = vmatpush.msra.mxu0 0.0
        %457 = vmatpush.msra.mxu0 0.0
        %458 = vmatpush.msra.mxu0 0.0
        %459 = vmatpush.msra.mxu0 0.0
        %460 = vmatpush.msra.mxu0 0.0
        %461 = vmatpush.msra.mxu0 0.0
        %462 = vmatpush.msra.mxu0 0.0
        %463 = vmatpush.msra.mxu0 0.0
        %464 = vmatpush.msra.mxu0 0.0
        %465 = vmatpush.msra.mxu0 0.0
        %466 = vmatpush.msra.mxu0 0.0
        %467 = vmatpush.msra.mxu0 %v360
        %468 = vmatpush.msra.mxu0 %v356
        %469 = vmatmul.f32.gmra.mxu0 %v406
        %v470 = vpop.f32.mrf.mxu0
        %v471 = vadd.f32 %v436, %v470
        %472 = vmatmul.f32.gmra.mxu0 %v408
        %v473 = vpop.f32.mrf.mxu0
        %v474 = vadd.f32 %v439, %v473
        %475 = vmatmul.f32.gmra.mxu0 %v410
        %v476 = vpop.f32.mrf.mxu0
        %v477 = vadd.f32 %v442, %v476
        %478 = vmatmul.f32.gmra.mxu0 %v412
        %v479 = vpop.f32.mrf.mxu0
        %v480 = vadd.f32 %v445, %v479
        %481 = vmatmul.f32.gmra.mxu0 %v414
        %v482 = vpop.f32.mrf.mxu0
        %v483 = vadd.f32 %v448, %v482
        %484 = vmatmul.f32.gmra.mxu0 %v416
        %v485 = vpop.f32.mrf.mxu0
        %v486 = vadd.f32 %v451, %v485
        %487 = vdwg.mxu0
        %488 = vmatpush.msra.mxu0 %v353
        %489 = vmatpush.msra.mxu0 %v349
        %490 = vmatpush.msra.mxu0 %v345
        %491 = vmatpush.msra.mxu0 %v341
        %492 = vmatpush.msra.mxu0 %v337
        %493 = vmatpush.msra.mxu0 %v333
        %494 = vmatpush.msra.mxu0 %v329
        %495 = vmatpush.msra.mxu0 %v325
        %496 = vmatpush.msra.mxu0 %v321
        %497 = vmatpush.msra.mxu0 %v317
        %498 = vmatpush.msra.mxu0 %v313
        %499 = vmatpush.msra.mxu0 %v309
        %500 = vmatpush.msra.mxu0 %v305
        %501 = vmatpush.msra.mxu0 %v301
        %502 = vmatpush.msra.mxu0 %v297
        %503 = vmatpush.msra.mxu0 %v293
        %504 = vmatmul.f32.gmra.mxu0 %v379
        %v505 = vpop.f32.mrf.mxu0
        %v506 = vadd.f32 0.0, %v505
        %507 = vmatmul.f32.gmra.mxu0 %v384
        %v508 = vpop.f32.mrf.mxu0
        %v509 = vadd.f32 0.0, %v508
        %510 = vmatmul.f32.gmra.mxu0 %v388
        %v511 = vpop.f32.mrf.mxu0
        %v512 = vadd.f32 0.0, %v511
        %513 = vmatmul.f32.gmra.mxu0 %v392
        %v514 = vpop.f32.mrf.mxu0
        %v515 = vadd.f32 0.0, %v514
        %516 = vmatmul.f32.gmra.mxu0 %v396
        %v517 = vpop.f32.mrf.mxu0
        %v518 = vadd.f32 0.0, %v517
        %519 = vmatmul.f32.gmra.mxu0 %v395
        %v520 = vpop.f32.mrf.mxu0
        %v521 = vadd.f32 0.0, %v520
        %522 = vdwg.mxu0
        %523 = vmatpush.msra.mxu0 0.0
        %524 = vmatpush.msra.mxu0 0.0
        %525 = vmatpush.msra.mxu0 0.0
        %526 = vmatpush.msra.mxu0 0.0
        %527 = vmatpush.msra.mxu0 0.0
        %528 = vmatpush.msra.mxu0 0.0
        %529 = vmatpush.msra.mxu0 0.0
        %530 = vmatpush.msra.mxu0 0.0
        %531 = vmatpush.msra.mxu0 0.0
        %532 = vmatpush.msra.mxu0 0.0
        %533 = vmatpush.msra.mxu0 0.0
        %534 = vmatpush.msra.mxu0 0.0
        %535 = vmatpush.msra.mxu0 0.0
        %536 = vmatpush.msra.mxu0 0.0
        %537 = vmatpush.msra.mxu0 %v361
        %538 = vmatpush.msra.mxu0 %v357
        %539 = vmatmul.f32.gmra.mxu0 %v406
        %v540 = vpop.f32.mrf.mxu0
        %v541 = vadd.f32 %v506, %v540
        %542 = vmatmul.f32.gmra.mxu0 %v408
        %v543 = vpop.f32.mrf.mxu0
        %v544 = vadd.f32 %v509, %v543
        %545 = vmatmul.f32.gmra.mxu0 %v410
        %v546 = vpop.f32.mrf.mxu0
        %v547 = vadd.f32 %v512, %v546
        %548 = vmatmul.f32.gmra.mxu0 %v412
        %v549 = vpop.f32.mrf.mxu0
        %v550 = vadd.f32 %v515, %v549
        %551 = vmatmul.f32.gmra.mxu0 %v414
        %v552 = vpop.f32.mrf.mxu0
        %v553 = vadd.f32 %v518, %v552
        %554 = vmatmul.f32.gmra.mxu0 %v416
        %v555 = vpop.f32.mrf.mxu0
        %v556 = vadd.f32 %v521, %v555
        %557 = vdwg.mxu0
        %558 = vmatpush.msra.mxu0 %v354
        %559 = vmatpush.msra.mxu0 %v350
        %560 = vmatpush.msra.mxu0 %v346
        %561 = vmatpush.msra.mxu0 %v342
        %562 = vmatpush.msra.mxu0 %v338
        %563 = vmatpush.msra.mxu0 %v334
        %564 = vmatpush.msra.mxu0 %v330
        %565 = vmatpush.msra.mxu0 %v326
        %566 = vmatpush.msra.mxu0 %v322
        %567 = vmatpush.msra.mxu0 %v318
        %568 = vmatpush.msra.mxu0 %v314
        %569 = vmatpush.msra.mxu0 %v310
        %570 = vmatpush.msra.mxu0 %v306
        %571 = vmatpush.msra.mxu0 %v302
        %572 = vmatpush.msra.mxu0 %v298
        %573 = vmatpush.msra.mxu0 %v294
        %574 = vmatmul.f32.gmra.mxu0 %v379
        %v575 = vpop.f32.mrf.mxu0
        %v576 = vadd.f32 0.0, %v575
        %577 = vmatmul.f32.gmra.mxu0 %v384
        %v578 = vpop.f32.mrf.mxu0
        %v579 = vadd.f32 0.0, %v578
        %580 = vmatmul.f32.gmra.mxu0 %v388
        %v581 = vpop.f32.mrf.mxu0
        %v582 = vadd.f32 0.0, %v581
        %583 = vmatmul.f32.gmra.mxu0 %v392
        %v584 = vpop.f32.mrf.mxu0
        %v585 = vadd.f32 0.0, %v584
        %586 = vmatmul.f32.gmra.mxu0 %v396
        %v587 = vpop.f32.mrf.mxu0
        %v588 = vadd.f32 0.0, %v587
        %589 = vmatmul.f32.gmra.mxu0 %v395
        %v590 = vpop.f32.mrf.mxu0
        %v591 = vadd.f32 0.0, %v590
        %592 = vdwg.mxu0
        %593 = vmatpush.msra.mxu0 0.0
        %594 = vmatpush.msra.mxu0 0.0
        %595 = vmatpush.msra.mxu0 0.0
        %596 = vmatpush.msra.mxu0 0.0
        %597 = vmatpush.msra.mxu0 0.0
        %598 = vmatpush.msra.mxu0 0.0
        %599 = vmatpush.msra.mxu0 0.0
        %600 = vmatpush.msra.mxu0 0.0
        %601 = vmatpush.msra.mxu0 0.0
        %602 = vmatpush.msra.mxu0 0.0
        %603 = vmatpush.msra.mxu0 0.0
        %604 = vmatpush.msra.mxu0 0.0
        %605 = vmatpush.msra.mxu0 0.0
        %606 = vmatpush.msra.mxu0 0.0
        %607 = vmatpush.msra.mxu0 %v362
        %608 = vmatpush.msra.mxu0 %v358
        %609 = vmatmul.f32.gmra.mxu0 %v406
        %v610 = vpop.f32.mrf.mxu0
        %v611 = vadd.f32 %v576, %v610
        %612 = vmatmul.f32.gmra.mxu0 %v408
        %v613 = vpop.f32.mrf.mxu0
        %v614 = vadd.f32 %v579, %v613
        %615 = vmatmul.f32.gmra.mxu0 %v410
        %v616 = vpop.f32.mrf.mxu0
        %v617 = vadd.f32 %v582, %v616
        %618 = vmatmul.f32.gmra.mxu0 %v412
        %v619 = vpop.f32.mrf.mxu0
        %v620 = vadd.f32 %v585, %v619
        %621 = vmatmul.f32.gmra.mxu0 %v414
        %v622 = vpop.f32.mrf.mxu0
        %v623 = vadd.f32 %v588, %v622
        %624 = vmatmul.f32.gmra.mxu0 %v416
        %v625 = vpop.f32.mrf.mxu0
        %v626 = vadd.f32 %v591, %v625
        %627 = vdwg.mxu0
        %628 = vmatpush.msra.mxu0 %v355
        %629 = vmatpush.msra.mxu0 %v351
        %630 = vmatpush.msra.mxu0 %v347
        %631 = vmatpush.msra.mxu0 %v343
        %632 = vmatpush.msra.mxu0 %v339
        %633 = vmatpush.msra.mxu0 %v335
        %634 = vmatpush.msra.mxu0 %v331
        %635 = vmatpush.msra.mxu0 %v327
        %636 = vmatpush.msra.mxu0 %v323
        %637 = vmatpush.msra.mxu0 %v319
        %638 = vmatpush.msra.mxu0 %v315
        %639 = vmatpush.msra.mxu0 %v311
        %640 = vmatpush.msra.mxu0 %v307
        %641 = vmatpush.msra.mxu0 %v303
        %642 = vmatpush.msra.mxu0 %v299
        %643 = vmatpush.msra.mxu0 %v295
        %644 = vmatmul.f32.gmra.mxu0 %v379
        %v645 = vpop.f32.mrf.mxu0
        %v646 = vadd.f32 0.0, %v645
        %647 = vmatmul.f32.gmra.mxu0 %v384
        %v648 = vpop.f32.mrf.mxu0
        %v649 = vadd.f32 0.0, %v648
        %650 = vmatmul.f32.gmra.mxu0 %v388
        %v651 = vpop.f32.mrf.mxu0
        %v652 = vadd.f32 0.0, %v651
        %653 = vmatmul.f32.gmra.mxu0 %v392
        %v654 = vpop.f32.mrf.mxu0
        %v655 = vadd.f32 0.0, %v654
        %656 = vmatmul.f32.gmra.mxu0 %v396
        %v657 = vpop.f32.mrf.mxu0
        %v658 = vadd.f32 0.0, %v657
        %659 = vmatmul.f32.gmra.mxu0 %v395
        %v660 = vpop.f32.mrf.mxu0
        %v661 = vadd.f32 0.0, %v660
        %662 = vdwg.mxu0
        %663 = vmatpush.msra.mxu0 0.0
        %664 = vmatpush.msra.mxu0 0.0
        %665 = vmatpush.msra.mxu0 0.0
        %666 = vmatpush.msra.mxu0 0.0
        %667 = vmatpush.msra.mxu0 0.0
        %668 = vmatpush.msra.mxu0 0.0
        %669 = vmatpush.msra.mxu0 0.0
        %670 = vmatpush.msra.mxu0 0.0
        %671 = vmatpush.msra.mxu0 0.0
        %672 = vmatpush.msra.mxu0 0.0
        %673 = vmatpush.msra.mxu0 0.0
        %674 = vmatpush.msra.mxu0 0.0
        %675 = vmatpush.msra.mxu0 0.0
        %676 = vmatpush.msra.mxu0 0.0
        %677 = vmatpush.msra.mxu0 %v363
        %678 = vmatpush.msra.mxu0 %v359
        %679 = vmatmul.f32.gmra.mxu0 %v406
        %v680 = vpop.f32.mrf.mxu0
        %v681 = vadd.f32 %v646, %v680
        %682 = vmatmul.f32.gmra.mxu0 %v408
        %v683 = vpop.f32.mrf.mxu0
        %v684 = vadd.f32 %v649, %v683
        %685 = vmatmul.f32.gmra.mxu0 %v410
        %v686 = vpop.f32.mrf.mxu0
        %v687 = vadd.f32 %v652, %v686
        %688 = vmatmul.f32.gmra.mxu0 %v412
        %v689 = vpop.f32.mrf.mxu0
        %v690 = vadd.f32 %v655, %v689
        %691 = vmatmul.f32.gmra.mxu0 %v414
        %v692 = vpop.f32.mrf.mxu0
        %v693 = vadd.f32 %v658, %v692
        %694 = vmatmul.f32.gmra.mxu0 %v416
        %v695 = vpop.f32.mrf.mxu0
        %v696 = vadd.f32 %v661, %v695
        %697 = vdwg.mxu0
        %v699 = vsel %vm405, %v204, 0
        %v701 = vsel %vm405, %v206, 0
        %v703 = vsel %vm405, %v208, 0
        %v705 = vsel %vm405, %v210, 0
        %v707 = vsel %vm405, %v212, 0
        %v710 = vsel %vm405, %v214, 0
        %712 = vmatpush.msra.mxu0 %v275
        %713 = vmatpush.msra.mxu0 %v271
        %714 = vmatpush.msra.mxu0 %v267
        %715 = vmatpush.msra.mxu0 %v263
        %716 = vmatpush.msra.mxu0 %v259
        %717 = vmatpush.msra.mxu0 %v255
        %718 = vmatpush.msra.mxu0 %v251
        %719 = vmatpush.msra.mxu0 %v247
        %720 = vmatpush.msra.mxu0 %v243
        %721 = vmatpush.msra.mxu0 %v239
        %722 = vmatpush.msra.mxu0 %v235
        %723 = vmatpush.msra.mxu0 %v231
        %724 = vmatpush.msra.mxu0 %v227
        %725 = vmatpush.msra.mxu0 %v223
        %726 = vmatpush.msra.mxu0 %v219
        %727 = vmatpush.msra.mxu0 %v215
        %728 = vmatmul.f32.gmra.mxu0 %v203
        %v729 = vpop.f32.mrf.mxu0
        %v730 = vadd.f32 %v471, %v729
        %731 = vmatmul.f32.gmra.mxu0 %v205
        %v732 = vpop.f32.mrf.mxu0
        %v733 = vadd.f32 %v474, %v732
        %734 = vmatmul.f32.gmra.mxu0 %v207
        %v735 = vpop.f32.mrf.mxu0
        %v736 = vadd.f32 %v477, %v735
        %737 = vmatmul.f32.gmra.mxu0 %v209
        %v738 = vpop.f32.mrf.mxu0
        %v739 = vadd.f32 %v480, %v738
        %740 = vmatmul.f32.gmra.mxu0 %v211
        %v741 = vpop.f32.mrf.mxu0
        %v742 = vadd.f32 %v483, %v741
        %743 = vmatmul.f32.gmra.mxu0 %v213
        %v744 = vpop.f32.mrf.mxu0
        %v745 = vadd.f32 %v486, %v744
        %746 = vdwg.mxu0
        %747 = vmatpush.msra.mxu0 0.0
        %748 = vmatpush.msra.mxu0 0.0
        %749 = vmatpush.msra.mxu0 0.0
        %750 = vmatpush.msra.mxu0 0.0
        %751 = vmatpush.msra.mxu0 0.0
        %752 = vmatpush.msra.mxu0 0.0
        %753 = vmatpush.msra.mxu0 0.0
        %754 = vmatpush.msra.mxu0 0.0
        %755 = vmatpush.msra.mxu0 0.0
        %756 = vmatpush.msra.mxu0 0.0
        %757 = vmatpush.msra.mxu0 0.0
        %758 = vmatpush.msra.mxu0 0.0
        %759 = vmatpush.msra.mxu0 0.0
        %760 = vmatpush.msra.mxu0 0.0
        %761 = vmatpush.msra.mxu0 %v283
        %762 = vmatpush.msra.mxu0 %v279
        %763 = vmatmul.f32.gmra.mxu0 %v699
        %v764 = vpop.f32.mrf.mxu0
        %v765 = vadd.f32 %v730, %v764
        %766 = vmatmul.f32.gmra.mxu0 %v701
        %v767 = vpop.f32.mrf.mxu0
        %v768 = vadd.f32 %v733, %v767
        %769 = vmatmul.f32.gmra.mxu0 %v703
        %v770 = vpop.f32.mrf.mxu0
        %v771 = vadd.f32 %v736, %v770
        %772 = vmatmul.f32.gmra.mxu0 %v705
        %v773 = vpop.f32.mrf.mxu0
        %v774 = vadd.f32 %v739, %v773
        %775 = vmatmul.f32.gmra.mxu0 %v707
        %v776 = vpop.f32.mrf.mxu0
        %v777 = vadd.f32 %v742, %v776
        %778 = vmatmul.f32.gmra.mxu0 %v710
        %v779 = vpop.f32.mrf.mxu0
        %v780 = vadd.f32 %v745, %v779
        %781 = vdwg.mxu0
        %782 = vmatpush.msra.mxu0 %v276
        %783 = vmatpush.msra.mxu0 %v272
        %784 = vmatpush.msra.mxu0 %v268
        %785 = vmatpush.msra.mxu0 %v264
        %786 = vmatpush.msra.mxu0 %v260
        %787 = vmatpush.msra.mxu0 %v256
        %788 = vmatpush.msra.mxu0 %v252
        %789 = vmatpush.msra.mxu0 %v248
        %790 = vmatpush.msra.mxu0 %v244
        %791 = vmatpush.msra.mxu0 %v240
        %792 = vmatpush.msra.mxu0 %v236
        %793 = vmatpush.msra.mxu0 %v232
        %794 = vmatpush.msra.mxu0 %v228
        %795 = vmatpush.msra.mxu0 %v224
        %796 = vmatpush.msra.mxu0 %v220
        %797 = vmatpush.msra.mxu0 %v216
        %798 = vmatmul.f32.gmra.mxu0 %v203
        %v799 = vpop.f32.mrf.mxu0
        %v800 = vadd.f32 %v541, %v799
        %801 = vmatmul.f32.gmra.mxu0 %v205
        %v802 = vpop.f32.mrf.mxu0
        %v803 = vadd.f32 %v544, %v802
        %804 = vmatmul.f32.gmra.mxu0 %v207
        %v805 = vpop.f32.mrf.mxu0
        %v806 = vadd.f32 %v547, %v805
        %807 = vmatmul.f32.gmra.mxu0 %v209
        %v808 = vpop.f32.mrf.mxu0
        %v809 = vadd.f32 %v550, %v808
        %810 = vmatmul.f32.gmra.mxu0 %v211
        %v811 = vpop.f32.mrf.mxu0
        %v812 = vadd.f32 %v553, %v811
        %813 = vmatmul.f32.gmra.mxu0 %v213
        %v814 = vpop.f32.mrf.mxu0
        %v815 = vadd.f32 %v556, %v814
        %816 = vdwg.mxu0
        %817 = vmatpush.msra.mxu0 0.0
        %818 = vmatpush.msra.mxu0 0.0
        %819 = vmatpush.msra.mxu0 0.0
        %820 = vmatpush.msra.mxu0 0.0
        %821 = vmatpush.msra.mxu0 0.0
        %822 = vmatpush.msra.mxu0 0.0
        %823 = vmatpush.msra.mxu0 0.0
        %824 = vmatpush.msra.mxu0 0.0
        %825 = vmatpush.msra.mxu0 0.0
        %826 = vmatpush.msra.mxu0 0.0
        %827 = vmatpush.msra.mxu0 0.0
        %828 = vmatpush.msra.mxu0 0.0
        %829 = vmatpush.msra.mxu0 0.0
        %830 = vmatpush.msra.mxu0 0.0
        %831 = vmatpush.msra.mxu0 %v284
        %832 = vmatpush.msra.mxu0 %v280
        %833 = vmatmul.f32.gmra.mxu0 %v699
        %v834 = vpop.f32.mrf.mxu0
        %v835 = vadd.f32 %v800, %v834
        %836 = vmatmul.f32.gmra.mxu0 %v701
        %v837 = vpop.f32.mrf.mxu0
        %v838 = vadd.f32 %v803, %v837
        %839 = vmatmul.f32.gmra.mxu0 %v703
        %v840 = vpop.f32.mrf.mxu0
        %v841 = vadd.f32 %v806, %v840
        %842 = vmatmul.f32.gmra.mxu0 %v705
        %v843 = vpop.f32.mrf.mxu0
        %v844 = vadd.f32 %v809, %v843
        %845 = vmatmul.f32.gmra.mxu0 %v707
        %v846 = vpop.f32.mrf.mxu0
        %v847 = vadd.f32 %v812, %v846
        %848 = vmatmul.f32.gmra.mxu0 %v710
        %v849 = vpop.f32.mrf.mxu0
        %v850 = vadd.f32 %v815, %v849
        %851 = vdwg.mxu0
        %852 = vmatpush.msra.mxu0 %v277
        %853 = vmatpush.msra.mxu0 %v273
        %854 = vmatpush.msra.mxu0 %v269
        %855 = vmatpush.msra.mxu0 %v265
        %856 = vmatpush.msra.mxu0 %v261
        %857 = vmatpush.msra.mxu0 %v257
        %858 = vmatpush.msra.mxu0 %v253
        %859 = vmatpush.msra.mxu0 %v249
        %860 = vmatpush.msra.mxu0 %v245
        %861 = vmatpush.msra.mxu0 %v241
        %862 = vmatpush.msra.mxu0 %v237
        %863 = vmatpush.msra.mxu0 %v233
        %864 = vmatpush.msra.mxu0 %v229
        %865 = vmatpush.msra.mxu0 %v225
        %866 = vmatpush.msra.mxu0 %v221
        %867 = vmatpush.msra.mxu0 %v217
        %868 = vmatmul.f32.gmra.mxu0 %v203
        %v869 = vpop.f32.mrf.mxu0
        %v870 = vadd.f32 %v611, %v869
        %871 = vmatmul.f32.gmra.mxu0 %v205
        %v872 = vpop.f32.mrf.mxu0
        %v873 = vadd.f32 %v614, %v872
        %874 = vmatmul.f32.gmra.mxu0 %v207
        %v875 = vpop.f32.mrf.mxu0
        %v876 = vadd.f32 %v617, %v875
        %877 = vmatmul.f32.gmra.mxu0 %v209
        %v878 = vpop.f32.mrf.mxu0
        %v879 = vadd.f32 %v620, %v878
        %880 = vmatmul.f32.gmra.mxu0 %v211
        %v881 = vpop.f32.mrf.mxu0
        %v882 = vadd.f32 %v623, %v881
        %883 = vmatmul.f32.gmra.mxu0 %v213
        %v884 = vpop.f32.mrf.mxu0
        %v885 = vadd.f32 %v626, %v884
        %886 = vdwg.mxu0
        %887 = vmatpush.msra.mxu0 0.0
        %888 = vmatpush.msra.mxu0 0.0
        %889 = vmatpush.msra.mxu0 0.0
        %890 = vmatpush.msra.mxu0 0.0
        %891 = vmatpush.msra.mxu0 0.0
        %892 = vmatpush.msra.mxu0 0.0
        %893 = vmatpush.msra.mxu0 0.0
        %894 = vmatpush.msra.mxu0 0.0
        %895 = vmatpush.msra.mxu0 0.0
        %896 = vmatpush.msra.mxu0 0.0
        %897 = vmatpush.msra.mxu0 0.0
        %898 = vmatpush.msra.mxu0 0.0
        %899 = vmatpush.msra.mxu0 0.0
        %900 = vmatpush.msra.mxu0 0.0
        %901 = vmatpush.msra.mxu0 %v285
        %902 = vmatpush.msra.mxu0 %v281
        %903 = vmatmul.f32.gmra.mxu0 %v699
        %v904 = vpop.f32.mrf.mxu0
        %v905 = vadd.f32 %v870, %v904
        %906 = vmatmul.f32.gmra.mxu0 %v701
        %v907 = vpop.f32.mrf.mxu0
        %v908 = vadd.f32 %v873, %v907
        %909 = vmatmul.f32.gmra.mxu0 %v703
        %v910 = vpop.f32.mrf.mxu0
        %v911 = vadd.f32 %v876, %v910
        %912 = vmatmul.f32.gmra.mxu0 %v705
        %v913 = vpop.f32.mrf.mxu0
        %v914 = vadd.f32 %v879, %v913
        %915 = vmatmul.f32.gmra.mxu0 %v707
        %v916 = vpop.f32.mrf.mxu0
        %v917 = vadd.f32 %v882, %v916
        %918 = vmatmul.f32.gmra.mxu0 %v710
        %v919 = vpop.f32.mrf.mxu0
        %v920 = vadd.f32 %v885, %v919
        %921 = vdwg.mxu0
        %922 = vmatpush.msra.mxu0 %v278
        %923 = vmatpush.msra.mxu0 %v274
        %924 = vmatpush.msra.mxu0 %v270
        %925 = vmatpush.msra.mxu0 %v266
        %926 = vmatpush.msra.mxu0 %v262
        %927 = vmatpush.msra.mxu0 %v258
        %928 = vmatpush.msra.mxu0 %v254
        %929 = vmatpush.msra.mxu0 %v250
        %930 = vmatpush.msra.mxu0 %v246
        %931 = vmatpush.msra.mxu0 %v242
        %932 = vmatpush.msra.mxu0 %v238
        %933 = vmatpush.msra.mxu0 %v234
        %934 = vmatpush.msra.mxu0 %v230
        %935 = vmatpush.msra.mxu0 %v226
        %936 = vmatpush.msra.mxu0 %v222
        %937 = vmatpush.msra.mxu0 %v218
        %938 = vmatmul.f32.gmra.mxu0 %v203
        %v939 = vpop.f32.mrf.mxu0
        %v940 = vadd.f32 %v681, %v939
        %941 = vmatmul.f32.gmra.mxu0 %v205
        %v942 = vpop.f32.mrf.mxu0
        %v943 = vadd.f32 %v684, %v942
        %944 = vmatmul.f32.gmra.mxu0 %v207
        %v945 = vpop.f32.mrf.mxu0
        %v946 = vadd.f32 %v687, %v945
        %947 = vmatmul.f32.gmra.mxu0 %v209
        %v948 = vpop.f32.mrf.mxu0
        %v949 = vadd.f32 %v690, %v948
        %950 = vmatmul.f32.gmra.mxu0 %v211
        %v951 = vpop.f32.mrf.mxu0
        %v952 = vadd.f32 %v693, %v951
        %953 = vmatmul.f32.gmra.mxu0 %v213
        %v954 = vpop.f32.mrf.mxu0
        %v955 = vadd.f32 %v696, %v954
        %956 = vdwg.mxu0
        %957 = vmatpush.msra.mxu0 0.0
        %958 = vmatpush.msra.mxu0 0.0
        %959 = vmatpush.msra.mxu0 0.0
        %960 = vmatpush.msra.mxu0 0.0
        %961 = vmatpush.msra.mxu0 0.0
        %962 = vmatpush.msra.mxu0 0.0
        %963 = vmatpush.msra.mxu0 0.0
        %964 = vmatpush.msra.mxu0 0.0
        %965 = vmatpush.msra.mxu0 0.0
        %966 = vmatpush.msra.mxu0 0.0
        %967 = vmatpush.msra.mxu0 0.0
        %968 = vmatpush.msra.mxu0 0.0
        %969 = vmatpush.msra.mxu0 0.0
        %970 = vmatpush.msra.mxu0 0.0
        %971 = vmatpush.msra.mxu0 %v286
        %972 = vmatpush.msra.mxu0 %v282
        %973 = vmatmul.f32.gmra.mxu0 %v699
        %v974 = vpop.f32.mrf.mxu0
        %v975 = vadd.f32 %v940, %v974
        %976 = vmatmul.f32.gmra.mxu0 %v701
        %v977 = vpop.f32.mrf.mxu0
        %v978 = vadd.f32 %v943, %v977
        %979 = vmatmul.f32.gmra.mxu0 %v703
        %v980 = vpop.f32.mrf.mxu0
        %v981 = vadd.f32 %v946, %v980
        %982 = vmatmul.f32.gmra.mxu0 %v705
        %v983 = vpop.f32.mrf.mxu0
        %v984 = vadd.f32 %v949, %v983
        %985 = vmatmul.f32.gmra.mxu0 %v707
        %v986 = vpop.f32.mrf.mxu0
        %v987 = vadd.f32 %v952, %v986
        %988 = vmatmul.f32.gmra.mxu0 %v710
        %v989 = vpop.f32.mrf.mxu0
        %v990 = vadd.f32 %v955, %v989
        %991 = vdwg.mxu0
        %v992 = vld [vmem:[%s197] sm:$0xfc]
        %v993 = vld [vmem:[%s197 + $0x8] sm:$0xfc]
        %v994 = vld [vmem:[%s197 + $0x50] sm:$0x3f]
        %v995 = vld [vmem:[%s197 + $0x58] sm:$0x3f]
        %s996 = scalar_lea.vmem [#allocation3], 1152
        %v997 = vld [vmem:[%s996] sm:$0xff]
        %v998 = vld [vmem:[%s996 + $0x8] sm:$0xff]
        %v999 = vld [vmem:[%s996 + $0x10] sm:$0xff]
        %v1000 = vld [vmem:[%s996 + $0x18] sm:$0xff]
        %v1001 = vld [vmem:[%s996 + $0x20] sm:$0xff]
        %v1002 = vld [vmem:[%s996 + $0x28] sm:$0xff]
        %v1003 = vld [vmem:[%s996 + $0x30] sm:$0xff]
        %v1004 = vld [vmem:[%s996 + $0x38] sm:$0xff]
        %v1005 = vld [vmem:[%s996 + $0x40] sm:$0xff]
        %v1006 = vld [vmem:[%s996 + $0x48] sm:$0xff]
        %v1007 = vld [vmem:[%s996 + $0x50] sm:$0xff]
        %v1008 = vld [vmem:[%s996 + $0x58] sm:$0xff]
        %v1009 = vld [vmem:[%s996 + $0x60] sm:$0xff]
        %v1010 = vld [vmem:[%s996 + $0x68] sm:$0xff]
        %v1011 = vld [vmem:[%s996 + $0x70] sm:$0xff]
        %v1012 = vld [vmem:[%s996 + $0x78] sm:$0xff]
        %v1013 = vld [vmem:[%s996 + $0x80] sm:$0xff]
        %v1014 = vld [vmem:[%s996 + $0x88] sm:$0xff]
        %v1015 = vld [vmem:[%s996 + $0x90] sm:$0xff]
        %v1016 = vld [vmem:[%s996 + $0x98] sm:$0xff]
        %v1017 = vld [vmem:[%s996 + $0xa0] sm:$0xff]
        %v1018 = vld [vmem:[%s996 + $0xa8] sm:$0xff]
        %v1019 = vld [vmem:[%s996 + $0xb0] sm:$0xff]
        %v1020 = vld [vmem:[%s996 + $0xb8] sm:$0xff]
        %v1021 = vld [vmem:[%s996 + $0xc0] sm:$0xff]
        %v1022 = vld [vmem:[%s996 + $0xc8] sm:$0xff]
        %v1023 = vld [vmem:[%s996 + $0xd0] sm:$0xff]
        %v1024 = vld [vmem:[%s996 + $0xd8] sm:$0xff]
        %v1025 = vld [vmem:[%s996 + $0xe0] sm:$0xff]
        %v1026 = vld [vmem:[%s996 + $0xe8] sm:$0xff]
        %v1027 = vld [vmem:[%s996 + $0xf0] sm:$0xff]
        %v1028 = vld [vmem:[%s996 + $0xf8] sm:$0xff]
        %v1029 = vld [vmem:[%s996 + $0x100] sm:$0xff]
        %v1030 = vld [vmem:[%s996 + $0x108] sm:$0xff]
        %v1031 = vld [vmem:[%s996 + $0x110] sm:$0xff]
        %v1032 = vld [vmem:[%s996 + $0x118] sm:$0xff]
        %v1033 = vld [vmem:[%s996 + $0x120] sm:$0xff]
        %v1034 = vld [vmem:[%s996 + $0x128] sm:$0xff]
        %v1035 = vld [vmem:[%s996 + $0x130] sm:$0xff]
        %v1036 = vld [vmem:[%s996 + $0x138] sm:$0xff]
        %v1037 = vld [vmem:[%s996 + $0x140] sm:$0xff]
        %v1038 = vld [vmem:[%s996 + $0x148] sm:$0xff]
        %v1039 = vld [vmem:[%s996 + $0x150] sm:$0xff]
        %v1040 = vld [vmem:[%s996 + $0x158] sm:$0xff]
        %v1041 = vld [vmem:[%s996 + $0x160] sm:$0xff]
        %v1042 = vld [vmem:[%s996 + $0x168] sm:$0xff]
        %v1043 = vld [vmem:[%s996 + $0x170] sm:$0xff]
        %v1044 = vld [vmem:[%s996 + $0x178] sm:$0xff]
        %v1045 = vld [vmem:[%s996 + $0x180] sm:$0xff]
        %v1046 = vld [vmem:[%s996 + $0x188] sm:$0xff]
        %v1047 = vld [vmem:[%s996 + $0x190] sm:$0xff]
        %v1048 = vld [vmem:[%s996 + $0x198] sm:$0xff]
        %v1049 = vld [vmem:[%s996 + $0x1a0] sm:$0xff]
        %v1050 = vld [vmem:[%s996 + $0x1a8] sm:$0xff]
        %v1051 = vld [vmem:[%s996 + $0x1b0] sm:$0xff]
        %v1052 = vld [vmem:[%s996 + $0x1b8] sm:$0xff]
        %v1053 = vld [vmem:[%s996 + $0x1c0] sm:$0xff]
        %v1054 = vld [vmem:[%s996 + $0x1c8] sm:$0xff]
        %v1055 = vld [vmem:[%s996 + $0x1d0] sm:$0xff]
        %v1056 = vld [vmem:[%s996 + $0x1d8] sm:$0xff]
        %v1057 = vld [vmem:[%s996 + $0x1e0] sm:$0xff]
        %v1058 = vld [vmem:[%s996 + $0x1e8] sm:$0xff]
        %v1059 = vld [vmem:[%s996 + $0x1f0] sm:$0xff]
        %v1060 = vld [vmem:[%s996 + $0x1f8] sm:$0xff]
        %v1061 = vld [vmem:[%s996 + $0x200] sm:$0xff]
        %v1062 = vld [vmem:[%s996 + $0x208] sm:$0xff]
        %v1063 = vld [vmem:[%s996 + $0x210] sm:$0xff]
        %v1064 = vld [vmem:[%s996 + $0x218] sm:$0xff]
        %v1065 = vld [vmem:[%s996 + $0x220] sm:$0xff]
        %v1066 = vld [vmem:[%s996 + $0x228] sm:$0xff]
        %v1067 = vld [vmem:[%s996 + $0x230] sm:$0xff]
        %v1068 = vld [vmem:[%s996 + $0x238] sm:$0xff]
        %vm1073 = vcmask 1045504
        %v1074 = vrot.slane %v992, 2
        %v1075 = vrot.slane %v205, 2
        %v1076 = vsel %vm1073, %v1074, %v1075
        %v1077 = vrot.slane %v993, 2
        %v1078 = vrot.slane %v206, 2
        %v1079 = vsel %vm1073, %v1077, %v1078
        %v1080 = vrot.slane %v207, 2
        %v1081 = vsel %vm1073, %v1075, %v1080
        %v1082 = vrot.slane %v208, 2
        %v1083 = vsel %vm1073, %v1078, %v1082
        %v1084 = vrot.slane %v209, 2
        %v1085 = vsel %vm1073, %v1080, %v1084
        %v1086 = vrot.slane %v210, 2
        %v1087 = vsel %vm1073, %v1082, %v1086
        %v1088 = vrot.slane %v211, 2
        %v1089 = vsel %vm1073, %v1084, %v1088
        %v1090 = vrot.slane %v212, 2
        %v1091 = vsel %vm1073, %v1086, %v1090
        %v1092 = vrot.slane %v994, 2
        %v1093 = vsel %vm1073, %v1088, %v1092
        %v1094 = vrot.slane %v995, 2
        %v1095 = vsel %vm1073, %v1090, %v1094
        %v1102 = vsel %vm405, %v1079, 0
        %v1104 = vsel %vm405, %v1083, 0
        %v1106 = vsel %vm405, %v1087, 0
        %v1108 = vsel %vm405, %v1091, 0
        %v1110 = vsel %vm405, %v1095, 0
        %v1112 = vsel %vm405, %v1094, 0
        %1114 = vmatpush.msra.mxu0 %v1057
        %1115 = vmatpush.msra.mxu0 %v1053
        %1116 = vmatpush.msra.mxu0 %v1049
        %1117 = vmatpush.msra.mxu0 %v1045
        %1118 = vmatpush.msra.mxu0 %v1041
        %1119 = vmatpush.msra.mxu0 %v1037
        %1120 = vmatpush.msra.mxu0 %v1033
        %1121 = vmatpush.msra.mxu0 %v1029
        %1122 = vmatpush.msra.mxu0 %v1025
        %1123 = vmatpush.msra.mxu0 %v1021
        %1124 = vmatpush.msra.mxu0 %v1017
        %1125 = vmatpush.msra.mxu0 %v1013
        %1126 = vmatpush.msra.mxu0 %v1009
        %1127 = vmatpush.msra.mxu0 %v1005
        %1128 = vmatpush.msra.mxu0 %v1001
        %1129 = vmatpush.msra.mxu0 %v997
        %1130 = vmatmul.f32.gmra.mxu0 %v1076
        %v1131 = vpop.f32.mrf.mxu0
        %v1132 = vadd.f32 0.0, %v1131
        %1133 = vmatmul.f32.gmra.mxu0 %v1081
        %v1134 = vpop.f32.mrf.mxu0
        %v1135 = vadd.f32 0.0, %v1134
        %1136 = vmatmul.f32.gmra.mxu0 %v1085
        %v1137 = vpop.f32.mrf.mxu0
        %v1138 = vadd.f32 0.0, %v1137
        %1139 = vmatmul.f32.gmra.mxu0 %v1089
        %v1140 = vpop.f32.mrf.mxu0
        %v1141 = vadd.f32 0.0, %v1140
        %1142 = vmatmul.f32.gmra.mxu0 %v1093
        %v1143 = vpop.f32.mrf.mxu0
        %v1144 = vadd.f32 0.0, %v1143
        %1145 = vmatmul.f32.gmra.mxu0 %v1092
        %v1146 = vpop.f32.mrf.mxu0
        %v1147 = vadd.f32 0.0, %v1146
        %1148 = vdwg.mxu0
        %1149 = vmatpush.msra.mxu0 0.0
        %1150 = vmatpush.msra.mxu0 0.0
        %1151 = vmatpush.msra.mxu0 0.0
        %1152 = vmatpush.msra.mxu0 0.0
        %1153 = vmatpush.msra.mxu0 0.0
        %1154 = vmatpush.msra.mxu0 0.0
        %1155 = vmatpush.msra.mxu0 0.0
        %1156 = vmatpush.msra.mxu0 0.0
        %1157 = vmatpush.msra.mxu0 0.0
        %1158 = vmatpush.msra.mxu0 0.0
        %1159 = vmatpush.msra.mxu0 0.0
        %1160 = vmatpush.msra.mxu0 0.0
        %1161 = vmatpush.msra.mxu0 0.0
        %1162 = vmatpush.msra.mxu0 0.0
        %1163 = vmatpush.msra.mxu0 %v1065
        %1164 = vmatpush.msra.mxu0 %v1061
        %1165 = vmatmul.f32.gmra.mxu0 %v1102
        %v1166 = vpop.f32.mrf.mxu0
        %v1167 = vadd.f32 %v1132, %v1166
        %1168 = vmatmul.f32.gmra.mxu0 %v1104
        %v1169 = vpop.f32.mrf.mxu0
        %v1170 = vadd.f32 %v1135, %v1169
        %1171 = vmatmul.f32.gmra.mxu0 %v1106
        %v1172 = vpop.f32.mrf.mxu0
        %v1173 = vadd.f32 %v1138, %v1172
        %1174 = vmatmul.f32.gmra.mxu0 %v1108
        %v1175 = vpop.f32.mrf.mxu0
        %v1176 = vadd.f32 %v1141, %v1175
        %1177 = vmatmul.f32.gmra.mxu0 %v1110
        %v1178 = vpop.f32.mrf.mxu0
        %v1179 = vadd.f32 %v1144, %v1178
        %1180 = vmatmul.f32.gmra.mxu0 %v1112
        %v1181 = vpop.f32.mrf.mxu0
        %v1182 = vadd.f32 %v1147, %v1181
        %1183 = vdwg.mxu0
        %1184 = vmatpush.msra.mxu0 %v1058
        %1185 = vmatpush.msra.mxu0 %v1054
        %1186 = vmatpush.msra.mxu0 %v1050
        %1187 = vmatpush.msra.mxu0 %v1046
        %1188 = vmatpush.msra.mxu0 %v1042
        %1189 = vmatpush.msra.mxu0 %v1038
        %1190 = vmatpush.msra.mxu0 %v1034
        %1191 = vmatpush.msra.mxu0 %v1030
        %1192 = vmatpush.msra.mxu0 %v1026
        %1193 = vmatpush.msra.mxu0 %v1022
        %1194 = vmatpush.msra.mxu0 %v1018
        %1195 = vmatpush.msra.mxu0 %v1014
        %1196 = vmatpush.msra.mxu0 %v1010
        %1197 = vmatpush.msra.mxu0 %v1006
        %1198 = vmatpush.msra.mxu0 %v1002
        %1199 = vmatpush.msra.mxu0 %v998
        %1200 = vmatmul.f32.gmra.mxu0 %v1076
        %v1201 = vpop.f32.mrf.mxu0
        %v1202 = vadd.f32 0.0, %v1201
        %1203 = vmatmul.f32.gmra.mxu0 %v1081
        %v1204 = vpop.f32.mrf.mxu0
        %v1205 = vadd.f32 0.0, %v1204
        %1206 = vmatmul.f32.gmra.mxu0 %v1085
        %v1207 = vpop.f32.mrf.mxu0
        %v1208 = vadd.f32 0.0, %v1207
        %1209 = vmatmul.f32.gmra.mxu0 %v1089
        %v1210 = vpop.f32.mrf.mxu0
        %v1211 = vadd.f32 0.0, %v1210
        %1212 = vmatmul.f32.gmra.mxu0 %v1093
        %v1213 = vpop.f32.mrf.mxu0
        %v1214 = vadd.f32 0.0, %v1213
        %1215 = vmatmul.f32.gmra.mxu0 %v1092
        %v1216 = vpop.f32.mrf.mxu0
        %v1217 = vadd.f32 0.0, %v1216
        %1218 = vdwg.mxu0
        %1219 = vmatpush.msra.mxu0 0.0
        %1220 = vmatpush.msra.mxu0 0.0
        %1221 = vmatpush.msra.mxu0 0.0
        %1222 = vmatpush.msra.mxu0 0.0
        %1223 = vmatpush.msra.mxu0 0.0
        %1224 = vmatpush.msra.mxu0 0.0
        %1225 = vmatpush.msra.mxu0 0.0
        %1226 = vmatpush.msra.mxu0 0.0
        %1227 = vmatpush.msra.mxu0 0.0
        %1228 = vmatpush.msra.mxu0 0.0
        %1229 = vmatpush.msra.mxu0 0.0
        %1230 = vmatpush.msra.mxu0 0.0
        %1231 = vmatpush.msra.mxu0 0.0
        %1232 = vmatpush.msra.mxu0 0.0
        %1233 = vmatpush.msra.mxu0 %v1066
        %1234 = vmatpush.msra.mxu0 %v1062
        %1235 = vmatmul.f32.gmra.mxu0 %v1102
        %v1236 = vpop.f32.mrf.mxu0
        %v1237 = vadd.f32 %v1202, %v1236
        %1238 = vmatmul.f32.gmra.mxu0 %v1104
        %v1239 = vpop.f32.mrf.mxu0
        %v1240 = vadd.f32 %v1205, %v1239
        %1241 = vmatmul.f32.gmra.mxu0 %v1106
        %v1242 = vpop.f32.mrf.mxu0
        %v1243 = vadd.f32 %v1208, %v1242
        %1244 = vmatmul.f32.gmra.mxu0 %v1108
        %v1245 = vpop.f32.mrf.mxu0
        %v1246 = vadd.f32 %v1211, %v1245
        %1247 = vmatmul.f32.gmra.mxu0 %v1110
        %v1248 = vpop.f32.mrf.mxu0
        %v1249 = vadd.f32 %v1214, %v1248
        %1250 = vmatmul.f32.gmra.mxu0 %v1112
        %v1251 = vpop.f32.mrf.mxu0
        %v1252 = vadd.f32 %v1217, %v1251
        %1253 = vdwg.mxu0
        %1254 = vmatpush.msra.mxu0 %v1059
        %1255 = vmatpush.msra.mxu0 %v1055
        %1256 = vmatpush.msra.mxu0 %v1051
        %1257 = vmatpush.msra.mxu0 %v1047
        %1258 = vmatpush.msra.mxu0 %v1043
        %1259 = vmatpush.msra.mxu0 %v1039
        %1260 = vmatpush.msra.mxu0 %v1035
        %1261 = vmatpush.msra.mxu0 %v1031
        %1262 = vmatpush.msra.mxu0 %v1027
        %1263 = vmatpush.msra.mxu0 %v1023
        %1264 = vmatpush.msra.mxu0 %v1019
        %1265 = vmatpush.msra.mxu0 %v1015
        %1266 = vmatpush.msra.mxu0 %v1011
        %1267 = vmatpush.msra.mxu0 %v1007
        %1268 = vmatpush.msra.mxu0 %v1003
        %1269 = vmatpush.msra.mxu0 %v999
        %1270 = vmatmul.f32.gmra.mxu0 %v1076
        %v1271 = vpop.f32.mrf.mxu0
        %v1272 = vadd.f32 0.0, %v1271
        %1273 = vmatmul.f32.gmra.mxu0 %v1081
        %v1274 = vpop.f32.mrf.mxu0
        %v1275 = vadd.f32 0.0, %v1274
        %1276 = vmatmul.f32.gmra.mxu0 %v1085
        %v1277 = vpop.f32.mrf.mxu0
        %v1278 = vadd.f32 0.0, %v1277
        %1279 = vmatmul.f32.gmra.mxu0 %v1089
        %v1280 = vpop.f32.mrf.mxu0
        %v1281 = vadd.f32 0.0, %v1280
        %1282 = vmatmul.f32.gmra.mxu0 %v1093
        %v1283 = vpop.f32.mrf.mxu0
        %v1284 = vadd.f32 0.0, %v1283
        %1285 = vmatmul.f32.gmra.mxu0 %v1092
        %v1286 = vpop.f32.mrf.mxu0
        %v1287 = vadd.f32 0.0, %v1286
        %1288 = vdwg.mxu0
        %1289 = vmatpush.msra.mxu0 0.0
        %1290 = vmatpush.msra.mxu0 0.0
        %1291 = vmatpush.msra.mxu0 0.0
        %1292 = vmatpush.msra.mxu0 0.0
        %1293 = vmatpush.msra.mxu0 0.0
        %1294 = vmatpush.msra.mxu0 0.0
        %1295 = vmatpush.msra.mxu0 0.0
        %1296 = vmatpush.msra.mxu0 0.0
        %1297 = vmatpush.msra.mxu0 0.0
        %1298 = vmatpush.msra.mxu0 0.0
        %1299 = vmatpush.msra.mxu0 0.0
        %1300 = vmatpush.msra.mxu0 0.0
        %1301 = vmatpush.msra.mxu0 0.0
        %1302 = vmatpush.msra.mxu0 0.0
        %1303 = vmatpush.msra.mxu0 %v1067
        %1304 = vmatpush.msra.mxu0 %v1063
        %1305 = vmatmul.f32.gmra.mxu0 %v1102
        %v1306 = vpop.f32.mrf.mxu0
        %v1307 = vadd.f32 %v1272, %v1306
        %1308 = vmatmul.f32.gmra.mxu0 %v1104
        %v1309 = vpop.f32.mrf.mxu0
        %v1310 = vadd.f32 %v1275, %v1309
        %1311 = vmatmul.f32.gmra.mxu0 %v1106
        %v1312 = vpop.f32.mrf.mxu0
        %v1313 = vadd.f32 %v1278, %v1312
        %1314 = vmatmul.f32.gmra.mxu0 %v1108
        %v1315 = vpop.f32.mrf.mxu0
        %v1316 = vadd.f32 %v1281, %v1315
        %1317 = vmatmul.f32.gmra.mxu0 %v1110
        %v1318 = vpop.f32.mrf.mxu0
        %v1319 = vadd.f32 %v1284, %v1318
        %1320 = vmatmul.f32.gmra.mxu0 %v1112
        %v1321 = vpop.f32.mrf.mxu0
        %v1322 = vadd.f32 %v1287, %v1321
        %1323 = vdwg.mxu0
        %1324 = vmatpush.msra.mxu0 %v1060
        %1325 = vmatpush.msra.mxu0 %v1056
        %1326 = vmatpush.msra.mxu0 %v1052
        %1327 = vmatpush.msra.mxu0 %v1048
        %1328 = vmatpush.msra.mxu0 %v1044
        %1329 = vmatpush.msra.mxu0 %v1040
        %1330 = vmatpush.msra.mxu0 %v1036
        %1331 = vmatpush.msra.mxu0 %v1032
        %1332 = vmatpush.msra.mxu0 %v1028
        %1333 = vmatpush.msra.mxu0 %v1024
        %1334 = vmatpush.msra.mxu0 %v1020
        %1335 = vmatpush.msra.mxu0 %v1016
        %1336 = vmatpush.msra.mxu0 %v1012
        %1337 = vmatpush.msra.mxu0 %v1008
        %1338 = vmatpush.msra.mxu0 %v1004
        %1339 = vmatpush.msra.mxu0 %v1000
        %1340 = vmatmul.f32.gmra.mxu0 %v1076
        %v1341 = vpop.f32.mrf.mxu0
        %v1342 = vadd.f32 0.0, %v1341
        %1343 = vmatmul.f32.gmra.mxu0 %v1081
        %v1344 = vpop.f32.mrf.mxu0
        %v1345 = vadd.f32 0.0, %v1344
        %1346 = vmatmul.f32.gmra.mxu0 %v1085
        %v1347 = vpop.f32.mrf.mxu0
        %v1348 = vadd.f32 0.0, %v1347
        %1349 = vmatmul.f32.gmra.mxu0 %v1089
        %v1350 = vpop.f32.mrf.mxu0
        %v1351 = vadd.f32 0.0, %v1350
        %1352 = vmatmul.f32.gmra.mxu0 %v1093
        %v1353 = vpop.f32.mrf.mxu0
        %v1354 = vadd.f32 0.0, %v1353
        %1355 = vmatmul.f32.gmra.mxu0 %v1092
        %v1356 = vpop.f32.mrf.mxu0
        %v1357 = vadd.f32 0.0, %v1356
        %1358 = vdwg.mxu0
        %1359 = vmatpush.msra.mxu0 0.0
        %1360 = vmatpush.msra.mxu0 0.0
        %1361 = vmatpush.msra.mxu0 0.0
        %1362 = vmatpush.msra.mxu0 0.0
        %1363 = vmatpush.msra.mxu0 0.0
        %1364 = vmatpush.msra.mxu0 0.0
        %1365 = vmatpush.msra.mxu0 0.0
        %1366 = vmatpush.msra.mxu0 0.0
        %1367 = vmatpush.msra.mxu0 0.0
        %1368 = vmatpush.msra.mxu0 0.0
        %1369 = vmatpush.msra.mxu0 0.0
        %1370 = vmatpush.msra.mxu0 0.0
        %1371 = vmatpush.msra.mxu0 0.0
        %1372 = vmatpush.msra.mxu0 0.0
        %1373 = vmatpush.msra.mxu0 %v1068
        %1374 = vmatpush.msra.mxu0 %v1064
        %1375 = vmatmul.f32.gmra.mxu0 %v1102
        %v1376 = vpop.f32.mrf.mxu0
        %v1377 = vadd.f32 %v1342, %v1376
        %1378 = vmatmul.f32.gmra.mxu0 %v1104
        %v1379 = vpop.f32.mrf.mxu0
        %v1380 = vadd.f32 %v1345, %v1379
        %1381 = vmatmul.f32.gmra.mxu0 %v1106
        %v1382 = vpop.f32.mrf.mxu0
        %v1383 = vadd.f32 %v1348, %v1382
        %1384 = vmatmul.f32.gmra.mxu0 %v1108
        %v1385 = vpop.f32.mrf.mxu0
        %v1386 = vadd.f32 %v1351, %v1385
        %1387 = vmatmul.f32.gmra.mxu0 %v1110
        %v1388 = vpop.f32.mrf.mxu0
        %v1389 = vadd.f32 %v1354, %v1388
        %1390 = vmatmul.f32.gmra.mxu0 %v1112
        %v1391 = vpop.f32.mrf.mxu0
        %v1392 = vadd.f32 %v1357, %v1391
        %1393 = vdwg.mxu0
        %v1394 = vadd.f32 %v765, %v1167
        %v1395 = vadd.f32 %v835, %v1237
        %v1396 = vadd.f32 %v905, %v1307
        %v1397 = vadd.f32 %v975, %v1377
        %v1398 = vadd.f32 %v768, %v1170
        %v1399 = vadd.f32 %v838, %v1240
        %v1400 = vadd.f32 %v908, %v1310
        %v1401 = vadd.f32 %v978, %v1380
        %v1402 = vadd.f32 %v771, %v1173
        %v1403 = vadd.f32 %v841, %v1243
        %v1404 = vadd.f32 %v911, %v1313
        %v1405 = vadd.f32 %v981, %v1383
        %v1406 = vadd.f32 %v774, %v1176
        %v1407 = vadd.f32 %v844, %v1246
        %v1408 = vadd.f32 %v914, %v1316
        %v1409 = vadd.f32 %v984, %v1386
        %v1410 = vadd.f32 %v777, %v1179
        %v1411 = vadd.f32 %v847, %v1249
        %v1412 = vadd.f32 %v917, %v1319
        %v1413 = vadd.f32 %v987, %v1389
        %v1414 = vadd.f32 %v780, %v1182
        %v1415 = vadd.f32 %v850, %v1252
        %v1416 = vadd.f32 %v920, %v1322
        %v1417 = vadd.f32 %v990, %v1392
        %v1418 = vld [vmem:[%s197] sm:$0xf8]
        %v1419 = vld [vmem:[%s197 + $0x8] sm:$0xf8]
        %v1420 = vld [vmem:[%s197 + $0x50] sm:$0x7f]
        %v1421 = vld [vmem:[%s197 + $0x58] sm:$0x7f]
        %s1422 = scalar_lea.vmem [#allocation3], 1728
        %v1423 = vld [vmem:[%s1422] sm:$0xff]
        %v1424 = vld [vmem:[%s1422 + $0x8] sm:$0xff]
        %v1425 = vld [vmem:[%s1422 + $0x10] sm:$0xff]
        %v1426 = vld [vmem:[%s1422 + $0x18] sm:$0xff]
        %v1427 = vld [vmem:[%s1422 + $0x20] sm:$0xff]
        %v1428 = vld [vmem:[%s1422 + $0x28] sm:$0xff]
        %v1429 = vld [vmem:[%s1422 + $0x30] sm:$0xff]
        %v1430 = vld [vmem:[%s1422 + $0x38] sm:$0xff]
        %v1431 = vld [vmem:[%s1422 + $0x40] sm:$0xff]
        %v1432 = vld [vmem:[%s1422 + $0x48] sm:$0xff]
        %v1433 = vld [vmem:[%s1422 + $0x50] sm:$0xff]
        %v1434 = vld [vmem:[%s1422 + $0x58] sm:$0xff]
        %v1435 = vld [vmem:[%s1422 + $0x60] sm:$0xff]
        %v1436 = vld [vmem:[%s1422 + $0x68] sm:$0xff]
        %v1437 = vld [vmem:[%s1422 + $0x70] sm:$0xff]
        %v1438 = vld [vmem:[%s1422 + $0x78] sm:$0xff]
        %v1439 = vld [vmem:[%s1422 + $0x80] sm:$0xff]
        %v1440 = vld [vmem:[%s1422 + $0x88] sm:$0xff]
        %v1441 = vld [vmem:[%s1422 + $0x90] sm:$0xff]
        %v1442 = vld [vmem:[%s1422 + $0x98] sm:$0xff]
        %v1443 = vld [vmem:[%s1422 + $0xa0] sm:$0xff]
        %v1444 = vld [vmem:[%s1422 + $0xa8] sm:$0xff]
        %v1445 = vld [vmem:[%s1422 + $0xb0] sm:$0xff]
        %v1446 = vld [vmem:[%s1422 + $0xb8] sm:$0xff]
        %v1447 = vld [vmem:[%s1422 + $0xc0] sm:$0xff]
        %v1448 = vld [vmem:[%s1422 + $0xc8] sm:$0xff]
        %v1449 = vld [vmem:[%s1422 + $0xd0] sm:$0xff]
        %v1450 = vld [vmem:[%s1422 + $0xd8] sm:$0xff]
        %v1451 = vld [vmem:[%s1422 + $0xe0] sm:$0xff]
        %v1452 = vld [vmem:[%s1422 + $0xe8] sm:$0xff]
        %v1453 = vld [vmem:[%s1422 + $0xf0] sm:$0xff]
        %v1454 = vld [vmem:[%s1422 + $0xf8] sm:$0xff]
        %v1455 = vld [vmem:[%s1422 + $0x100] sm:$0xff]
        %v1456 = vld [vmem:[%s1422 + $0x108] sm:$0xff]
        %v1457 = vld [vmem:[%s1422 + $0x110] sm:$0xff]
        %v1458 = vld [vmem:[%s1422 + $0x118] sm:$0xff]
        %v1459 = vld [vmem:[%s1422 + $0x120] sm:$0xff]
        %v1460 = vld [vmem:[%s1422 + $0x128] sm:$0xff]
        %v1461 = vld [vmem:[%s1422 + $0x130] sm:$0xff]
        %v1462 = vld [vmem:[%s1422 + $0x138] sm:$0xff]
        %v1463 = vld [vmem:[%s1422 + $0x140] sm:$0xff]
        %v1464 = vld [vmem:[%s1422 + $0x148] sm:$0xff]
        %v1465 = vld [vmem:[%s1422 + $0x150] sm:$0xff]
        %v1466 = vld [vmem:[%s1422 + $0x158] sm:$0xff]
        %v1467 = vld [vmem:[%s1422 + $0x160] sm:$0xff]
        %v1468 = vld [vmem:[%s1422 + $0x168] sm:$0xff]
        %v1469 = vld [vmem:[%s1422 + $0x170] sm:$0xff]
        %v1470 = vld [vmem:[%s1422 + $0x178] sm:$0xff]
        %v1471 = vld [vmem:[%s1422 + $0x180] sm:$0xff]
        %v1472 = vld [vmem:[%s1422 + $0x188] sm:$0xff]
        %v1473 = vld [vmem:[%s1422 + $0x190] sm:$0xff]
        %v1474 = vld [vmem:[%s1422 + $0x198] sm:$0xff]
        %v1475 = vld [vmem:[%s1422 + $0x1a0] sm:$0xff]
        %v1476 = vld [vmem:[%s1422 + $0x1a8] sm:$0xff]
        %v1477 = vld [vmem:[%s1422 + $0x1b0] sm:$0xff]
        %v1478 = vld [vmem:[%s1422 + $0x1b8] sm:$0xff]
        %v1479 = vld [vmem:[%s1422 + $0x1c0] sm:$0xff]
        %v1480 = vld [vmem:[%s1422 + $0x1c8] sm:$0xff]
        %v1481 = vld [vmem:[%s1422 + $0x1d0] sm:$0xff]
        %v1482 = vld [vmem:[%s1422 + $0x1d8] sm:$0xff]
        %v1483 = vld [vmem:[%s1422 + $0x1e0] sm:$0xff]
        %v1484 = vld [vmem:[%s1422 + $0x1e8] sm:$0xff]
        %v1485 = vld [vmem:[%s1422 + $0x1f0] sm:$0xff]
        %v1486 = vld [vmem:[%s1422 + $0x1f8] sm:$0xff]
        %v1487 = vld [vmem:[%s1422 + $0x200] sm:$0xff]
        %v1488 = vld [vmem:[%s1422 + $0x208] sm:$0xff]
        %v1489 = vld [vmem:[%s1422 + $0x210] sm:$0xff]
        %v1490 = vld [vmem:[%s1422 + $0x218] sm:$0xff]
        %v1491 = vld [vmem:[%s1422 + $0x220] sm:$0xff]
        %v1492 = vld [vmem:[%s1422 + $0x228] sm:$0xff]
        %v1493 = vld [vmem:[%s1422 + $0x230] sm:$0xff]
        %v1494 = vld [vmem:[%s1422 + $0x238] sm:$0xff]
        %vm1499 = vcmask 1044480
        %v1500 = vrot.slane %v1418, 3
        %v1501 = vrot.slane %v205, 3
        %v1502 = vsel %vm1499, %v1500, %v1501
        %v1503 = vrot.slane %v1419, 3
        %v1504 = vrot.slane %v206, 3
        %v1505 = vsel %vm1499, %v1503, %v1504
        %v1506 = vrot.slane %v207, 3
        %v1507 = vsel %vm1499, %v1501, %v1506
        %v1508 = vrot.slane %v208, 3
        %v1509 = vsel %vm1499, %v1504, %v1508
        %v1510 = vrot.slane %v209, 3
        %v1511 = vsel %vm1499, %v1506, %v1510
        %v1512 = vrot.slane %v210, 3
        %v1513 = vsel %vm1499, %v1508, %v1512
        %v1514 = vrot.slane %v211, 3
        %v1515 = vsel %vm1499, %v1510, %v1514
        %v1516 = vrot.slane %v212, 3
        %v1517 = vsel %vm1499, %v1512, %v1516
        %v1518 = vrot.slane %v1420, 3
        %v1519 = vsel %vm1499, %v1514, %v1518
        %v1520 = vrot.slane %v1421, 3
        %v1521 = vsel %vm1499, %v1516, %v1520
        %v1528 = vsel %vm405, %v1505, 0
        %v1530 = vsel %vm405, %v1509, 0
        %v1532 = vsel %vm405, %v1513, 0
        %v1534 = vsel %vm405, %v1517, 0
        %v1536 = vsel %vm405, %v1521, 0
        %v1538 = vsel %vm405, %v1520, 0
        %1540 = vmatpush.msra.mxu0 %v1483
        %1541 = vmatpush.msra.mxu0 %v1479
        %1542 = vmatpush.msra.mxu0 %v1475
        %1543 = vmatpush.msra.mxu0 %v1471
        %1544 = vmatpush.msra.mxu0 %v1467
        %1545 = vmatpush.msra.mxu0 %v1463
        %1546 = vmatpush.msra.mxu0 %v1459
        %1547 = vmatpush.msra.mxu0 %v1455
        %1548 = vmatpush.msra.mxu0 %v1451
        %1549 = vmatpush.msra.mxu0 %v1447
        %1550 = vmatpush.msra.mxu0 %v1443
        %1551 = vmatpush.msra.mxu0 %v1439
        %1552 = vmatpush.msra.mxu0 %v1435
        %1553 = vmatpush.msra.mxu0 %v1431
        %1554 = vmatpush.msra.mxu0 %v1427
        %1555 = vmatpush.msra.mxu0 %v1423
        %1556 = vmatmul.f32.gmra.mxu0 %v1502
        %v1557 = vpop.f32.mrf.mxu0
        %v1558 = vadd.f32 0.0, %v1557
        %1559 = vmatmul.f32.gmra.mxu0 %v1507
        %v1560 = vpop.f32.mrf.mxu0
        %v1561 = vadd.f32 0.0, %v1560
        %1562 = vmatmul.f32.gmra.mxu0 %v1511
        %v1563 = vpop.f32.mrf.mxu0
        %v1564 = vadd.f32 0.0, %v1563
        %1565 = vmatmul.f32.gmra.mxu0 %v1515
        %v1566 = vpop.f32.mrf.mxu0
        %v1567 = vadd.f32 0.0, %v1566
        %1568 = vmatmul.f32.gmra.mxu0 %v1519
        %v1569 = vpop.f32.mrf.mxu0
        %v1570 = vadd.f32 0.0, %v1569
        %1571 = vmatmul.f32.gmra.mxu0 %v1518
        %v1572 = vpop.f32.mrf.mxu0
        %v1573 = vadd.f32 0.0, %v1572
        %1574 = vdwg.mxu0
        %1575 = vmatpush.msra.mxu0 0.0
        %1576 = vmatpush.msra.mxu0 0.0
        %1577 = vmatpush.msra.mxu0 0.0
        %1578 = vmatpush.msra.mxu0 0.0
        %1579 = vmatpush.msra.mxu0 0.0
        %1580 = vmatpush.msra.mxu0 0.0
        %1581 = vmatpush.msra.mxu0 0.0
        %1582 = vmatpush.msra.mxu0 0.0
        %1583 = vmatpush.msra.mxu0 0.0
        %1584 = vmatpush.msra.mxu0 0.0
        %1585 = vmatpush.msra.mxu0 0.0
        %1586 = vmatpush.msra.mxu0 0.0
        %1587 = vmatpush.msra.mxu0 0.0
        %1588 = vmatpush.msra.mxu0 0.0
        %1589 = vmatpush.msra.mxu0 %v1491
        %1590 = vmatpush.msra.mxu0 %v1487
        %1591 = vmatmul.f32.gmra.mxu0 %v1528
        %v1592 = vpop.f32.mrf.mxu0
        %v1593 = vadd.f32 %v1558, %v1592
        %1594 = vmatmul.f32.gmra.mxu0 %v1530
        %v1595 = vpop.f32.mrf.mxu0
        %v1596 = vadd.f32 %v1561, %v1595
        %1597 = vmatmul.f32.gmra.mxu0 %v1532
        %v1598 = vpop.f32.mrf.mxu0
        %v1599 = vadd.f32 %v1564, %v1598
        %1600 = vmatmul.f32.gmra.mxu0 %v1534
        %v1601 = vpop.f32.mrf.mxu0
        %v1602 = vadd.f32 %v1567, %v1601
        %1603 = vmatmul.f32.gmra.mxu0 %v1536
        %v1604 = vpop.f32.mrf.mxu0
        %v1605 = vadd.f32 %v1570, %v1604
        %1606 = vmatmul.f32.gmra.mxu0 %v1538
        %v1607 = vpop.f32.mrf.mxu0
        %v1608 = vadd.f32 %v1573, %v1607
        %1609 = vdwg.mxu0
        %1610 = vmatpush.msra.mxu0 %v1484
        %1611 = vmatpush.msra.mxu0 %v1480
        %1612 = vmatpush.msra.mxu0 %v1476
        %1613 = vmatpush.msra.mxu0 %v1472
        %1614 = vmatpush.msra.mxu0 %v1468
        %1615 = vmatpush.msra.mxu0 %v1464
        %1616 = vmatpush.msra.mxu0 %v1460
        %1617 = vmatpush.msra.mxu0 %v1456
        %1618 = vmatpush.msra.mxu0 %v1452
        %1619 = vmatpush.msra.mxu0 %v1448
        %1620 = vmatpush.msra.mxu0 %v1444
        %1621 = vmatpush.msra.mxu0 %v1440
        %1622 = vmatpush.msra.mxu0 %v1436
        %1623 = vmatpush.msra.mxu0 %v1432
        %1624 = vmatpush.msra.mxu0 %v1428
        %1625 = vmatpush.msra.mxu0 %v1424
        %1626 = vmatmul.f32.gmra.mxu0 %v1502
        %v1627 = vpop.f32.mrf.mxu0
        %v1628 = vadd.f32 0.0, %v1627
        %1629 = vmatmul.f32.gmra.mxu0 %v1507
        %v1630 = vpop.f32.mrf.mxu0
        %v1631 = vadd.f32 0.0, %v1630
        %1632 = vmatmul.f32.gmra.mxu0 %v1511
        %v1633 = vpop.f32.mrf.mxu0
        %v1634 = vadd.f32 0.0, %v1633
        %1635 = vmatmul.f32.gmra.mxu0 %v1515
        %v1636 = vpop.f32.mrf.mxu0
        %v1637 = vadd.f32 0.0, %v1636
        %1638 = vmatmul.f32.gmra.mxu0 %v1519
        %v1639 = vpop.f32.mrf.mxu0
        %v1640 = vadd.f32 0.0, %v1639
        %1641 = vmatmul.f32.gmra.mxu0 %v1518
        %v1642 = vpop.f32.mrf.mxu0
        %v1643 = vadd.f32 0.0, %v1642
        %1644 = vdwg.mxu0
        %1645 = vmatpush.msra.mxu0 0.0
        %1646 = vmatpush.msra.mxu0 0.0
        %1647 = vmatpush.msra.mxu0 0.0
        %1648 = vmatpush.msra.mxu0 0.0
        %1649 = vmatpush.msra.mxu0 0.0
        %1650 = vmatpush.msra.mxu0 0.0
        %1651 = vmatpush.msra.mxu0 0.0
        %1652 = vmatpush.msra.mxu0 0.0
        %1653 = vmatpush.msra.mxu0 0.0
        %1654 = vmatpush.msra.mxu0 0.0
        %1655 = vmatpush.msra.mxu0 0.0
        %1656 = vmatpush.msra.mxu0 0.0
        %1657 = vmatpush.msra.mxu0 0.0
        %1658 = vmatpush.msra.mxu0 0.0
        %1659 = vmatpush.msra.mxu0 %v1492
        %1660 = vmatpush.msra.mxu0 %v1488
        %1661 = vmatmul.f32.gmra.mxu0 %v1528
        %v1662 = vpop.f32.mrf.mxu0
        %v1663 = vadd.f32 %v1628, %v1662
        %1664 = vmatmul.f32.gmra.mxu0 %v1530
        %v1665 = vpop.f32.mrf.mxu0
        %v1666 = vadd.f32 %v1631, %v1665
        %1667 = vmatmul.f32.gmra.mxu0 %v1532
        %v1668 = vpop.f32.mrf.mxu0
        %v1669 = vadd.f32 %v1634, %v1668
        %1670 = vmatmul.f32.gmra.mxu0 %v1534
        %v1671 = vpop.f32.mrf.mxu0
        %v1672 = vadd.f32 %v1637, %v1671
        %1673 = vmatmul.f32.gmra.mxu0 %v1536
        %v1674 = vpop.f32.mrf.mxu0
        %v1675 = vadd.f32 %v1640, %v1674
        %1676 = vmatmul.f32.gmra.mxu0 %v1538
        %v1677 = vpop.f32.mrf.mxu0
        %v1678 = vadd.f32 %v1643, %v1677
        %1679 = vdwg.mxu0
        %1680 = vmatpush.msra.mxu0 %v1485
        %1681 = vmatpush.msra.mxu0 %v1481
        %1682 = vmatpush.msra.mxu0 %v1477
        %1683 = vmatpush.msra.mxu0 %v1473
        %1684 = vmatpush.msra.mxu0 %v1469
        %1685 = vmatpush.msra.mxu0 %v1465
        %1686 = vmatpush.msra.mxu0 %v1461
        %1687 = vmatpush.msra.mxu0 %v1457
        %1688 = vmatpush.msra.mxu0 %v1453
        %1689 = vmatpush.msra.mxu0 %v1449
        %1690 = vmatpush.msra.mxu0 %v1445
        %1691 = vmatpush.msra.mxu0 %v1441
        %1692 = vmatpush.msra.mxu0 %v1437
        %1693 = vmatpush.msra.mxu0 %v1433
        %1694 = vmatpush.msra.mxu0 %v1429
        %1695 = vmatpush.msra.mxu0 %v1425
        %1696 = vmatmul.f32.gmra.mxu0 %v1502
        %v1697 = vpop.f32.mrf.mxu0
        %v1698 = vadd.f32 0.0, %v1697
        %1699 = vmatmul.f32.gmra.mxu0 %v1507
        %v1700 = vpop.f32.mrf.mxu0
        %v1701 = vadd.f32 0.0, %v1700
        %1702 = vmatmul.f32.gmra.mxu0 %v1511
        %v1703 = vpop.f32.mrf.mxu0
        %v1704 = vadd.f32 0.0, %v1703
        %1705 = vmatmul.f32.gmra.mxu0 %v1515
        %v1706 = vpop.f32.mrf.mxu0
        %v1707 = vadd.f32 0.0, %v1706
        %1708 = vmatmul.f32.gmra.mxu0 %v1519
        %v1709 = vpop.f32.mrf.mxu0
        %v1710 = vadd.f32 0.0, %v1709
        %1711 = vmatmul.f32.gmra.mxu0 %v1518
        %v1712 = vpop.f32.mrf.mxu0
        %v1713 = vadd.f32 0.0, %v1712
        %1714 = vdwg.mxu0
        %1715 = vmatpush.msra.mxu0 0.0
        %1716 = vmatpush.msra.mxu0 0.0
        %1717 = vmatpush.msra.mxu0 0.0
        %1718 = vmatpush.msra.mxu0 0.0
        %1719 = vmatpush.msra.mxu0 0.0
        %1720 = vmatpush.msra.mxu0 0.0
        %1721 = vmatpush.msra.mxu0 0.0
        %1722 = vmatpush.msra.mxu0 0.0
        %1723 = vmatpush.msra.mxu0 0.0
        %1724 = vmatpush.msra.mxu0 0.0
        %1725 = vmatpush.msra.mxu0 0.0
        %1726 = vmatpush.msra.mxu0 0.0
        %1727 = vmatpush.msra.mxu0 0.0
        %1728 = vmatpush.msra.mxu0 0.0
        %1729 = vmatpush.msra.mxu0 %v1493
        %1730 = vmatpush.msra.mxu0 %v1489
        %1731 = vmatmul.f32.gmra.mxu0 %v1528
        %v1732 = vpop.f32.mrf.mxu0
        %v1733 = vadd.f32 %v1698, %v1732
        %1734 = vmatmul.f32.gmra.mxu0 %v1530
        %v1735 = vpop.f32.mrf.mxu0
        %v1736 = vadd.f32 %v1701, %v1735
        %1737 = vmatmul.f32.gmra.mxu0 %v1532
        %v1738 = vpop.f32.mrf.mxu0
        %v1739 = vadd.f32 %v1704, %v1738
        %1740 = vmatmul.f32.gmra.mxu0 %v1534
        %v1741 = vpop.f32.mrf.mxu0
        %v1742 = vadd.f32 %v1707, %v1741
        %1743 = vmatmul.f32.gmra.mxu0 %v1536
        %v1744 = vpop.f32.mrf.mxu0
        %v1745 = vadd.f32 %v1710, %v1744
        %1746 = vmatmul.f32.gmra.mxu0 %v1538
        %v1747 = vpop.f32.mrf.mxu0
        %v1748 = vadd.f32 %v1713, %v1747
        %1749 = vdwg.mxu0
        %1750 = vmatpush.msra.mxu0 %v1486
        %1751 = vmatpush.msra.mxu0 %v1482
        %1752 = vmatpush.msra.mxu0 %v1478
        %1753 = vmatpush.msra.mxu0 %v1474
        %1754 = vmatpush.msra.mxu0 %v1470
        %1755 = vmatpush.msra.mxu0 %v1466
        %1756 = vmatpush.msra.mxu0 %v1462
        %1757 = vmatpush.msra.mxu0 %v1458
        %1758 = vmatpush.msra.mxu0 %v1454
        %1759 = vmatpush.msra.mxu0 %v1450
        %1760 = vmatpush.msra.mxu0 %v1446
        %1761 = vmatpush.msra.mxu0 %v1442
        %1762 = vmatpush.msra.mxu0 %v1438
        %1763 = vmatpush.msra.mxu0 %v1434
        %1764 = vmatpush.msra.mxu0 %v1430
        %1765 = vmatpush.msra.mxu0 %v1426
        %1766 = vmatmul.f32.gmra.mxu0 %v1502
        %v1767 = vpop.f32.mrf.mxu0
        %v1768 = vadd.f32 0.0, %v1767
        %1769 = vmatmul.f32.gmra.mxu0 %v1507
        %v1770 = vpop.f32.mrf.mxu0
        %v1771 = vadd.f32 0.0, %v1770
        %1772 = vmatmul.f32.gmra.mxu0 %v1511
        %v1773 = vpop.f32.mrf.mxu0
        %v1774 = vadd.f32 0.0, %v1773
        %1775 = vmatmul.f32.gmra.mxu0 %v1515
        %v1776 = vpop.f32.mrf.mxu0
        %v1777 = vadd.f32 0.0, %v1776
        %1778 = vmatmul.f32.gmra.mxu0 %v1519
        %v1779 = vpop.f32.mrf.mxu0
        %v1780 = vadd.f32 0.0, %v1779
        %1781 = vmatmul.f32.gmra.mxu0 %v1518
        %v1782 = vpop.f32.mrf.mxu0
        %v1783 = vadd.f32 0.0, %v1782
        %1784 = vdwg.mxu0
        %1785 = vmatpush.msra.mxu0 0.0
        %1786 = vmatpush.msra.mxu0 0.0
        %1787 = vmatpush.msra.mxu0 0.0
        %1788 = vmatpush.msra.mxu0 0.0
        %1789 = vmatpush.msra.mxu0 0.0
        %1790 = vmatpush.msra.mxu0 0.0
        %1791 = vmatpush.msra.mxu0 0.0
        %1792 = vmatpush.msra.mxu0 0.0
        %1793 = vmatpush.msra.mxu0 0.0
        %1794 = vmatpush.msra.mxu0 0.0
        %1795 = vmatpush.msra.mxu0 0.0
        %1796 = vmatpush.msra.mxu0 0.0
        %1797 = vmatpush.msra.mxu0 0.0
        %1798 = vmatpush.msra.mxu0 0.0
        %1799 = vmatpush.msra.mxu0 %v1494
        %1800 = vmatpush.msra.mxu0 %v1490
        %1801 = vmatmul.f32.gmra.mxu0 %v1528
        %v1802 = vpop.f32.mrf.mxu0
        %v1803 = vadd.f32 %v1768, %v1802
        %1804 = vmatmul.f32.gmra.mxu0 %v1530
        %v1805 = vpop.f32.mrf.mxu0
        %v1806 = vadd.f32 %v1771, %v1805
        %1807 = vmatmul.f32.gmra.mxu0 %v1532
        %v1808 = vpop.f32.mrf.mxu0
        %v1809 = vadd.f32 %v1774, %v1808
        %1810 = vmatmul.f32.gmra.mxu0 %v1534
        %v1811 = vpop.f32.mrf.mxu0
        %v1812 = vadd.f32 %v1777, %v1811
        %1813 = vmatmul.f32.gmra.mxu0 %v1536
        %v1814 = vpop.f32.mrf.mxu0
        %v1815 = vadd.f32 %v1780, %v1814
        %1816 = vmatmul.f32.gmra.mxu0 %v1538
        %v1817 = vpop.f32.mrf.mxu0
        %v1818 = vadd.f32 %v1783, %v1817
        %1819 = vdwg.mxu0
        %v1820 = vadd.f32 %v1394, %v1593
        %v1821 = vadd.f32 %v1395, %v1663
        %v1822 = vadd.f32 %v1396, %v1733
        %v1823 = vadd.f32 %v1397, %v1803
        %v1824 = vadd.f32 %v1398, %v1596
        %v1825 = vadd.f32 %v1399, %v1666
        %v1826 = vadd.f32 %v1400, %v1736
        %v1827 = vadd.f32 %v1401, %v1806
        %v1828 = vadd.f32 %v1402, %v1599
        %v1829 = vadd.f32 %v1403, %v1669
        %v1830 = vadd.f32 %v1404, %v1739
        %v1831 = vadd.f32 %v1405, %v1809
        %v1832 = vadd.f32 %v1406, %v1602
        %v1833 = vadd.f32 %v1407, %v1672
        %v1834 = vadd.f32 %v1408, %v1742
        %v1835 = vadd.f32 %v1409, %v1812
        %v1836 = vadd.f32 %v1410, %v1605
        %v1837 = vadd.f32 %v1411, %v1675
        %v1838 = vadd.f32 %v1412, %v1745
        %v1839 = vadd.f32 %v1413, %v1815
        %v1840 = vadd.f32 %v1414, %v1608
        %v1841 = vadd.f32 %v1415, %v1678
        %v1842 = vadd.f32 %v1416, %v1748
        %v1843 = vadd.f32 %v1417, %v1818
        %v1844 = vld [vmem:[%s197] sm:$0xf0]
        %v1845 = vld [vmem:[%s197 + $0x8] sm:$0xf0]
        %v1846 = vld [vmem:[%s197 + $0x50] sm:$0xff]
        %v1847 = vld [vmem:[%s197 + $0x58] sm:$0xff]
        %s1848 = scalar_lea.vmem [#allocation3], 2304
        %v1849 = vld [vmem:[%s1848] sm:$0xff]
        %v1850 = vld [vmem:[%s1848 + $0x8] sm:$0xff]
        %v1851 = vld [vmem:[%s1848 + $0x10] sm:$0xff]
        %v1852 = vld [vmem:[%s1848 + $0x18] sm:$0xff]
        %v1853 = vld [vmem:[%s1848 + $0x20] sm:$0xff]
        %v1854 = vld [vmem:[%s1848 + $0x28] sm:$0xff]
        %v1855 = vld [vmem:[%s1848 + $0x30] sm:$0xff]
        %v1856 = vld [vmem:[%s1848 + $0x38] sm:$0xff]
        %v1857 = vld [vmem:[%s1848 + $0x40] sm:$0xff]
        %v1858 = vld [vmem:[%s1848 + $0x48] sm:$0xff]
        %v1859 = vld [vmem:[%s1848 + $0x50] sm:$0xff]
        %v1860 = vld [vmem:[%s1848 + $0x58] sm:$0xff]
        %v1861 = vld [vmem:[%s1848 + $0x60] sm:$0xff]
        %v1862 = vld [vmem:[%s1848 + $0x68] sm:$0xff]
        %v1863 = vld [vmem:[%s1848 + $0x70] sm:$0xff]
        %v1864 = vld [vmem:[%s1848 + $0x78] sm:$0xff]
        %v1865 = vld [vmem:[%s1848 + $0x80] sm:$0xff]
        %v1866 = vld [vmem:[%s1848 + $0x88] sm:$0xff]
        %v1867 = vld [vmem:[%s1848 + $0x90] sm:$0xff]
        %v1868 = vld [vmem:[%s1848 + $0x98] sm:$0xff]
        %v1869 = vld [vmem:[%s1848 + $0xa0] sm:$0xff]
        %v1870 = vld [vmem:[%s1848 + $0xa8] sm:$0xff]
        %v1871 = vld [vmem:[%s1848 + $0xb0] sm:$0xff]
        %v1872 = vld [vmem:[%s1848 + $0xb8] sm:$0xff]
        %v1873 = vld [vmem:[%s1848 + $0xc0] sm:$0xff]
        %v1874 = vld [vmem:[%s1848 + $0xc8] sm:$0xff]
        %v1875 = vld [vmem:[%s1848 + $0xd0] sm:$0xff]
        %v1876 = vld [vmem:[%s1848 + $0xd8] sm:$0xff]
        %v1877 = vld [vmem:[%s1848 + $0xe0] sm:$0xff]
        %v1878 = vld [vmem:[%s1848 + $0xe8] sm:$0xff]
        %v1879 = vld [vmem:[%s1848 + $0xf0] sm:$0xff]
        %v1880 = vld [vmem:[%s1848 + $0xf8] sm:$0xff]
        %v1881 = vld [vmem:[%s1848 + $0x100] sm:$0xff]
        %v1882 = vld [vmem:[%s1848 + $0x108] sm:$0xff]
        %v1883 = vld [vmem:[%s1848 + $0x110] sm:$0xff]
        %v1884 = vld [vmem:[%s1848 + $0x118] sm:$0xff]
        %v1885 = vld [vmem:[%s1848 + $0x120] sm:$0xff]
        %v1886 = vld [vmem:[%s1848 + $0x128] sm:$0xff]
        %v1887 = vld [vmem:[%s1848 + $0x130] sm:$0xff]
        %v1888 = vld [vmem:[%s1848 + $0x138] sm:$0xff]
        %v1889 = vld [vmem:[%s1848 + $0x140] sm:$0xff]
        %v1890 = vld [vmem:[%s1848 + $0x148] sm:$0xff]
        %v1891 = vld [vmem:[%s1848 + $0x150] sm:$0xff]
        %v1892 = vld [vmem:[%s1848 + $0x158] sm:$0xff]
        %v1893 = vld [vmem:[%s1848 + $0x160] sm:$0xff]
        %v1894 = vld [vmem:[%s1848 + $0x168] sm:$0xff]
        %v1895 = vld [vmem:[%s1848 + $0x170] sm:$0xff]
        %v1896 = vld [vmem:[%s1848 + $0x178] sm:$0xff]
        %v1897 = vld [vmem:[%s1848 + $0x180] sm:$0xff]
        %v1898 = vld [vmem:[%s1848 + $0x188] sm:$0xff]
        %v1899 = vld [vmem:[%s1848 + $0x190] sm:$0xff]
        %v1900 = vld [vmem:[%s1848 + $0x198] sm:$0xff]
        %v1901 = vld [vmem:[%s1848 + $0x1a0] sm:$0xff]
        %v1902 = vld [vmem:[%s1848 + $0x1a8] sm:$0xff]
        %v1903 = vld [vmem:[%s1848 + $0x1b0] sm:$0xff]
        %v1904 = vld [vmem:[%s1848 + $0x1b8] sm:$0xff]
        %v1905 = vld [vmem:[%s1848 + $0x1c0] sm:$0xff]
        %v1906 = vld [vmem:[%s1848 + $0x1c8] sm:$0xff]
        %v1907 = vld [vmem:[%s1848 + $0x1d0] sm:$0xff]
        %v1908 = vld [vmem:[%s1848 + $0x1d8] sm:$0xff]
        %v1909 = vld [vmem:[%s1848 + $0x1e0] sm:$0xff]
        %v1910 = vld [vmem:[%s1848 + $0x1e8] sm:$0xff]
        %v1911 = vld [vmem:[%s1848 + $0x1f0] sm:$0xff]
        %v1912 = vld [vmem:[%s1848 + $0x1f8] sm:$0xff]
        %v1913 = vld [vmem:[%s1848 + $0x200] sm:$0xff]
        %v1914 = vld [vmem:[%s1848 + $0x208] sm:$0xff]
        %v1915 = vld [vmem:[%s1848 + $0x210] sm:$0xff]
        %v1916 = vld [vmem:[%s1848 + $0x218] sm:$0xff]
        %v1917 = vld [vmem:[%s1848 + $0x220] sm:$0xff]
        %v1918 = vld [vmem:[%s1848 + $0x228] sm:$0xff]
        %v1919 = vld [vmem:[%s1848 + $0x230] sm:$0xff]
        %v1920 = vld [vmem:[%s1848 + $0x238] sm:$0xff]
        %vm1925 = vcmask 1043456
        %v1926 = vrot.slane %v1844, 4
        %v1927 = vrot.slane %v205, 4
        %v1928 = vsel %vm1925, %v1926, %v1927
        %v1929 = vrot.slane %v1845, 4
        %v1930 = vrot.slane %v206, 4
        %v1931 = vsel %vm1925, %v1929, %v1930
        %v1932 = vrot.slane %v207, 4
        %v1933 = vsel %vm1925, %v1927, %v1932
        %v1934 = vrot.slane %v208, 4
        %v1935 = vsel %vm1925, %v1930, %v1934
        %v1936 = vrot.slane %v209, 4
        %v1937 = vsel %vm1925, %v1932, %v1936
        %v1938 = vrot.slane %v210, 4
        %v1939 = vsel %vm1925, %v1934, %v1938
        %v1940 = vrot.slane %v211, 4
        %v1941 = vsel %vm1925, %v1936, %v1940
        %v1942 = vrot.slane %v212, 4
        %v1943 = vsel %vm1925, %v1938, %v1942
        %v1944 = vrot.slane %v1846, 4
        %v1945 = vsel %vm1925, %v1940, %v1944
        %v1946 = vrot.slane %v1847, 4
        %v1947 = vsel %vm1925, %v1942, %v1946
        %v1954 = vsel %vm405, %v1931, 0
        %v1956 = vsel %vm405, %v1935, 0
        %v1958 = vsel %vm405, %v1939, 0
        %v1960 = vsel %vm405, %v1943, 0
        %v1962 = vsel %vm405, %v1947, 0
        %v1964 = vsel %vm405, %v1946, 0
        %1966 = vmatpush.msra.mxu0 %v1909
        %1967 = vmatpush.msra.mxu0 %v1905
        %1968 = vmatpush.msra.mxu0 %v1901
        %1969 = vmatpush.msra.mxu0 %v1897
        %1970 = vmatpush.msra.mxu0 %v1893
        %1971 = vmatpush.msra.mxu0 %v1889
        %1972 = vmatpush.msra.mxu0 %v1885
        %1973 = vmatpush.msra.mxu0 %v1881
        %1974 = vmatpush.msra.mxu0 %v1877
        %1975 = vmatpush.msra.mxu0 %v1873
        %1976 = vmatpush.msra.mxu0 %v1869
        %1977 = vmatpush.msra.mxu0 %v1865
        %1978 = vmatpush.msra.mxu0 %v1861
        %1979 = vmatpush.msra.mxu0 %v1857
        %1980 = vmatpush.msra.mxu0 %v1853
        %1981 = vmatpush.msra.mxu0 %v1849
        %1982 = vmatmul.f32.gmra.mxu0 %v1928
        %v1983 = vpop.f32.mrf.mxu0
        %v1984 = vadd.f32 0.0, %v1983
        %1985 = vmatmul.f32.gmra.mxu0 %v1933
        %v1986 = vpop.f32.mrf.mxu0
        %v1987 = vadd.f32 0.0, %v1986
        %1988 = vmatmul.f32.gmra.mxu0 %v1937
        %v1989 = vpop.f32.mrf.mxu0
        %v1990 = vadd.f32 0.0, %v1989
        %1991 = vmatmul.f32.gmra.mxu0 %v1941
        %v1992 = vpop.f32.mrf.mxu0
        %v1993 = vadd.f32 0.0, %v1992
        %1994 = vmatmul.f32.gmra.mxu0 %v1945
        %v1995 = vpop.f32.mrf.mxu0
        %v1996 = vadd.f32 0.0, %v1995
        %1997 = vmatmul.f32.gmra.mxu0 %v1944
        %v1998 = vpop.f32.mrf.mxu0
        %v1999 = vadd.f32 0.0, %v1998
        %2000 = vdwg.mxu0
        %2001 = vmatpush.msra.mxu0 0.0
        %2002 = vmatpush.msra.mxu0 0.0
        %2003 = vmatpush.msra.mxu0 0.0
        %2004 = vmatpush.msra.mxu0 0.0
        %2005 = vmatpush.msra.mxu0 0.0
        %2006 = vmatpush.msra.mxu0 0.0
        %2007 = vmatpush.msra.mxu0 0.0
        %2008 = vmatpush.msra.mxu0 0.0
        %2009 = vmatpush.msra.mxu0 0.0
        %2010 = vmatpush.msra.mxu0 0.0
        %2011 = vmatpush.msra.mxu0 0.0
        %2012 = vmatpush.msra.mxu0 0.0
        %2013 = vmatpush.msra.mxu0 0.0
        %2014 = vmatpush.msra.mxu0 0.0
        %2015 = vmatpush.msra.mxu0 %v1917
        %2016 = vmatpush.msra.mxu0 %v1913
        %2017 = vmatmul.f32.gmra.mxu0 %v1954
        %v2018 = vpop.f32.mrf.mxu0
        %v2019 = vadd.f32 %v1984, %v2018
        %2020 = vmatmul.f32.gmra.mxu0 %v1956
        %v2021 = vpop.f32.mrf.mxu0
        %v2022 = vadd.f32 %v1987, %v2021
        %2023 = vmatmul.f32.gmra.mxu0 %v1958
        %v2024 = vpop.f32.mrf.mxu0
        %v2025 = vadd.f32 %v1990, %v2024
        %2026 = vmatmul.f32.gmra.mxu0 %v1960
        %v2027 = vpop.f32.mrf.mxu0
        %v2028 = vadd.f32 %v1993, %v2027
        %2029 = vmatmul.f32.gmra.mxu0 %v1962
        %v2030 = vpop.f32.mrf.mxu0
        %v2031 = vadd.f32 %v1996, %v2030
        %2032 = vmatmul.f32.gmra.mxu0 %v1964
        %v2033 = vpop.f32.mrf.mxu0
        %v2034 = vadd.f32 %v1999, %v2033
        %2035 = vdwg.mxu0
        %2036 = vmatpush.msra.mxu0 %v1910
        %2037 = vmatpush.msra.mxu0 %v1906
        %2038 = vmatpush.msra.mxu0 %v1902
        %2039 = vmatpush.msra.mxu0 %v1898
        %2040 = vmatpush.msra.mxu0 %v1894
        %2041 = vmatpush.msra.mxu0 %v1890
        %2042 = vmatpush.msra.mxu0 %v1886
        %2043 = vmatpush.msra.mxu0 %v1882
        %2044 = vmatpush.msra.mxu0 %v1878
        %2045 = vmatpush.msra.mxu0 %v1874
        %2046 = vmatpush.msra.mxu0 %v1870
        %2047 = vmatpush.msra.mxu0 %v1866
        %2048 = vmatpush.msra.mxu0 %v1862
        %2049 = vmatpush.msra.mxu0 %v1858
        %2050 = vmatpush.msra.mxu0 %v1854
        %2051 = vmatpush.msra.mxu0 %v1850
        %2052 = vmatmul.f32.gmra.mxu0 %v1928
        %v2053 = vpop.f32.mrf.mxu0
        %v2054 = vadd.f32 0.0, %v2053
        %2055 = vmatmul.f32.gmra.mxu0 %v1933
        %v2056 = vpop.f32.mrf.mxu0
        %v2057 = vadd.f32 0.0, %v2056
        %2058 = vmatmul.f32.gmra.mxu0 %v1937
        %v2059 = vpop.f32.mrf.mxu0
        %v2060 = vadd.f32 0.0, %v2059
        %2061 = vmatmul.f32.gmra.mxu0 %v1941
        %v2062 = vpop.f32.mrf.mxu0
        %v2063 = vadd.f32 0.0, %v2062
        %2064 = vmatmul.f32.gmra.mxu0 %v1945
        %v2065 = vpop.f32.mrf.mxu0
        %v2066 = vadd.f32 0.0, %v2065
        %2067 = vmatmul.f32.gmra.mxu0 %v1944
        %v2068 = vpop.f32.mrf.mxu0
        %v2069 = vadd.f32 0.0, %v2068
        %2070 = vdwg.mxu0
        %2071 = vmatpush.msra.mxu0 0.0
        %2072 = vmatpush.msra.mxu0 0.0
        %2073 = vmatpush.msra.mxu0 0.0
        %2074 = vmatpush.msra.mxu0 0.0
        %2075 = vmatpush.msra.mxu0 0.0
        %2076 = vmatpush.msra.mxu0 0.0
        %2077 = vmatpush.msra.mxu0 0.0
        %2078 = vmatpush.msra.mxu0 0.0
        %2079 = vmatpush.msra.mxu0 0.0
        %2080 = vmatpush.msra.mxu0 0.0
        %2081 = vmatpush.msra.mxu0 0.0
        %2082 = vmatpush.msra.mxu0 0.0
        %2083 = vmatpush.msra.mxu0 0.0
        %2084 = vmatpush.msra.mxu0 0.0
        %2085 = vmatpush.msra.mxu0 %v1918
        %2086 = vmatpush.msra.mxu0 %v1914
        %2087 = vmatmul.f32.gmra.mxu0 %v1954
        %v2088 = vpop.f32.mrf.mxu0
        %v2089 = vadd.f32 %v2054, %v2088
        %2090 = vmatmul.f32.gmra.mxu0 %v1956
        %v2091 = vpop.f32.mrf.mxu0
        %v2092 = vadd.f32 %v2057, %v2091
        %2093 = vmatmul.f32.gmra.mxu0 %v1958
        %v2094 = vpop.f32.mrf.mxu0
        %v2095 = vadd.f32 %v2060, %v2094
        %2096 = vmatmul.f32.gmra.mxu0 %v1960
        %v2097 = vpop.f32.mrf.mxu0
        %v2098 = vadd.f32 %v2063, %v2097
        %2099 = vmatmul.f32.gmra.mxu0 %v1962
        %v2100 = vpop.f32.mrf.mxu0
        %v2101 = vadd.f32 %v2066, %v2100
        %2102 = vmatmul.f32.gmra.mxu0 %v1964
        %v2103 = vpop.f32.mrf.mxu0
        %v2104 = vadd.f32 %v2069, %v2103
        %2105 = vdwg.mxu0
        %2106 = vmatpush.msra.mxu0 %v1911
        %2107 = vmatpush.msra.mxu0 %v1907
        %2108 = vmatpush.msra.mxu0 %v1903
        %2109 = vmatpush.msra.mxu0 %v1899
        %2110 = vmatpush.msra.mxu0 %v1895
        %2111 = vmatpush.msra.mxu0 %v1891
        %2112 = vmatpush.msra.mxu0 %v1887
        %2113 = vmatpush.msra.mxu0 %v1883
        %2114 = vmatpush.msra.mxu0 %v1879
        %2115 = vmatpush.msra.mxu0 %v1875
        %2116 = vmatpush.msra.mxu0 %v1871
        %2117 = vmatpush.msra.mxu0 %v1867
        %2118 = vmatpush.msra.mxu0 %v1863
        %2119 = vmatpush.msra.mxu0 %v1859
        %2120 = vmatpush.msra.mxu0 %v1855
        %2121 = vmatpush.msra.mxu0 %v1851
        %2122 = vmatmul.f32.gmra.mxu0 %v1928
        %v2123 = vpop.f32.mrf.mxu0
        %v2124 = vadd.f32 0.0, %v2123
        %2125 = vmatmul.f32.gmra.mxu0 %v1933
        %v2126 = vpop.f32.mrf.mxu0
        %v2127 = vadd.f32 0.0, %v2126
        %2128 = vmatmul.f32.gmra.mxu0 %v1937
        %v2129 = vpop.f32.mrf.mxu0
        %v2130 = vadd.f32 0.0, %v2129
        %2131 = vmatmul.f32.gmra.mxu0 %v1941
        %v2132 = vpop.f32.mrf.mxu0
        %v2133 = vadd.f32 0.0, %v2132
        %2134 = vmatmul.f32.gmra.mxu0 %v1945
        %v2135 = vpop.f32.mrf.mxu0
        %v2136 = vadd.f32 0.0, %v2135
        %2137 = vmatmul.f32.gmra.mxu0 %v1944
        %v2138 = vpop.f32.mrf.mxu0
        %v2139 = vadd.f32 0.0, %v2138
        %2140 = vdwg.mxu0
        %2141 = vmatpush.msra.mxu0 0.0
        %2142 = vmatpush.msra.mxu0 0.0
        %2143 = vmatpush.msra.mxu0 0.0
        %2144 = vmatpush.msra.mxu0 0.0
        %2145 = vmatpush.msra.mxu0 0.0
        %2146 = vmatpush.msra.mxu0 0.0
        %2147 = vmatpush.msra.mxu0 0.0
        %2148 = vmatpush.msra.mxu0 0.0
        %2149 = vmatpush.msra.mxu0 0.0
        %2150 = vmatpush.msra.mxu0 0.0
        %2151 = vmatpush.msra.mxu0 0.0
        %2152 = vmatpush.msra.mxu0 0.0
        %2153 = vmatpush.msra.mxu0 0.0
        %2154 = vmatpush.msra.mxu0 0.0
        %2155 = vmatpush.msra.mxu0 %v1919
        %2156 = vmatpush.msra.mxu0 %v1915
        %2157 = vmatmul.f32.gmra.mxu0 %v1954
        %v2158 = vpop.f32.mrf.mxu0
        %v2159 = vadd.f32 %v2124, %v2158
        %2160 = vmatmul.f32.gmra.mxu0 %v1956
        %v2161 = vpop.f32.mrf.mxu0
        %v2162 = vadd.f32 %v2127, %v2161
        %2163 = vmatmul.f32.gmra.mxu0 %v1958
        %v2164 = vpop.f32.mrf.mxu0
        %v2165 = vadd.f32 %v2130, %v2164
        %2166 = vmatmul.f32.gmra.mxu0 %v1960
        %v2167 = vpop.f32.mrf.mxu0
        %v2168 = vadd.f32 %v2133, %v2167
        %2169 = vmatmul.f32.gmra.mxu0 %v1962
        %v2170 = vpop.f32.mrf.mxu0
        %v2171 = vadd.f32 %v2136, %v2170
        %2172 = vmatmul.f32.gmra.mxu0 %v1964
        %v2173 = vpop.f32.mrf.mxu0
        %v2174 = vadd.f32 %v2139, %v2173
        %2175 = vdwg.mxu0
        %2176 = vmatpush.msra.mxu0 %v1912
        %2177 = vmatpush.msra.mxu0 %v1908
        %2178 = vmatpush.msra.mxu0 %v1904
        %2179 = vmatpush.msra.mxu0 %v1900
        %2180 = vmatpush.msra.mxu0 %v1896
        %2181 = vmatpush.msra.mxu0 %v1892
        %2182 = vmatpush.msra.mxu0 %v1888
        %2183 = vmatpush.msra.mxu0 %v1884
        %2184 = vmatpush.msra.mxu0 %v1880
        %2185 = vmatpush.msra.mxu0 %v1876
        %2186 = vmatpush.msra.mxu0 %v1872
        %2187 = vmatpush.msra.mxu0 %v1868
        %2188 = vmatpush.msra.mxu0 %v1864
        %2189 = vmatpush.msra.mxu0 %v1860
        %2190 = vmatpush.msra.mxu0 %v1856
        %2191 = vmatpush.msra.mxu0 %v1852
        %2192 = vmatmul.f32.gmra.mxu0 %v1928
        %v2193 = vpop.f32.mrf.mxu0
        %v2194 = vadd.f32 0.0, %v2193
        %2195 = vmatmul.f32.gmra.mxu0 %v1933
        %v2196 = vpop.f32.mrf.mxu0
        %v2197 = vadd.f32 0.0, %v2196
        %2198 = vmatmul.f32.gmra.mxu0 %v1937
        %v2199 = vpop.f32.mrf.mxu0
        %v2200 = vadd.f32 0.0, %v2199
        %2201 = vmatmul.f32.gmra.mxu0 %v1941
        %v2202 = vpop.f32.mrf.mxu0
        %v2203 = vadd.f32 0.0, %v2202
        %2204 = vmatmul.f32.gmra.mxu0 %v1945
        %v2205 = vpop.f32.mrf.mxu0
        %v2206 = vadd.f32 0.0, %v2205
        %2207 = vmatmul.f32.gmra.mxu0 %v1944
        %v2208 = vpop.f32.mrf.mxu0
        %v2209 = vadd.f32 0.0, %v2208
        %2210 = vdwg.mxu0
        %2211 = vmatpush.msra.mxu0 0.0
        %2212 = vmatpush.msra.mxu0 0.0
        %2213 = vmatpush.msra.mxu0 0.0
        %2214 = vmatpush.msra.mxu0 0.0
        %2215 = vmatpush.msra.mxu0 0.0
        %2216 = vmatpush.msra.mxu0 0.0
        %2217 = vmatpush.msra.mxu0 0.0
        %2218 = vmatpush.msra.mxu0 0.0
        %2219 = vmatpush.msra.mxu0 0.0
        %2220 = vmatpush.msra.mxu0 0.0
        %2221 = vmatpush.msra.mxu0 0.0
        %2222 = vmatpush.msra.mxu0 0.0
        %2223 = vmatpush.msra.mxu0 0.0
        %2224 = vmatpush.msra.mxu0 0.0
        %2225 = vmatpush.msra.mxu0 %v1920
        %2226 = vmatpush.msra.mxu0 %v1916
        %2227 = vmatmul.f32.gmra.mxu0 %v1954
        %v2228 = vpop.f32.mrf.mxu0
        %v2229 = vadd.f32 %v2194, %v2228
        %2230 = vmatmul.f32.gmra.mxu0 %v1956
        %v2231 = vpop.f32.mrf.mxu0
        %v2232 = vadd.f32 %v2197, %v2231
        %2233 = vmatmul.f32.gmra.mxu0 %v1958
        %v2234 = vpop.f32.mrf.mxu0
        %v2235 = vadd.f32 %v2200, %v2234
        %2236 = vmatmul.f32.gmra.mxu0 %v1960
        %v2237 = vpop.f32.mrf.mxu0
        %v2238 = vadd.f32 %v2203, %v2237
        %2239 = vmatmul.f32.gmra.mxu0 %v1962
        %v2240 = vpop.f32.mrf.mxu0
        %v2241 = vadd.f32 %v2206, %v2240
        %2242 = vmatmul.f32.gmra.mxu0 %v1964
        %v2243 = vpop.f32.mrf.mxu0
        %v2244 = vadd.f32 %v2209, %v2243
        %2245 = vdwg.mxu0
        %v2246 = vadd.f32 %v1820, %v2019
        %v2247 = vadd.f32 %v1821, %v2089
        %v2248 = vadd.f32 %v1822, %v2159
        %v2249 = vadd.f32 %v1823, %v2229
        %v2250 = vadd.f32 %v1824, %v2022
        %v2251 = vadd.f32 %v1825, %v2092
        %v2252 = vadd.f32 %v1826, %v2162
        %v2253 = vadd.f32 %v1827, %v2232
        %v2254 = vadd.f32 %v1828, %v2025
        %v2255 = vadd.f32 %v1829, %v2095
        %v2256 = vadd.f32 %v1830, %v2165
        %v2257 = vadd.f32 %v1831, %v2235
        %v2258 = vadd.f32 %v1832, %v2028
        %v2259 = vadd.f32 %v1833, %v2098
        %v2260 = vadd.f32 %v1834, %v2168
        %v2261 = vadd.f32 %v1835, %v2238
        %v2262 = vadd.f32 %v1836, %v2031
        %v2263 = vadd.f32 %v1837, %v2101
        %v2264 = vadd.f32 %v1838, %v2171
        %v2265 = vadd.f32 %v1839, %v2241
        %v2266 = vadd.f32 %v1840, %v2034
        %v2267 = vadd.f32 %v1841, %v2104
        %v2268 = vadd.f32 %v1842, %v2174
        %v2269 = vadd.f32 %v1843, %v2244
        %2270 = vst [vmem:[#allocation2] sm:$0xff] %v2246
        %2271 = vst [vmem:[#allocation2 + $0x8] sm:$0xff] %v2247
        %2272 = vst [vmem:[#allocation2 + $0x10] sm:$0xff] %v2248
        %vm2273 = vcmask 457728
        %2274 = vst.msk [vmem:[#allocation2 + $0x18] sm:$0xff] %vm2273, %v2249
        %2275 = vst [vmem:[#allocation2 + $0x20] sm:$0xff] %v2250
        %2276 = vst [vmem:[#allocation2 + $0x28] sm:$0xff] %v2251
        %2277 = vst [vmem:[#allocation2 + $0x30] sm:$0xff] %v2252
        %2278 = vst.msk [vmem:[#allocation2 + $0x38] sm:$0xff] %vm2273, %v2253
        %2279 = vst [vmem:[#allocation2 + $0x40] sm:$0xff] %v2254
        %2280 = vst [vmem:[#allocation2 + $0x48] sm:$0xff] %v2255
        %2281 = vst [vmem:[#allocation2 + $0x50] sm:$0xff] %v2256
        %2282 = vst.msk [vmem:[#allocation2 + $0x58] sm:$0xff] %vm2273, %v2257
        %2283 = vst [vmem:[#allocation2 + $0x60] sm:$0xff] %v2258
        %2284 = vst [vmem:[#allocation2 + $0x68] sm:$0xff] %v2259
        %2285 = vst [vmem:[#allocation2 + $0x70] sm:$0xff] %v2260
        %2286 = vst.msk [vmem:[#allocation2 + $0x78] sm:$0xff] %vm2273, %v2261
        %2287 = vst [vmem:[#allocation2 + $0x80] sm:$0xff] %v2262
        %2288 = vst [vmem:[#allocation2 + $0x88] sm:$0xff] %v2263
        %2289 = vst [vmem:[#allocation2 + $0x90] sm:$0xff] %v2264
        %2290 = vst.msk [vmem:[#allocation2 + $0x98] sm:$0xff] %vm2273, %v2265
        %2291 = vst [vmem:[#allocation2 + $0xa0] sm:$0xf] %v2266
        %2292 = vst [vmem:[#allocation2 + $0xa8] sm:$0xf] %v2267
        %2293 = vst [vmem:[#allocation2 + $0xb0] sm:$0xf] %v2268
        %vm2294 = vcmask 453632
        %2295 = vst.msk [vmem:[#allocation2 + $0xb8] sm:$0xf] %vm2294, %v2269
        %v2296 = vld [vmem:[#allocation2] sm:$0xff]
        %v2297 = vld [vmem:[#allocation2 + $0x8] sm:$0xff]
        %v2298 = vld [vmem:[#allocation2 + $0x20] sm:$0xff]
        %v2299 = vld [vmem:[#allocation2 + $0x28] sm:$0xff]
        %v2300 = vld [vmem:[#allocation2 + $0x40] sm:$0xff]
        %v2301 = vld [vmem:[#allocation2 + $0x48] sm:$0xff]
        %v2302 = vld [vmem:[#allocation2 + $0x60] sm:$0xff]
        %v2303 = vld [vmem:[#allocation2 + $0x68] sm:$0xff]
        %v2304 = vld [vmem:[#allocation2 + $0x80] sm:$0xff]
        %v2305 = vld [vmem:[#allocation2 + $0x88] sm:$0xff]
        %v2306 = vld [vmem:[#allocation2 + $0xa0] sm:$0xf]
        %v2307 = vld [vmem:[#allocation2 + $0xa8] sm:$0xf]
        %v2308 = vld [vmem:[#allocation2 + $0x10] sm:$0xff]
        %v2309 = vld [vmem:[#allocation2 + $0x18] sm:$0xff]
        %v2310 = vld [vmem:[#allocation2 + $0x30] sm:$0xff]
        %v2311 = vld [vmem:[#allocation2 + $0x38] sm:$0xff]
        %v2312 = vld [vmem:[#allocation2 + $0x50] sm:$0xff]
        %v2313 = vld [vmem:[#allocation2 + $0x58] sm:$0xff]
        %v2314 = vld [vmem:[#allocation2 + $0x70] sm:$0xff]
        %v2315 = vld [vmem:[#allocation2 + $0x78] sm:$0xff]
        %v2316 = vld [vmem:[#allocation2 + $0x90] sm:$0xff]
        %v2317 = vld [vmem:[#allocation2 + $0x98] sm:$0xff]
        %v2318 = vld [vmem:[#allocation2 + $0xb0] sm:$0xf]
        %v2319 = vld [vmem:[#allocation2 + $0xb8] sm:$0xf]
        %2338 = vrot.lane.b32.xlu0 %v2297, 36
        %v2339 = vpop.permute.xlu0 %2338
        %2340 = vrot.lane.b32.xlu0 %v2308, 36
        %v2341 = vpop.permute.xlu0 %2340
        %2342 = vrot.lane.b32.xlu0 %v2309, 36
        %v2343 = vpop.permute.xlu0 %2342
        %2344 = vrot.lane.b32.xlu0 %v2299, 36
        %v2345 = vpop.permute.xlu0 %2344
        %2346 = vrot.lane.b32.xlu0 %v2310, 36
        %v2347 = vpop.permute.xlu0 %2346
        %2348 = vrot.lane.b32.xlu0 %v2311, 36
        %v2349 = vpop.permute.xlu0 %2348
        %2350 = vrot.lane.b32.xlu0 %v2301, 36
        %v2351 = vpop.permute.xlu0 %2350
        %2352 = vrot.lane.b32.xlu0 %v2312, 36
        %v2353 = vpop.permute.xlu0 %2352
        %2354 = vrot.lane.b32.xlu0 %v2313, 36
        %v2355 = vpop.permute.xlu0 %2354
        %2356 = vrot.lane.b32.xlu0 %v2303, 36
        %v2357 = vpop.permute.xlu0 %2356
        %2358 = vrot.lane.b32.xlu0 %v2314, 36
        %v2359 = vpop.permute.xlu0 %2358
        %2360 = vrot.lane.b32.xlu0 %v2315, 36
        %v2361 = vpop.permute.xlu0 %2360
        %2362 = vrot.lane.b32.xlu0 %v2305, 36
        %v2363 = vpop.permute.xlu0 %2362
        %2364 = vrot.lane.b32.xlu0 %v2316, 36
        %v2365 = vpop.permute.xlu0 %2364
        %2366 = vrot.lane.b32.xlu0 %v2317, 36
        %v2367 = vpop.permute.xlu0 %2366
        %2368 = vrot.lane.b32.xlu0 %v2307, 36
        %v2369 = vpop.permute.xlu0 %2368
        %2370 = vrot.lane.b32.xlu0 %v2318, 36
        %v2371 = vpop.permute.xlu0 %2370
        %2372 = vrot.lane.b32.xlu0 %v2319, 36
        %v2373 = vpop.permute.xlu0 %2372
        %vm2374 = vcmask 293888
        %v2375 = vsel %vm2374, %v2339, %v2341
        %v2376 = vsel %vm2374, %v2341, %v2343
        %v2377 = vsel %vm2374, %v2345, %v2347
        %v2378 = vsel %vm2374, %v2347, %v2349
        %v2379 = vsel %vm2374, %v2351, %v2353
        %v2380 = vsel %vm2374, %v2353, %v2355
        %v2381 = vsel %vm2374, %v2357, %v2359
        %v2382 = vsel %vm2374, %v2359, %v2361
        %v2383 = vsel %vm2374, %v2363, %v2365
        %v2384 = vsel %vm2374, %v2365, %v2367
        %v2385 = vsel %vm2374, %v2369, %v2371
        %v2386 = vsel %vm2374, %v2371, %v2373
        %v2399 = vmax.f32 %v2296, %v2375
        %v2400 = vmax.f32 %v2297, %v2376
        %v2401 = vmax.f32 %v2298, %v2377
        %v2402 = vmax.f32 %v2299, %v2378
        %v2403 = vmax.f32 %v2300, %v2379
        %v2404 = vmax.f32 %v2301, %v2380
        %v2405 = vmax.f32 %v2302, %v2381
        %v2406 = vmax.f32 %v2303, %v2382
        %v2407 = vmax.f32 %v2304, %v2383
        %v2408 = vmax.f32 %v2305, %v2384
        %v2409 = vmax.f32 %v2306, %v2385
        %v2410 = vmax.f32 %v2307, %v2386
        %v2411 = vld [vmem:[#allocation5] sm:$0x3]
        %v2413 = vperm.slane %v2411, 0
        %v2414 = vperm.slane %v2411, 1
        %v2417 = vadd.f32 %v2399, %v2413
        %v2418 = vadd.f32 %v2400, %v2414
        %v2419 = vadd.f32 %v2401, %v2413
        %v2420 = vadd.f32 %v2402, %v2414
        %v2421 = vadd.f32 %v2403, %v2413
        %v2422 = vadd.f32 %v2404, %v2414
        %v2423 = vadd.f32 %v2405, %v2413
        %v2424 = vadd.f32 %v2406, %v2414
        %v2425 = vadd.f32 %v2407, %v2413
        %v2426 = vadd.f32 %v2408, %v2414
        %v2427 = vadd.f32 %v2409, %v2413
        %v2428 = vadd.f32 %v2410, %v2414
        %v2429 = vmax.f32 %v2417, 0.0
        %v2430 = vmax.f32 %v2418, 0.0
        %v2431 = vmax.f32 %v2419, 0.0
        %v2432 = vmax.f32 %v2420, 0.0
        %v2433 = vmax.f32 %v2421, 0.0
        %v2434 = vmax.f32 %v2422, 0.0
        %v2435 = vmax.f32 %v2423, 0.0
        %v2436 = vmax.f32 %v2424, 0.0
        %v2437 = vmax.f32 %v2425, 0.0
        %v2438 = vmax.f32 %v2426, 0.0
        %v2439 = vmax.f32 %v2427, 0.0
        %v2440 = vmax.f32 %v2428, 0.0
        %2441 = vst [vmem:[%s202] sm:$0xff] %v2429
        %vm2442 = vcmask 752640
        %2443 = vst.msk [vmem:[%s202 + $0x8] sm:$0xff] %vm2442, %v2430
        %2444 = vst [vmem:[%s202 + $0x10] sm:$0xff] %v2431
        %2445 = vst.msk [vmem:[%s202 + $0x18] sm:$0xff] %vm2442, %v2432
        %2446 = vst [vmem:[%s202 + $0x20] sm:$0xff] %v2433
        %2447 = vst.msk [vmem:[%s202 + $0x28] sm:$0xff] %vm2442, %v2434
        %2448 = vst [vmem:[%s202 + $0x30] sm:$0xff] %v2435
        %2449 = vst.msk [vmem:[%s202 + $0x38] sm:$0xff] %vm2442, %v2436
        %2450 = vst [vmem:[%s202 + $0x40] sm:$0xff] %v2437
        %2451 = vst.msk [vmem:[%s202 + $0x48] sm:$0xff] %vm2442, %v2438
        %2452 = vst [vmem:[%s202 + $0x50] sm:$0xf] %v2439
        %vm2453 = vcmask 748544
        %2454 = vst.msk [vmem:[%s202 + $0x58] sm:$0xf] %vm2453, %v2440
        %p2455 = scmp.lt.s32.totalorder %s16, 1
        %s2456 = scalar_select %p2455, %s16, 1
        %s2457 = smul.addr %s2456, 12
        %s2458 = smul.addr %s2457, 8
        %s2459 = scalar_lea.vmem %s3, %s2458
        // Predicated region
        $region41: #{net_forward.4} parent=31 // pred_check
          %p2460 = pneg %p102
        $region42: #{net_forward.4} parent=31 // pred_check_branch
          %2462 = sbr.rel (%p2460) target = $region44
        $region43: #{net_forward.4} parent=31 // pred_region
          _
        $region44: #{net_forward.4} parent=31 // pred_fallthru
          _
      $region32: #{net_forward.4} parent=5 // pred_fallthru
        _
      %p2463 = scmp.le.s32.totalorder 2, %s11
      // Predicated region
      $region45: #{net_forward.4} parent=5 // pred_check
        %p2464 = pneg %p2463
      $region46: #{net_forward.4} parent=5 // pred_check_branch
        %2466 = sbr.rel (%p2464) target = $region48
      $region47: #{net_forward.4} parent=5 // pred_region
        %s2467 = ssub.s32 %s11, 2
        // Predicated region
        $region49: #{net_forward.4} parent=47 // pred_check
          %p2468 = pneg %p108
        $region50: #{net_forward.4} parent=47 // pred_check_branch
          %2470 = sbr.rel (%p2468) target = $region52
        $region51: #{net_forward.4} parent=47 // pred_region
          %p2471 = scmp.lt.s32.totalorder %s17, 1
          %s2472 = scalar_select %p2471, %s17, 1
          %s2473 = smul.addr %s2472, 12
          %s2474 = smul.addr %s2473, 8
          %s2475 = scalar_lea.vmem %s3, %s2474
        $region52: #{net_forward.4} parent=47 // pred_fallthru
          _
      $region48: #{net_forward.4} parent=5 // pred_fallthru
        _
    $region6: #{net_forward.4} parent=1 // loop_footer
      %s15 = sadd.s32 1, %s11
    $region7: #{net_forward.4} parent=1 // loop_footer_branch
      %10 = sbr.rel target = $region3
    $region8: #{net_forward.4} parent=1 // loop_exit
      _
    %2476 = vsyncpa [#allocation4], 1
    %s2477 = scalar_lea.sflag [#allocation4], 1
    %2478 = vsyncpa %s2477, 1
    %2479 = vsyncpa [#allocation6], 1

</llo_original>
